<compile_context>
chip_gen: v6e
topology: v6e:2x2x1
jax: 0.10.0
libtpu: 0.0.40
codegen_flags: <defaults>
</compile_context>

<pallas_src>
import functools

import jax
import jax.numpy as jnp
from jax.experimental import pallas as pl
from jax.experimental.pallas import tpu as pltpu

NEG_SLOPE = 0.01  # torch.nn.LeakyReLU() default


# --------------------------------- kernel ---------------------------------

def lbs_pbs_kernel(xin_ref,
                   w1, b1, w2, b2, w3, b3, w4, b4, w5, b5, sel,
                   out_ref, *, p3, ew_bf16):
    ew = jnp.bfloat16 if ew_bf16 else jnp.float32

    def layer(a, w, b):
        # bf16 x bf16 MXU matmul, f32 accumulate.
        o = jnp.dot(a, w[...], preferred_element_type=jnp.float32)
        # bias add + LeakyReLU in bf16 (v6e/v7x) or f32 (v5e); b is shipped in `ew`.
        o = o.astype(ew) + b[...]
        o = jnp.maximum(o, NEG_SLOPE * o)          # LeakyReLU, slope in (0,1)
        return o.astype(jnp.bfloat16)              # bf16 activation storage

    h = xin_ref[...]                               # (TM, Dt+Dx) bf16 = [theta | x]
    h = layer(h, w1, b1)
    h = layer(h, w2, b2)
    h = layer(h, w3, b3)
    h = layer(h, w4, b4)                           # feeds lin5 of both branches

    # fused lin5 -> (TM, 6P): columns are [te | te | te | dm_j0 | dm_j1 | dm_j2]
    o5 = jnp.dot(h, w5[...], preferred_element_type=jnp.float32) + b5[...]

    # einsum('bpi,bpij->bpj'):  delta_j = sum_i te_i * dm[i, j]
    # = elementwise (tiled te) * (blocked dm), then block-sum via the 0/1 selector.
    prod = (o5[:, :p3] * o5[:, p3:]).astype(jnp.bfloat16)       # (TM, 3P)
    out_ref[...] = jnp.dot(prod, sel[...],
                           preferred_element_type=jnp.float32).astype(out_ref.dtype)


# --------------------------- host-side param fusion ---------------------------

def _fuse_params(theta_layers, matrix_layers, ew_bf16):
    """Fuse the two 5-layer MLPs into block-diagonal weights (bf16) + biases."""
    tw, tb = zip(*theta_layers)
    mw, mb = zip(*matrix_layers)
    P = tw[4].shape[1]          # d_out_p
    Hm = mw[4].shape[0]         # hidden_matrix

    def blockdiag(a, b):
        z_tr = jnp.zeros((a.shape[0], b.shape[1]), jnp.float32)
        z_bl = jnp.zeros((b.shape[0], a.shape[1]), jnp.float32)
        return jnp.concatenate(
            [jnp.concatenate([a, z_tr], axis=1),
             jnp.concatenate([z_bl, b], axis=1)], axis=0)

    # matrix-branch lin5 columns: interleaved (i*3+j)  ->  blocked (j*P+i)
    mw5p = mw[4].reshape(Hm, P, 3).transpose(0, 2, 1).reshape(Hm, 3 * P)
    mb5p = mb[4].reshape(P, 3).T.reshape(3 * P)

    # theta-branch lin5 duplicated 3x so o5 = [te|te|te | dm_blocked]  (6P wide)
    tw5d = jnp.concatenate([tw[4]] * 3, axis=1)
    tb5d = jnp.concatenate([tb[4]] * 3)

    ws = [blockdiag(tw[k], mw[k]) for k in range(4)] + [blockdiag(tw5d, mw5p)]
    bs = [jnp.concatenate([tb[k], mb[k]]) for k in range(4)] + \
         [jnp.concatenate([tb5d, mb5p])]

    # 0/1 block-sum selector; exactly representable in bf16 -> bf16 MXU matmul.
    sel = (jnp.arange(3 * P)[:, None] // P
           == jnp.arange(3)[None, :]).astype(jnp.bfloat16)

    ew = jnp.bfloat16 if ew_bf16 else jnp.float32
    fused = []
    for k, (w, b) in enumerate(zip(ws, bs)):
        # lin5 bias stays f32 (added onto the f32 accumulator in the epilogue).
        bdt = jnp.float32 if k == 4 else ew
        fused += [w.astype(jnp.bfloat16), b.astype(bdt)[None, :]]
    fused.append(sel)
    return fused, P


# ------------------------------ chip detection ------------------------------

def _chip_kind():
    try:
        return jax.devices()[0].device_kind.lower()
    except Exception:
        return ""


def _chip_features():
    kind = _chip_kind()
    old_gen = any(t in kind for t in ("v2", "v3", "v4", "v5"))
    ew_bf16 = not old_gen            # bf16 VPU only on v6e / v7x
    two_cores = "v7" in kind         # 2 TensorCores per chip on v7x
    return ew_bf16, two_cores


# --------------------------------- wrapper ---------------------------------

def lbs_pbs_forward(theta, x, theta_layers, matrix_layers, *, tm=2048):
    B, N, Dt = theta.shape
    _, _, Dx = x.shape
    M = B * N
    if M == 0:
        return jnp.zeros((B, N, 3), jnp.float32)

    ew_bf16, two_cores = _chip_features()
    fused, P = _fuse_params(theta_layers, matrix_layers, ew_bf16)

    # Row-tile heuristic (generation-aware):
    #  * v7x (2 TCs, "parallel" axis): even, balanced step count.
    #  * v5e/v6e (1 TC): a single tile when M fits, large tiles otherwise.
    if two_cores and M > 128:
        steps = max(2, 2 * pl.cdiv(M, 2 * tm))
        tm_eff = max(128, pl.cdiv(pl.cdiv(M, steps), 128) * 128)
    else:
        tm_eff = max(128, min(tm, pl.cdiv(M, 128) * 128))
        steps = pl.cdiv(M, tm_eff)
    Mp = steps * tm_eff

    # Single fused bf16 input stream [theta | x]  (cast before its only use).
    xin = jnp.concatenate([theta.reshape(M, Dt), x.reshape(M, Dx)],
                          axis=-1).astype(jnp.bfloat16)
    if Mp != M:
        xin = jnp.pad(xin, ((0, Mp - M), (0, 0)))

    def full_spec(a):
        return pl.BlockSpec(a.shape, lambda i, nd=a.ndim: (0,) * nd)

    in_specs = ([pl.BlockSpec((tm_eff, Dt + Dx), lambda i: (i, 0))]
                + [full_spec(a) for a in fused])

    out = pl.pallas_call(
        functools.partial(lbs_pbs_kernel, p3=3 * P, ew_bf16=ew_bf16),
        out_shape=jax.ShapeDtypeStruct((Mp, 3), jnp.float32),
        grid_spec=pltpu.PrefetchScalarGridSpec(
            num_scalar_prefetch=0,
            grid=(steps,),
            in_specs=in_specs,
            out_specs=pl.BlockSpec((tm_eff, 3), lambda i: (i, 0)),
        ),
        compiler_params=pltpu.CompilerParams(
            dimension_semantics=("parallel",)),
    )(xin, *fused)

    return out[:M].reshape(B, N, 3)


# ------------------- parameter construction (deterministic) -------------------

def make_params(key, d_in_theta, d_in_x, d_out_p, hidden_theta, hidden_matrix):
    """Per-layer (weight, bias) lists for both branches; weights stored (in, out)."""
    keys = jax.random.split(key, 20)

    def branch(wkeys, bkeys, dims):
        layers = []
        for kw, kb, fi, fo in zip(wkeys, bkeys, dims[:-1], dims[1:]):
            bound = (6.0 / (fi + fo)) ** 0.5        # xavier_uniform_
            w = jax.random.uniform(kw, (fi, fo), jnp.float32, -bound, bound)
            b = 0.1 * jax.random.normal(kb, (fo,), jnp.float32)
            layers.append((w, b))
        return layers

    tdims = [d_in_theta] + [hidden_theta] * 4 + [d_out_p]
    mdims = [d_in_x] + [hidden_matrix] * 4 + [d_out_p * 3]
    theta_layers = branch(keys[0:5], keys[5:10], tdims)
    matrix_layers = branch(keys[10:15], keys[15:20], mdims)
    return theta_layers, matrix_layers


# -------------------- pure-JAX references (torch semantics) --------------------

def ref_forward_f32(theta, x, theta_layers, matrix_layers):
    def branch(v, layers):
        h = v
        for w, b in layers[:-1]:
            z = h @ w + b
            h = jnp.where(z > 0, z, NEG_SLOPE * z)
        w5, b5 = layers[-1]
        return h @ w5 + b5

    B, N, _ = theta.shape
    te = branch(theta.reshape(B * N, -1).astype(jnp.float32), theta_layers)
    dm = branch(x.reshape(B * N, -1).astype(jnp.float32), matrix_layers)
    P = te.shape[-1]
    dm = dm.reshape(-1, P, 3)
    delta = jnp.einsum('mi,mij->mj', te, dm)
    return delta.reshape(B, N, 3)


def ref_forward_matched(theta, x, theta_layers, matrix_layers, ew_bf16):
    """Mirrors the kernel's precision choices exactly (up to f32 accumulate order)."""
    ew = jnp.bfloat16 if ew_bf16 else jnp.float32

    def layer(a, w, b):
        o = jnp.dot(a, w.astype(jnp.bfloat16), preferred_element_type=jnp.float32)
        o = o.astype(ew) + b.astype(ew)
        o = jnp.maximum(o, NEG_SLOPE * o)
        return o.astype(jnp.bfloat16)

    def branch(v, layers):
        h = v.astype(jnp.bfloat16)
        for w, b in layers[:-1]:
            h = layer(h, w, b)
        w5, b5 = layers[-1]
        return jnp.dot(h, w5.astype(jnp.bfloat16),
                       preferred_element_type=jnp.float32) + b5

    B, N, _ = theta.shape
    te = branch(theta.reshape(B * N, -1), theta_layers)        # (M, P)   f32
    dm = branch(x.reshape(B * N, -1), matrix_layers)           # (M, 3P)  f32
    P = te.shape[-1]
    dm = dm.reshape(-1, P, 3)
    prod = (te[:, :, None] * dm).astype(jnp.bfloat16).astype(jnp.float32)
    delta = prod.sum(axis=1)
    return delta.reshape(B, N, 3)


# ----------------------------------- test -----------------------------------

if __name__ == "__main__":
    B, N = 2, 200
    d_in_theta, d_in_x, d_out_p = 8, 3, 16
    hidden_theta = hidden_matrix = 32

    key = jax.random.PRNGKey(0)
    k_theta, k_x, k_params = jax.random.split(key, 3)
    theta = jax.random.normal(k_theta, (B, N, d_in_theta), jnp.float32)
    x = jax.random.normal(k_x, (B, N, d_in_x), jnp.float32)

    theta_layers, matrix_layers = make_params(
        k_params, d_in_theta, d_in_x, d_out_p, hidden_theta, hidden_matrix)

    delta_x = jax.jit(lbs_pbs_forward)(theta, x, theta_layers, matrix_layers)
    delta_x = jax.block_until_ready(delta_x)
    assert delta_x.shape == (B, N, 3)

    ew_bf16, _ = _chip_features()

    # 1) strict plumbing check against a reference with matched precision choices
    ref_m = ref_forward_matched(theta, x, theta_layers, matrix_layers, ew_bf16)
    err_m = float(jnp.max(jnp.abs(delta_x - ref_m)))
    assert jnp.allclose(delta_x, ref_m, rtol=1e-2, atol=1e-2), err_m

    # 2) sanity check vs the full-f32 module (loose: bf16 matmuls + bf16 elementwise
    #    on v6e/v7x; the strict correctness check is (1) above)
    ref_f = ref_forward_f32(theta, x, theta_layers, matrix_layers)
    err_f = float(jnp.max(jnp.abs(delta_x - ref_f)))
    scale = float(jnp.max(jnp.abs(ref_f)))
    assert err_f < 1e-1 * scale, (err_f, scale)

    print("KERNEL_OK")
</pallas_src>

<mosaic_0001>
module attributes {stable_mosaic.version = 11 : i64} {
  func.func @lbs_pbs_kernel(%arg0: i32, %arg1: memref<512x11xbf16, #tpu.memory_space<vmem>>, %arg2: memref<11x64xbf16, #tpu.memory_space<vmem>>, %arg3: memref<1x64xbf16, #tpu.memory_space<vmem>>, %arg4: memref<64x64xbf16, #tpu.memory_space<vmem>>, %arg5: memref<1x64xbf16, #tpu.memory_space<vmem>>, %arg6: memref<64x64xbf16, #tpu.memory_space<vmem>>, %arg7: memref<1x64xbf16, #tpu.memory_space<vmem>>, %arg8: memref<64x64xbf16, #tpu.memory_space<vmem>>, %arg9: memref<1x64xbf16, #tpu.memory_space<vmem>>, %arg10: memref<64x96xbf16, #tpu.memory_space<vmem>>, %arg11: memref<1x96xf32, #tpu.memory_space<vmem>>, %arg12: memref<48x3xbf16, #tpu.memory_space<vmem>>, %arg13: memref<512x3xf32, #tpu.memory_space<vmem>>) attributes {dimension_semantics = [#tpu.dimension_semantics<parallel>], iteration_bounds = array<i64: 1>, scalar_prefetch = 0 : i64, scratch_operands = 0 : i64, tpu.core_type = #tpu.core_type<tc>, window_params = [{transform_indices = @transform_0, window_bounds = array<i64: 512, 11>}, {pipeline_mode = #tpu.pipeline_mode<synchronous>, transform_indices = @transform_1, window_bounds = array<i64: 11, 64>}, {pipeline_mode = #tpu.pipeline_mode<synchronous>, transform_indices = @transform_2, window_bounds = array<i64: 1, 64>}, {pipeline_mode = #tpu.pipeline_mode<synchronous>, transform_indices = @transform_3, window_bounds = array<i64: 64, 64>}, {pipeline_mode = #tpu.pipeline_mode<synchronous>, transform_indices = @transform_4, window_bounds = array<i64: 1, 64>}, {pipeline_mode = #tpu.pipeline_mode<synchronous>, transform_indices = @transform_5, window_bounds = array<i64: 64, 64>}, {pipeline_mode = #tpu.pipeline_mode<synchronous>, transform_indices = @transform_6, window_bounds = array<i64: 1, 64>}, {pipeline_mode = #tpu.pipeline_mode<synchronous>, transform_indices = @transform_7, window_bounds = array<i64: 64, 64>}, {pipeline_mode = #tpu.pipeline_mode<synchronous>, transform_indices = @transform_8, window_bounds = array<i64: 1, 64>}, {pipeline_mode = #tpu.pipeline_mode<synchronous>, transform_indices = @transform_9, window_bounds = array<i64: 64, 96>}, {pipeline_mode = #tpu.pipeline_mode<synchronous>, transform_indices = @transform_10, window_bounds = array<i64: 1, 96>}, {pipeline_mode = #tpu.pipeline_mode<synchronous>, transform_indices = @transform_11, window_bounds = array<i64: 48, 3>}, {transform_indices = @transform_12, window_bounds = array<i64: 512, 3>}]} {
    %c0 = arith.constant 0 : index
    %c0_0 = arith.constant 0 : index
    %0 = vector.load %arg1[%c0, %c0_0] : memref<512x11xbf16, #tpu.memory_space<vmem>>, vector<512x11xbf16>
    %c0_1 = arith.constant 0 : index
    %c0_2 = arith.constant 0 : index
    %1 = vector.load %arg2[%c0_1, %c0_2] : memref<11x64xbf16, #tpu.memory_space<vmem>>, vector<11x64xbf16>
    %cst = arith.constant dense<0.000000e+00> : vector<512x64xf32>
    %2 = tpu.matmul %0, %1, %cst {dimension_numbers = #tpu.dot_dimension_numbers<[1], [0], [0], [1], [0, 0, 1, 1], [], []>} : vector<512x11xbf16>, vector<11x64xbf16>, vector<512x64xf32> -> vector<512x64xf32>
    %3 = arith.truncf %2 : vector<512x64xf32> to vector<512x64xbf16>
    %c0_3 = arith.constant 0 : index
    %c0_4 = arith.constant 0 : index
    %4 = vector.load %arg3[%c0_3, %c0_4] : memref<1x64xbf16, #tpu.memory_space<vmem>>, vector<1x64xbf16>
    %5 = vector.broadcast %4 : vector<1x64xbf16> to vector<512x64xbf16>
    %6 = arith.addf %3, %5 : vector<512x64xbf16>
    %cst_5 = arith.constant 1.000980e-02 : bf16
    %7 = vector.broadcast %cst_5 : bf16 to vector<512x64xbf16>
    %8 = arith.mulf %7, %6 : vector<512x64xbf16>
    %9 = arith.maximumf %6, %8 : vector<512x64xbf16>
    %c0_6 = arith.constant 0 : index
    %c0_7 = arith.constant 0 : index
    %10 = vector.load %arg4[%c0_6, %c0_7] : memref<64x64xbf16, #tpu.memory_space<vmem>>, vector<64x64xbf16>
    %cst_8 = arith.constant dense<0.000000e+00> : vector<512x64xf32>
    %11 = tpu.matmul %9, %10, %cst_8 {dimension_numbers = #tpu.dot_dimension_numbers<[1], [0], [0], [1], [0, 0, 1, 1], [], []>} : vector<512x64xbf16>, vector<64x64xbf16>, vector<512x64xf32> -> vector<512x64xf32>
    %12 = arith.truncf %11 : vector<512x64xf32> to vector<512x64xbf16>
    %c0_9 = arith.constant 0 : index
    %c0_10 = arith.constant 0 : index
    %13 = vector.load %arg5[%c0_9, %c0_10] : memref<1x64xbf16, #tpu.memory_space<vmem>>, vector<1x64xbf16>
    %14 = vector.broadcast %13 : vector<1x64xbf16> to vector<512x64xbf16>
    %15 = arith.addf %12, %14 : vector<512x64xbf16>
    %cst_11 = arith.constant 1.000980e-02 : bf16
    %16 = vector.broadcast %cst_11 : bf16 to vector<512x64xbf16>
    %17 = arith.mulf %16, %15 : vector<512x64xbf16>
    %18 = arith.maximumf %15, %17 : vector<512x64xbf16>
    %c0_12 = arith.constant 0 : index
    %c0_13 = arith.constant 0 : index
    %19 = vector.load %arg6[%c0_12, %c0_13] : memref<64x64xbf16, #tpu.memory_space<vmem>>, vector<64x64xbf16>
    %cst_14 = arith.constant dense<0.000000e+00> : vector<512x64xf32>
    %20 = tpu.matmul %18, %19, %cst_14 {dimension_numbers = #tpu.dot_dimension_numbers<[1], [0], [0], [1], [0, 0, 1, 1], [], []>} : vector<512x64xbf16>, vector<64x64xbf16>, vector<512x64xf32> -> vector<512x64xf32>
    %21 = arith.truncf %20 : vector<512x64xf32> to vector<512x64xbf16>
    %c0_15 = arith.constant 0 : index
    %c0_16 = arith.constant 0 : index
    %22 = vector.load %arg7[%c0_15, %c0_16] : memref<1x64xbf16, #tpu.memory_space<vmem>>, vector<1x64xbf16>
    %23 = vector.broadcast %22 : vector<1x64xbf16> to vector<512x64xbf16>
    %24 = arith.addf %21, %23 : vector<512x64xbf16>
    %cst_17 = arith.constant 1.000980e-02 : bf16
    %25 = vector.broadcast %cst_17 : bf16 to vector<512x64xbf16>
    %26 = arith.mulf %25, %24 : vector<512x64xbf16>
    %27 = arith.maximumf %24, %26 : vector<512x64xbf16>
    %c0_18 = arith.constant 0 : index
    %c0_19 = arith.constant 0 : index
    %28 = vector.load %arg8[%c0_18, %c0_19] : memref<64x64xbf16, #tpu.memory_space<vmem>>, vector<64x64xbf16>
    %cst_20 = arith.constant dense<0.000000e+00> : vector<512x64xf32>
    %29 = tpu.matmul %27, %28, %cst_20 {dimension_numbers = #tpu.dot_dimension_numbers<[1], [0], [0], [1], [0, 0, 1, 1], [], []>} : vector<512x64xbf16>, vector<64x64xbf16>, vector<512x64xf32> -> vector<512x64xf32>
    %30 = arith.truncf %29 : vector<512x64xf32> to vector<512x64xbf16>
    %c0_21 = arith.constant 0 : index
    %c0_22 = arith.constant 0 : index
    %31 = vector.load %arg9[%c0_21, %c0_22] : memref<1x64xbf16, #tpu.memory_space<vmem>>, vector<1x64xbf16>
    %32 = vector.broadcast %31 : vector<1x64xbf16> to vector<512x64xbf16>
    %33 = arith.addf %30, %32 : vector<512x64xbf16>
    %cst_23 = arith.constant 1.000980e-02 : bf16
    %34 = vector.broadcast %cst_23 : bf16 to vector<512x64xbf16>
    %35 = arith.mulf %34, %33 : vector<512x64xbf16>
    %36 = arith.maximumf %33, %35 : vector<512x64xbf16>
    %c0_24 = arith.constant 0 : index
    %c0_25 = arith.constant 0 : index
    %37 = vector.load %arg10[%c0_24, %c0_25] : memref<64x96xbf16, #tpu.memory_space<vmem>>, vector<64x96xbf16>
    %cst_26 = arith.constant dense<0.000000e+00> : vector<512x96xf32>
    %38 = tpu.matmul %36, %37, %cst_26 {dimension_numbers = #tpu.dot_dimension_numbers<[1], [0], [0], [1], [0, 0, 1, 1], [], []>} : vector<512x64xbf16>, vector<64x96xbf16>, vector<512x96xf32> -> vector<512x96xf32>
    %c0_27 = arith.constant 0 : index
    %c0_28 = arith.constant 0 : index
    %39 = vector.load %arg11[%c0_27, %c0_28] : memref<1x96xf32, #tpu.memory_space<vmem>>, vector<1x96xf32>
    %40 = vector.broadcast %39 : vector<1x96xf32> to vector<512x96xf32>
    %41 = arith.addf %38, %40 : vector<512x96xf32>
    %42 = vector.extract_strided_slice %41 {offsets = [0, 0], sizes = [512, 48], strides = [1, 1]} : vector<512x96xf32> to vector<512x48xf32>
    %43 = vector.extract_strided_slice %41 {offsets = [0, 48], sizes = [512, 48], strides = [1, 1]} : vector<512x96xf32> to vector<512x48xf32>
    %44 = arith.mulf %42, %43 : vector<512x48xf32>
    %45 = arith.truncf %44 : vector<512x48xf32> to vector<512x48xbf16>
    %c0_29 = arith.constant 0 : index
    %c0_30 = arith.constant 0 : index
    %46 = vector.load %arg12[%c0_29, %c0_30] : memref<48x3xbf16, #tpu.memory_space<vmem>>, vector<48x3xbf16>
    %cst_31 = arith.constant dense<0.000000e+00> : vector<512x3xf32>
    %47 = tpu.matmul %45, %46, %cst_31 {dimension_numbers = #tpu.dot_dimension_numbers<[1], [0], [0], [1], [0, 0, 1, 1], [], []>} : vector<512x48xbf16>, vector<48x3xbf16>, vector<512x3xf32> -> vector<512x3xf32>
    %c0_32 = arith.constant 0 : index
    %c0_33 = arith.constant 0 : index
    %48 = vector.load %arg13[%c0_32, %c0_33] : memref<512x3xf32, #tpu.memory_space<vmem>>, vector<512x3xf32>
    tpu.vector_store %arg13[%c0_32, %c0_33], %47 {strides = array<i32>} : memref<512x3xf32, #tpu.memory_space<vmem>>, vector<512x3xf32>,
    return
  }
  func.func @transform_0(%arg0: i32) -> (i32, i32) {
    %c0_i32 = arith.constant 0 : i32
    %c0_i32_0 = arith.constant 0 : i32
    return %arg0, %c0_i32 : i32, i32
  }
  func.func @transform_1(%arg0: i32) -> (i32, i32) {
    %c0_i32 = arith.constant 0 : i32
    %c0_i32_0 = arith.constant 0 : i32
    %c0_i32_1 = arith.constant 0 : i32
    return %c0_i32, %c0_i32_0 : i32, i32
  }
  func.func @transform_2(%arg0: i32) -> (i32, i32) {
    %c0_i32 = arith.constant 0 : i32
    %c0_i32_0 = arith.constant 0 : i32
    %c0_i32_1 = arith.constant 0 : i32
    return %c0_i32, %c0_i32_0 : i32, i32
  }
  func.func @transform_3(%arg0: i32) -> (i32, i32) {
    %c0_i32 = arith.constant 0 : i32
    %c0_i32_0 = arith.constant 0 : i32
    %c0_i32_1 = arith.constant 0 : i32
    return %c0_i32, %c0_i32_0 : i32, i32
  }
  func.func @transform_4(%arg0: i32) -> (i32, i32) {
    %c0_i32 = arith.constant 0 : i32
    %c0_i32_0 = arith.constant 0 : i32
    %c0_i32_1 = arith.constant 0 : i32
    return %c0_i32, %c0_i32_0 : i32, i32
  }
  func.func @transform_5(%arg0: i32) -> (i32, i32) {
    %c0_i32 = arith.constant 0 : i32
    %c0_i32_0 = arith.constant 0 : i32
    %c0_i32_1 = arith.constant 0 : i32
    return %c0_i32, %c0_i32_0 : i32, i32
  }
  func.func @transform_6(%arg0: i32) -> (i32, i32) {
    %c0_i32 = arith.constant 0 : i32
    %c0_i32_0 = arith.constant 0 : i32
    %c0_i32_1 = arith.constant 0 : i32
    return %c0_i32, %c0_i32_0 : i32, i32
  }
  func.func @transform_7(%arg0: i32) -> (i32, i32) {
    %c0_i32 = arith.constant 0 : i32
    %c0_i32_0 = arith.constant 0 : i32
    %c0_i32_1 = arith.constant 0 : i32
    return %c0_i32, %c0_i32_0 : i32, i32
  }
  func.func @transform_8(%arg0: i32) -> (i32, i32) {
    %c0_i32 = arith.constant 0 : i32
    %c0_i32_0 = arith.constant 0 : i32
    %c0_i32_1 = arith.constant 0 : i32
    return %c0_i32, %c0_i32_0 : i32, i32
  }
  func.func @transform_9(%arg0: i32) -> (i32, i32) {
    %c0_i32 = arith.constant 0 : i32
    %c0_i32_0 = arith.constant 0 : i32
    %c0_i32_1 = arith.constant 0 : i32
    return %c0_i32, %c0_i32_0 : i32, i32
  }
  func.func @transform_10(%arg0: i32) -> (i32, i32) {
    %c0_i32 = arith.constant 0 : i32
    %c0_i32_0 = arith.constant 0 : i32
    %c0_i32_1 = arith.constant 0 : i32
    return %c0_i32, %c0_i32_0 : i32, i32
  }
  func.func @transform_11(%arg0: i32) -> (i32, i32) {
    %c0_i32 = arith.constant 0 : i32
    %c0_i32_0 = arith.constant 0 : i32
    %c0_i32_1 = arith.constant 0 : i32
    return %c0_i32, %c0_i32_0 : i32, i32
  }
  func.func @transform_12(%arg0: i32) -> (i32, i32) {
    %c0_i32 = arith.constant 0 : i32
    %c0_i32_0 = arith.constant 0 : i32
    return %arg0, %c0_i32 : i32, i32
  }
}

</mosaic_0001>

<llo_original>
// kernel: lbs_pbs_forward.1
$region0: #{lbs_pbs_forward.1}
  #allocation0 [shape = 'u32[]', space=smem, size = 0x4, offset = 0x4, fixed_abs, tag = 'smem constant byte address 0x4 - core index']
  #allocation1 [shape = 'u32[144,128]{1,0:T(1,128)}', space=vmem, size = 0x12000, scoped, tag = 'internal scratch']
  %s0 = inlined_call_operand.vmem [shape: bf16[512,11], index: 0, kind: input, shape index: {}]
  %s1 = inlined_call_operand.vmem [shape: bf16[11,64], index: 1, kind: input, shape index: {}]
  %s2 = inlined_call_operand.vmem [shape: bf16[1,64], index: 2, kind: input, shape index: {}]
  %s3 = inlined_call_operand.vmem [shape: bf16[64,64], index: 3, kind: input, shape index: {}]
  %s4 = inlined_call_operand.vmem [shape: bf16[1,64], index: 4, kind: input, shape index: {}]
  %s5 = inlined_call_operand.vmem [shape: bf16[64,64], index: 5, kind: input, shape index: {}]
  %s6 = inlined_call_operand.vmem [shape: bf16[1,64], index: 6, kind: input, shape index: {}]
  %s7 = inlined_call_operand.vmem [shape: bf16[64,64], index: 7, kind: input, shape index: {}]
  %s8 = inlined_call_operand.vmem [shape: bf16[1,64], index: 8, kind: input, shape index: {}]
  %s9 = inlined_call_operand.vmem [shape: bf16[64,96], index: 9, kind: input, shape index: {}]
  %s10 = inlined_call_operand.vmem [shape: f32[1,96], index: 10, kind: input, shape index: {}]
  %s11 = inlined_call_operand.vmem [shape: bf16[48,3], index: 11, kind: input, shape index: {}]
  %s12 = inlined_call_operand.vmem [shape: f32[512,3], index: 12, kind: output, shape index: {}]
  %s13 = sld [smem:[#allocation0]]
  $region58: #{lbs_pbs_forward.1} parent=0
    _
  %s15 = ssub.s32 1, %s13
  %s16 = scalar_select 0, %s15, %s13
  // Predicated region
  $region2: #{lbs_pbs_forward.1} parent=0 // pred_check
    _
  $region3: #{lbs_pbs_forward.1} parent=0 // pred_check_branch
    %18 = sbr.rel (0) target = $region5
  $region4: #{lbs_pbs_forward.1} parent=0 // pred_region
    _
  $region5: #{lbs_pbs_forward.1} parent=0 // pred_fallthru
    _
  // Predicated region
  $region6: #{lbs_pbs_forward.1} parent=0 // pred_check
    _
  $region7: #{lbs_pbs_forward.1} parent=0 // pred_check_branch
    %20 = sbr.rel (0) target = $region9
  $region8: #{lbs_pbs_forward.1} parent=0 // pred_region
    _
  $region9: #{lbs_pbs_forward.1} parent=0 // pred_fallthru
    _
  // Predicated region
  $region10: #{lbs_pbs_forward.1} parent=0 // pred_check
    _
  $region11: #{lbs_pbs_forward.1} parent=0 // pred_check_branch
    %22 = sbr.rel (0) target = $region13
  $region12: #{lbs_pbs_forward.1} parent=0 // pred_region
    _
  $region13: #{lbs_pbs_forward.1} parent=0 // pred_fallthru
    _
  // Predicated region
  $region14: #{lbs_pbs_forward.1} parent=0 // pred_check
    _
  $region15: #{lbs_pbs_forward.1} parent=0 // pred_check_branch
    %24 = sbr.rel (0) target = $region17
  $region16: #{lbs_pbs_forward.1} parent=0 // pred_region
    _
  $region17: #{lbs_pbs_forward.1} parent=0 // pred_fallthru
    _
  // Predicated region
  $region18: #{lbs_pbs_forward.1} parent=0 // pred_check
    _
  $region19: #{lbs_pbs_forward.1} parent=0 // pred_check_branch
    %26 = sbr.rel (0) target = $region21
  $region20: #{lbs_pbs_forward.1} parent=0 // pred_region
    _
  $region21: #{lbs_pbs_forward.1} parent=0 // pred_fallthru
    _
  // Predicated region
  $region22: #{lbs_pbs_forward.1} parent=0 // pred_check
    _
  $region23: #{lbs_pbs_forward.1} parent=0 // pred_check_branch
    %28 = sbr.rel (0) target = $region25
  $region24: #{lbs_pbs_forward.1} parent=0 // pred_region
    _
  $region25: #{lbs_pbs_forward.1} parent=0 // pred_fallthru
    _
  // Predicated region
  $region26: #{lbs_pbs_forward.1} parent=0 // pred_check
    _
  $region27: #{lbs_pbs_forward.1} parent=0 // pred_check_branch
    %30 = sbr.rel (0) target = $region29
  $region28: #{lbs_pbs_forward.1} parent=0 // pred_region
    _
  $region29: #{lbs_pbs_forward.1} parent=0 // pred_fallthru
    _
  // Predicated region
  $region30: #{lbs_pbs_forward.1} parent=0 // pred_check
    _
  $region31: #{lbs_pbs_forward.1} parent=0 // pred_check_branch
    %32 = sbr.rel (0) target = $region33
  $region32: #{lbs_pbs_forward.1} parent=0 // pred_region
    _
  $region33: #{lbs_pbs_forward.1} parent=0 // pred_fallthru
    _
  // Predicated region
  $region34: #{lbs_pbs_forward.1} parent=0 // pred_check
    _
  $region35: #{lbs_pbs_forward.1} parent=0 // pred_check_branch
    %34 = sbr.rel (0) target = $region37
  $region36: #{lbs_pbs_forward.1} parent=0 // pred_region
    _
  $region37: #{lbs_pbs_forward.1} parent=0 // pred_fallthru
    _
  // Predicated region
  $region38: #{lbs_pbs_forward.1} parent=0 // pred_check
    _
  $region39: #{lbs_pbs_forward.1} parent=0 // pred_check_branch
    %36 = sbr.rel (0) target = $region41
  $region40: #{lbs_pbs_forward.1} parent=0 // pred_region
    _
  $region41: #{lbs_pbs_forward.1} parent=0 // pred_fallthru
    _
  // Predicated region
  $region42: #{lbs_pbs_forward.1} parent=0 // pred_check
    _
  $region43: #{lbs_pbs_forward.1} parent=0 // pred_check_branch
    %38 = sbr.rel (0) target = $region45
  $region44: #{lbs_pbs_forward.1} parent=0 // pred_region
    _
  $region45: #{lbs_pbs_forward.1} parent=0 // pred_fallthru
    _
  // Predicated region
  $region46: #{lbs_pbs_forward.1} parent=0 // pred_check
    _
  $region47: #{lbs_pbs_forward.1} parent=0 // pred_check_branch
    %40 = sbr.rel (0) target = $region49
  $region48: #{lbs_pbs_forward.1} parent=0 // pred_region
    _
  $region49: #{lbs_pbs_forward.1} parent=0 // pred_fallthru
    _
  %v43 = vld [vmem:[%s0] sm:$0xf]
  %v44 = vld [vmem:[%s0 + $0x4] sm:$0xf]
  %v45 = vld [vmem:[%s0 + $0x8] sm:$0xf]
  %v46 = vld [vmem:[%s0 + $0xc] sm:$0xf]
  %v47 = vld [vmem:[%s0 + $0x10] sm:$0xf]
  %v48 = vld [vmem:[%s0 + $0x14] sm:$0xf]
  %v49 = vld [vmem:[%s0 + $0x18] sm:$0xf]
  %v50 = vld [vmem:[%s0 + $0x1c] sm:$0xf]
  %v51 = vld [vmem:[%s0 + $0x20] sm:$0xf]
  %v52 = vld [vmem:[%s0 + $0x24] sm:$0xf]
  %v53 = vld [vmem:[%s0 + $0x28] sm:$0xf]
  %v54 = vld [vmem:[%s0 + $0x2c] sm:$0xf]
  %v55 = vld [vmem:[%s0 + $0x30] sm:$0xf]
  %v56 = vld [vmem:[%s0 + $0x34] sm:$0xf]
  %v57 = vld [vmem:[%s0 + $0x38] sm:$0xf]
  %v58 = vld [vmem:[%s0 + $0x3c] sm:$0xf]
  %v59 = vld [vmem:[%s0 + $0x40] sm:$0xf]
  %v60 = vld [vmem:[%s0 + $0x44] sm:$0xf]
  %v61 = vld [vmem:[%s0 + $0x48] sm:$0xf]
  %v62 = vld [vmem:[%s0 + $0x4c] sm:$0xf]
  %v63 = vld [vmem:[%s0 + $0x50] sm:$0xf]
  %v64 = vld [vmem:[%s0 + $0x54] sm:$0xf]
  %v65 = vld [vmem:[%s0 + $0x58] sm:$0xf]
  %v66 = vld [vmem:[%s0 + $0x5c] sm:$0xf]
  %v67 = vld [vmem:[%s0 + $0x60] sm:$0xf]
  %v68 = vld [vmem:[%s0 + $0x64] sm:$0xf]
  %v69 = vld [vmem:[%s0 + $0x68] sm:$0xf]
  %v70 = vld [vmem:[%s0 + $0x6c] sm:$0xf]
  %v71 = vld [vmem:[%s0 + $0x70] sm:$0xf]
  %v72 = vld [vmem:[%s0 + $0x74] sm:$0xf]
  %v73 = vld [vmem:[%s0 + $0x78] sm:$0xf]
  %v74 = vld [vmem:[%s0 + $0x7c] sm:$0xf]
  %v75 = vld [vmem:[%s0 + $0x80] sm:$0xf]
  %v76 = vld [vmem:[%s0 + $0x84] sm:$0xf]
  %v77 = vld [vmem:[%s0 + $0x88] sm:$0xf]
  %v78 = vld [vmem:[%s0 + $0x8c] sm:$0xf]
  %v79 = vld [vmem:[%s0 + $0x90] sm:$0xf]
  %v80 = vld [vmem:[%s0 + $0x94] sm:$0xf]
  %v81 = vld [vmem:[%s0 + $0x98] sm:$0xf]
  %v82 = vld [vmem:[%s0 + $0x9c] sm:$0xf]
  %v83 = vld [vmem:[%s0 + $0xa0] sm:$0xf]
  %v84 = vld [vmem:[%s0 + $0xa4] sm:$0xf]
  %v85 = vld [vmem:[%s0 + $0xa8] sm:$0xf]
  %v86 = vld [vmem:[%s0 + $0xac] sm:$0xf]
  %v87 = vld [vmem:[%s0 + $0xb0] sm:$0xf]
  %v88 = vld [vmem:[%s0 + $0xb4] sm:$0xf]
  %v89 = vld [vmem:[%s0 + $0xb8] sm:$0xf]
  %v90 = vld [vmem:[%s0 + $0xbc] sm:$0xf]
  %v91 = vld [vmem:[%s0 + $0xc0] sm:$0xf]
  %v92 = vld [vmem:[%s0 + $0xc4] sm:$0xf]
  %v93 = vld [vmem:[%s0 + $0xc8] sm:$0xf]
  %v94 = vld [vmem:[%s0 + $0xcc] sm:$0xf]
  %v95 = vld [vmem:[%s0 + $0xd0] sm:$0xf]
  %v96 = vld [vmem:[%s0 + $0xd4] sm:$0xf]
  %v97 = vld [vmem:[%s0 + $0xd8] sm:$0xf]
  %v98 = vld [vmem:[%s0 + $0xdc] sm:$0xf]
  %v99 = vld [vmem:[%s0 + $0xe0] sm:$0xf]
  %v100 = vld [vmem:[%s0 + $0xe4] sm:$0xf]
  %v101 = vld [vmem:[%s0 + $0xe8] sm:$0xf]
  %v102 = vld [vmem:[%s0 + $0xec] sm:$0xf]
  %v103 = vld [vmem:[%s0 + $0xf0] sm:$0xf]
  %v104 = vld [vmem:[%s0 + $0xf4] sm:$0xf]
  %v105 = vld [vmem:[%s0 + $0xf8] sm:$0xf]
  %v106 = vld [vmem:[%s0 + $0xfc] sm:$0xf]
  %v107 = vld [vmem:[%s1] sm:$0xf]
  %v108 = vld [vmem:[%s1 + $0x4] sm:$0x3]
  %v173 = vunpack.c.l.b16 %v43
  %v174 = vunpack.c.l.b16 %v44
  %v175 = vunpack.c.l.b16 %v45
  %v176 = vunpack.c.l.b16 %v46
  %v177 = vunpack.c.l.b16 %v47
  %v178 = vunpack.c.l.b16 %v48
  %v179 = vunpack.c.l.b16 %v49
  %v180 = vunpack.c.l.b16 %v50
  %v181 = vunpack.c.l.b16 %v51
  %v182 = vunpack.c.l.b16 %v52
  %v183 = vunpack.c.l.b16 %v53
  %v184 = vunpack.c.l.b16 %v54
  %v185 = vunpack.c.l.b16 %v55
  %v186 = vunpack.c.l.b16 %v56
  %v187 = vunpack.c.l.b16 %v57
  %v188 = vunpack.c.l.b16 %v58
  %v189 = vunpack.c.l.b16 %v59
  %v190 = vunpack.c.l.b16 %v60
  %v191 = vunpack.c.l.b16 %v61
  %v192 = vunpack.c.l.b16 %v62
  %v193 = vunpack.c.l.b16 %v63
  %v194 = vunpack.c.l.b16 %v64
  %v195 = vunpack.c.l.b16 %v65
  %v196 = vunpack.c.l.b16 %v66
  %v197 = vunpack.c.l.b16 %v67
  %v198 = vunpack.c.l.b16 %v68
  %v199 = vunpack.c.l.b16 %v69
  %v200 = vunpack.c.l.b16 %v70
  %v201 = vunpack.c.l.b16 %v71
  %v202 = vunpack.c.l.b16 %v72
  %v203 = vunpack.c.l.b16 %v73
  %v204 = vunpack.c.l.b16 %v74
  %v205 = vunpack.c.l.b16 %v75
  %v206 = vunpack.c.l.b16 %v76
  %v207 = vunpack.c.l.b16 %v77
  %v208 = vunpack.c.l.b16 %v78
  %v209 = vunpack.c.l.b16 %v79
  %v210 = vunpack.c.l.b16 %v80
  %v211 = vunpack.c.l.b16 %v81
  %v212 = vunpack.c.l.b16 %v82
  %v213 = vunpack.c.l.b16 %v83
  %v214 = vunpack.c.l.b16 %v84
  %v215 = vunpack.c.l.b16 %v85
  %v216 = vunpack.c.l.b16 %v86
  %v217 = vunpack.c.l.b16 %v87
  %v218 = vunpack.c.l.b16 %v88
  %v219 = vunpack.c.l.b16 %v89
  %v220 = vunpack.c.l.b16 %v90
  %v221 = vunpack.c.l.b16 %v91
  %v222 = vunpack.c.l.b16 %v92
  %v223 = vunpack.c.l.b16 %v93
  %v224 = vunpack.c.l.b16 %v94
  %v225 = vunpack.c.l.b16 %v95
  %v226 = vunpack.c.l.b16 %v96
  %v227 = vunpack.c.l.b16 %v97
  %v228 = vunpack.c.l.b16 %v98
  %v229 = vunpack.c.l.b16 %v99
  %v230 = vunpack.c.l.b16 %v100
  %v231 = vunpack.c.l.b16 %v101
  %v232 = vunpack.c.l.b16 %v102
  %v233 = vunpack.c.l.b16 %v103
  %v234 = vunpack.c.l.b16 %v104
  %v235 = vunpack.c.l.b16 %v105
  %v236 = vunpack.c.l.b16 %v106
  %v237 = vpack.c.b16 %v174, %v173
  %v238 = vpack.c.b16 %v176, %v175
  %v239 = vpack.c.b16 %v178, %v177
  %v240 = vpack.c.b16 %v180, %v179
  %v241 = vpack.c.b16 %v182, %v181
  %v242 = vpack.c.b16 %v184, %v183
  %v243 = vpack.c.b16 %v186, %v185
  %v244 = vpack.c.b16 %v188, %v187
  %v245 = vpack.c.b16 %v190, %v189
  %v246 = vpack.c.b16 %v192, %v191
  %v247 = vpack.c.b16 %v194, %v193
  %v248 = vpack.c.b16 %v196, %v195
  %v249 = vpack.c.b16 %v198, %v197
  %v250 = vpack.c.b16 %v200, %v199
  %v251 = vpack.c.b16 %v202, %v201
  %v252 = vpack.c.b16 %v204, %v203
  %v253 = vpack.c.b16 %v206, %v205
  %v254 = vpack.c.b16 %v208, %v207
  %v255 = vpack.c.b16 %v210, %v209
  %v256 = vpack.c.b16 %v212, %v211
  %v257 = vpack.c.b16 %v214, %v213
  %v258 = vpack.c.b16 %v216, %v215
  %v259 = vpack.c.b16 %v218, %v217
  %v260 = vpack.c.b16 %v220, %v219
  %v261 = vpack.c.b16 %v222, %v221
  %v262 = vpack.c.b16 %v224, %v223
  %v263 = vpack.c.b16 %v226, %v225
  %v264 = vpack.c.b16 %v228, %v227
  %v265 = vpack.c.b16 %v230, %v229
  %v266 = vpack.c.b16 %v232, %v231
  %v267 = vpack.c.b16 %v234, %v233
  %v268 = vpack.c.b16 %v236, %v235
  %v271 = vunpack.c.l.b16 %v107
  %v272 = vunpack.c.l.b16 %v108
  %v273 = vpack.c.b16 %v272, %v271
  %vm274 = vcmask 89088
  %v276 = vsel %vm274, %v237, 0
  %v279 = vsel %vm274, %v238, 0
  %v282 = vsel %vm274, %v239, 0
  %v285 = vsel %vm274, %v240, 0
  %v288 = vsel %vm274, %v241, 0
  %v291 = vsel %vm274, %v242, 0
  %v294 = vsel %vm274, %v243, 0
  %v297 = vsel %vm274, %v244, 0
  %v300 = vsel %vm274, %v245, 0
  %v303 = vsel %vm274, %v246, 0
  %v306 = vsel %vm274, %v247, 0
  %v309 = vsel %vm274, %v248, 0
  %v312 = vsel %vm274, %v249, 0
  %v315 = vsel %vm274, %v250, 0
  %v318 = vsel %vm274, %v251, 0
  %v321 = vsel %vm274, %v252, 0
  %v324 = vsel %vm274, %v253, 0
  %v327 = vsel %vm274, %v254, 0
  %v330 = vsel %vm274, %v255, 0
  %v333 = vsel %vm274, %v256, 0
  %v336 = vsel %vm274, %v257, 0
  %v339 = vsel %vm274, %v258, 0
  %v342 = vsel %vm274, %v259, 0
  %v345 = vsel %vm274, %v260, 0
  %v348 = vsel %vm274, %v261, 0
  %v351 = vsel %vm274, %v262, 0
  %v354 = vsel %vm274, %v263, 0
  %v357 = vsel %vm274, %v264, 0
  %v360 = vsel %vm274, %v265, 0
  %v363 = vsel %vm274, %v266, 0
  %v366 = vsel %vm274, %v267, 0
  %v369 = vsel %vm274, %v268, 0
  %vm371 = vcmask 1044480
  %vm372 = vcmask 1045504
  %v373 = vsel %vm371, 4294967295, 65535
  %v374 = vsel %vm372, %v373, 0
  %v376 = vand.u32 %v273, %v374
  %378 = vmatprep.subr.bf16.mxu0 0
  %379 = vmatpush1.bf16.msra.mxu0 0
  %380 = vmatprep.subr.bf16.mxu0 0
  %381 = vmatpush1.bf16.msra.mxu0 0
  %382 = vmatprep.subr.bf16.mxu0 0
  %383 = vmatpush1.bf16.msra.mxu0 0
  %384 = vmatprep.subr.bf16.mxu0 0
  %385 = vmatpush1.bf16.msra.mxu0 0
  %386 = vmatprep.subr.bf16.mxu0 0
  %387 = vmatpush1.bf16.msra.mxu0 0
  %388 = vmatprep.subr.bf16.mxu0 0
  %389 = vmatpush1.bf16.msra.mxu0 0
  %390 = vmatprep.subr.bf16.mxu0 0
  %391 = vmatpush1.bf16.msra.mxu0 0
  %392 = vmatprep.subr.bf16.mxu0 0
  %393 = vmatpush1.bf16.msra.mxu0 %v376
  %394 = vmatprep.subr.bf16.mxu0 0
  %395 = vmatpush2.bf16.msra.mxu0 0
  %396 = vmatprep.subr.bf16.mxu0 0
  %397 = vmatpush2.bf16.msra.mxu0 0
  %398 = vmatprep.subr.bf16.mxu0 0
  %399 = vmatpush2.bf16.msra.mxu0 0
  %400 = vmatprep.subr.bf16.mxu0 0
  %401 = vmatpush2.bf16.msra.mxu0 0
  %402 = vmatprep.subr.bf16.mxu0 0
  %403 = vmatpush2.bf16.msra.mxu0 0
  %404 = vmatprep.subr.bf16.mxu0 0
  %405 = vmatpush2.bf16.msra.mxu0 0
  %406 = vmatprep.subr.bf16.mxu0 0
  %407 = vmatpush2.bf16.msra.mxu0 0
  %408 = vmatprep.subr.bf16.mxu0 0
  %409 = vmatpush2.bf16.msra.mxu0 0
  %410 = vmatprep.mubr.bf16.mxu0 0
  %411 = vmatmul.mubr.bf16.gmra.mxu0 %v276
  %v412 = vpop.f32.mrf.mxu0
  %v413 = vadd.f32 0.0, %v412
  %v414 = vpop.f32.mrf.mxu0
  %v415 = vpop.f32.mrf.mxu0
  %v416 = vadd.f32 0.0, %v415
  %v417 = vpop.f32.mrf.mxu0
  %418 = vmatprep.mubr.bf16.mxu0 0
  %419 = vmatmul.mubr.bf16.gmra.mxu0 %v279
  %v420 = vpop.f32.mrf.mxu0
  %v421 = vadd.f32 0.0, %v420
  %v422 = vpop.f32.mrf.mxu0
  %v423 = vpop.f32.mrf.mxu0
  %v424 = vadd.f32 0.0, %v423
  %v425 = vpop.f32.mrf.mxu0
  %426 = vmatprep.mubr.bf16.mxu0 0
  %427 = vmatmul.mubr.bf16.gmra.mxu0 %v282
  %v428 = vpop.f32.mrf.mxu0
  %v429 = vadd.f32 0.0, %v428
  %v430 = vpop.f32.mrf.mxu0
  %v431 = vpop.f32.mrf.mxu0
  %v432 = vadd.f32 0.0, %v431
  %v433 = vpop.f32.mrf.mxu0
  %434 = vmatprep.mubr.bf16.mxu0 0
  %435 = vmatmul.mubr.bf16.gmra.mxu0 %v285
  %v436 = vpop.f32.mrf.mxu0
  %v437 = vadd.f32 0.0, %v436
  %v438 = vpop.f32.mrf.mxu0
  %v439 = vpop.f32.mrf.mxu0
  %v440 = vadd.f32 0.0, %v439
  %v441 = vpop.f32.mrf.mxu0
  %442 = vmatprep.mubr.bf16.mxu0 0
  %443 = vmatmul.mubr.bf16.gmra.mxu0 %v288
  %v444 = vpop.f32.mrf.mxu0
  %v445 = vadd.f32 0.0, %v444
  %v446 = vpop.f32.mrf.mxu0
  %v447 = vpop.f32.mrf.mxu0
  %v448 = vadd.f32 0.0, %v447
  %v449 = vpop.f32.mrf.mxu0
  %450 = vmatprep.mubr.bf16.mxu0 0
  %451 = vmatmul.mubr.bf16.gmra.mxu0 %v291
  %v452 = vpop.f32.mrf.mxu0
  %v453 = vadd.f32 0.0, %v452
  %v454 = vpop.f32.mrf.mxu0
  %v455 = vpop.f32.mrf.mxu0
  %v456 = vadd.f32 0.0, %v455
  %v457 = vpop.f32.mrf.mxu0
  %458 = vmatprep.mubr.bf16.mxu0 0
  %459 = vmatmul.mubr.bf16.gmra.mxu0 %v294
  %v460 = vpop.f32.mrf.mxu0
  %v461 = vadd.f32 0.0, %v460
  %v462 = vpop.f32.mrf.mxu0
  %v463 = vpop.f32.mrf.mxu0
  %v464 = vadd.f32 0.0, %v463
  %v465 = vpop.f32.mrf.mxu0
  %466 = vmatprep.mubr.bf16.mxu0 0
  %467 = vmatmul.mubr.bf16.gmra.mxu0 %v297
  %v468 = vpop.f32.mrf.mxu0
  %v469 = vadd.f32 0.0, %v468
  %v470 = vpop.f32.mrf.mxu0
  %v471 = vpop.f32.mrf.mxu0
  %v472 = vadd.f32 0.0, %v471
  %v473 = vpop.f32.mrf.mxu0
  %474 = vmatprep.mubr.bf16.mxu0 0
  %475 = vmatmul.mubr.bf16.gmra.mxu0 %v300
  %v476 = vpop.f32.mrf.mxu0
  %v477 = vadd.f32 0.0, %v476
  %v478 = vpop.f32.mrf.mxu0
  %v479 = vpop.f32.mrf.mxu0
  %v480 = vadd.f32 0.0, %v479
  %v481 = vpop.f32.mrf.mxu0
  %482 = vmatprep.mubr.bf16.mxu0 0
  %483 = vmatmul.mubr.bf16.gmra.mxu0 %v303
  %v484 = vpop.f32.mrf.mxu0
  %v485 = vadd.f32 0.0, %v484
  %v486 = vpop.f32.mrf.mxu0
  %v487 = vpop.f32.mrf.mxu0
  %v488 = vadd.f32 0.0, %v487
  %v489 = vpop.f32.mrf.mxu0
  %490 = vmatprep.mubr.bf16.mxu0 0
  %491 = vmatmul.mubr.bf16.gmra.mxu0 %v306
  %v492 = vpop.f32.mrf.mxu0
  %v493 = vadd.f32 0.0, %v492
  %v494 = vpop.f32.mrf.mxu0
  %v495 = vpop.f32.mrf.mxu0
  %v496 = vadd.f32 0.0, %v495
  %v497 = vpop.f32.mrf.mxu0
  %498 = vmatprep.mubr.bf16.mxu0 0
  %499 = vmatmul.mubr.bf16.gmra.mxu0 %v309
  %v500 = vpop.f32.mrf.mxu0
  %v501 = vadd.f32 0.0, %v500
  %v502 = vpop.f32.mrf.mxu0
  %v503 = vpop.f32.mrf.mxu0
  %v504 = vadd.f32 0.0, %v503
  %v505 = vpop.f32.mrf.mxu0
  %506 = vmatprep.mubr.bf16.mxu0 0
  %507 = vmatmul.mubr.bf16.gmra.mxu0 %v312
  %v508 = vpop.f32.mrf.mxu0
  %v509 = vadd.f32 0.0, %v508
  %v510 = vpop.f32.mrf.mxu0
  %v511 = vpop.f32.mrf.mxu0
  %v512 = vadd.f32 0.0, %v511
  %v513 = vpop.f32.mrf.mxu0
  %514 = vmatprep.mubr.bf16.mxu0 0
  %515 = vmatmul.mubr.bf16.gmra.mxu0 %v315
  %v516 = vpop.f32.mrf.mxu0
  %v517 = vadd.f32 0.0, %v516
  %v518 = vpop.f32.mrf.mxu0
  %v519 = vpop.f32.mrf.mxu0
  %v520 = vadd.f32 0.0, %v519
  %v521 = vpop.f32.mrf.mxu0
  %522 = vmatprep.mubr.bf16.mxu0 0
  %523 = vmatmul.mubr.bf16.gmra.mxu0 %v318
  %v524 = vpop.f32.mrf.mxu0
  %v525 = vadd.f32 0.0, %v524
  %v526 = vpop.f32.mrf.mxu0
  %v527 = vpop.f32.mrf.mxu0
  %v528 = vadd.f32 0.0, %v527
  %v529 = vpop.f32.mrf.mxu0
  %530 = vmatprep.mubr.bf16.mxu0 0
  %531 = vmatmul.mubr.bf16.gmra.mxu0 %v321
  %v532 = vpop.f32.mrf.mxu0
  %v533 = vadd.f32 0.0, %v532
  %v534 = vpop.f32.mrf.mxu0
  %v535 = vpop.f32.mrf.mxu0
  %v536 = vadd.f32 0.0, %v535
  %v537 = vpop.f32.mrf.mxu0
  %538 = vmatprep.mubr.bf16.mxu0 0
  %539 = vmatmul.mubr.bf16.gmra.mxu0 %v324
  %v540 = vpop.f32.mrf.mxu0
  %v541 = vadd.f32 0.0, %v540
  %v542 = vpop.f32.mrf.mxu0
  %v543 = vpop.f32.mrf.mxu0
  %v544 = vadd.f32 0.0, %v543
  %v545 = vpop.f32.mrf.mxu0
  %546 = vmatprep.mubr.bf16.mxu0 0
  %547 = vmatmul.mubr.bf16.gmra.mxu0 %v327
  %v548 = vpop.f32.mrf.mxu0
  %v549 = vadd.f32 0.0, %v548
  %v550 = vpop.f32.mrf.mxu0
  %v551 = vpop.f32.mrf.mxu0
  %v552 = vadd.f32 0.0, %v551
  %v553 = vpop.f32.mrf.mxu0
  %554 = vmatprep.mubr.bf16.mxu0 0
  %555 = vmatmul.mubr.bf16.gmra.mxu0 %v330
  %v556 = vpop.f32.mrf.mxu0
  %v557 = vadd.f32 0.0, %v556
  %v558 = vpop.f32.mrf.mxu0
  %v559 = vpop.f32.mrf.mxu0
  %v560 = vadd.f32 0.0, %v559
  %v561 = vpop.f32.mrf.mxu0
  %562 = vmatprep.mubr.bf16.mxu0 0
  %563 = vmatmul.mubr.bf16.gmra.mxu0 %v333
  %v564 = vpop.f32.mrf.mxu0
  %v565 = vadd.f32 0.0, %v564
  %v566 = vpop.f32.mrf.mxu0
  %v567 = vpop.f32.mrf.mxu0
  %v568 = vadd.f32 0.0, %v567
  %v569 = vpop.f32.mrf.mxu0
  %570 = vmatprep.mubr.bf16.mxu0 0
  %571 = vmatmul.mubr.bf16.gmra.mxu0 %v336
  %v572 = vpop.f32.mrf.mxu0
  %v573 = vadd.f32 0.0, %v572
  %v574 = vpop.f32.mrf.mxu0
  %v575 = vpop.f32.mrf.mxu0
  %v576 = vadd.f32 0.0, %v575
  %v577 = vpop.f32.mrf.mxu0
  %578 = vmatprep.mubr.bf16.mxu0 0
  %579 = vmatmul.mubr.bf16.gmra.mxu0 %v339
  %v580 = vpop.f32.mrf.mxu0
  %v581 = vadd.f32 0.0, %v580
  %v582 = vpop.f32.mrf.mxu0
  %v583 = vpop.f32.mrf.mxu0
  %v584 = vadd.f32 0.0, %v583
  %v585 = vpop.f32.mrf.mxu0
  %586 = vmatprep.mubr.bf16.mxu0 0
  %587 = vmatmul.mubr.bf16.gmra.mxu0 %v342
  %v588 = vpop.f32.mrf.mxu0
  %v589 = vadd.f32 0.0, %v588
  %v590 = vpop.f32.mrf.mxu0
  %v591 = vpop.f32.mrf.mxu0
  %v592 = vadd.f32 0.0, %v591
  %v593 = vpop.f32.mrf.mxu0
  %594 = vmatprep.mubr.bf16.mxu0 0
  %595 = vmatmul.mubr.bf16.gmra.mxu0 %v345
  %v596 = vpop.f32.mrf.mxu0
  %v597 = vadd.f32 0.0, %v596
  %v598 = vpop.f32.mrf.mxu0
  %v599 = vpop.f32.mrf.mxu0
  %v600 = vadd.f32 0.0, %v599
  %v601 = vpop.f32.mrf.mxu0
  %602 = vmatprep.mubr.bf16.mxu0 0
  %603 = vmatmul.mubr.bf16.gmra.mxu0 %v348
  %v604 = vpop.f32.mrf.mxu0
  %v605 = vadd.f32 0.0, %v604
  %v606 = vpop.f32.mrf.mxu0
  %v607 = vpop.f32.mrf.mxu0
  %v608 = vadd.f32 0.0, %v607
  %v609 = vpop.f32.mrf.mxu0
  %610 = vmatprep.mubr.bf16.mxu0 0
  %611 = vmatmul.mubr.bf16.gmra.mxu0 %v351
  %v612 = vpop.f32.mrf.mxu0
  %v613 = vadd.f32 0.0, %v612
  %v614 = vpop.f32.mrf.mxu0
  %v615 = vpop.f32.mrf.mxu0
  %v616 = vadd.f32 0.0, %v615
  %v617 = vpop.f32.mrf.mxu0
  %618 = vmatprep.mubr.bf16.mxu0 0
  %619 = vmatmul.mubr.bf16.gmra.mxu0 %v354
  %v620 = vpop.f32.mrf.mxu0
  %v621 = vadd.f32 0.0, %v620
  %v622 = vpop.f32.mrf.mxu0
  %v623 = vpop.f32.mrf.mxu0
  %v624 = vadd.f32 0.0, %v623
  %v625 = vpop.f32.mrf.mxu0
  %626 = vmatprep.mubr.bf16.mxu0 0
  %627 = vmatmul.mubr.bf16.gmra.mxu0 %v357
  %v628 = vpop.f32.mrf.mxu0
  %v629 = vadd.f32 0.0, %v628
  %v630 = vpop.f32.mrf.mxu0
  %v631 = vpop.f32.mrf.mxu0
  %v632 = vadd.f32 0.0, %v631
  %v633 = vpop.f32.mrf.mxu0
  %634 = vmatprep.mubr.bf16.mxu0 0
  %635 = vmatmul.mubr.bf16.gmra.mxu0 %v360
  %v636 = vpop.f32.mrf.mxu0
  %v637 = vadd.f32 0.0, %v636
  %v638 = vpop.f32.mrf.mxu0
  %v639 = vpop.f32.mrf.mxu0
  %v640 = vadd.f32 0.0, %v639
  %v641 = vpop.f32.mrf.mxu0
  %642 = vmatprep.mubr.bf16.mxu0 0
  %643 = vmatmul.mubr.bf16.gmra.mxu0 %v363
  %v644 = vpop.f32.mrf.mxu0
  %v645 = vadd.f32 0.0, %v644
  %v646 = vpop.f32.mrf.mxu0
  %v647 = vpop.f32.mrf.mxu0
  %v648 = vadd.f32 0.0, %v647
  %v649 = vpop.f32.mrf.mxu0
  %650 = vmatprep.mubr.bf16.mxu0 0
  %651 = vmatmul.mubr.bf16.gmra.mxu0 %v366
  %v652 = vpop.f32.mrf.mxu0
  %v653 = vadd.f32 0.0, %v652
  %v654 = vpop.f32.mrf.mxu0
  %v655 = vpop.f32.mrf.mxu0
  %v656 = vadd.f32 0.0, %v655
  %v657 = vpop.f32.mrf.mxu0
  %658 = vmatprep.mubr.bf16.mxu0 0
  %659 = vmatmul.mubr.bf16.gmra.mxu0 %v369
  %v660 = vpop.f32.mrf.mxu0
  %v661 = vadd.f32 0.0, %v660
  %v662 = vpop.f32.mrf.mxu0
  %v663 = vpop.f32.mrf.mxu0
  %v664 = vadd.f32 0.0, %v663
  %v665 = vpop.f32.mrf.mxu0
  %666 = vdwg.mxu0
  %v667 = vpack.c.bf16 %v416, %v413
  %v668 = vpack.c.bf16 %v424, %v421
  %v669 = vpack.c.bf16 %v432, %v429
  %v670 = vpack.c.bf16 %v440, %v437
  %v671 = vpack.c.bf16 %v448, %v445
  %v672 = vpack.c.bf16 %v456, %v453
  %v673 = vpack.c.bf16 %v464, %v461
  %v674 = vpack.c.bf16 %v472, %v469
  %v675 = vpack.c.bf16 %v480, %v477
  %v676 = vpack.c.bf16 %v488, %v485
  %v677 = vpack.c.bf16 %v496, %v493
  %v678 = vpack.c.bf16 %v504, %v501
  %v679 = vpack.c.bf16 %v512, %v509
  %v680 = vpack.c.bf16 %v520, %v517
  %v681 = vpack.c.bf16 %v528, %v525
  %v682 = vpack.c.bf16 %v536, %v533
  %v683 = vpack.c.bf16 %v544, %v541
  %v684 = vpack.c.bf16 %v552, %v549
  %v685 = vpack.c.bf16 %v560, %v557
  %v686 = vpack.c.bf16 %v568, %v565
  %v687 = vpack.c.bf16 %v576, %v573
  %v688 = vpack.c.bf16 %v584, %v581
  %v689 = vpack.c.bf16 %v592, %v589
  %v690 = vpack.c.bf16 %v600, %v597
  %v691 = vpack.c.bf16 %v608, %v605
  %v692 = vpack.c.bf16 %v616, %v613
  %v693 = vpack.c.bf16 %v624, %v621
  %v694 = vpack.c.bf16 %v632, %v629
  %v695 = vpack.c.bf16 %v640, %v637
  %v696 = vpack.c.bf16 %v648, %v645
  %v697 = vpack.c.bf16 %v656, %v653
  %v698 = vpack.c.bf16 %v664, %v661
  %v699 = vld [vmem:[%s2] sm:$0x1]
  %v701 = vpack.i.b16 %v699, %v699
  %v703 = vlaneseq
  %v704 = vshrl.u32 %v703, 7
  %v705 = vsub.s32 0, %v704
  %v706 = vrot.slane %v701, %v705
  %v707 = vadd.bf16 %v667, %v706
  %v708 = vadd.bf16 %v668, %v706
  %v709 = vadd.bf16 %v669, %v706
  %v710 = vadd.bf16 %v670, %v706
  %v711 = vadd.bf16 %v671, %v706
  %v712 = vadd.bf16 %v672, %v706
  %v713 = vadd.bf16 %v673, %v706
  %v714 = vadd.bf16 %v674, %v706
  %v715 = vadd.bf16 %v675, %v706
  %v716 = vadd.bf16 %v676, %v706
  %v717 = vadd.bf16 %v677, %v706
  %v718 = vadd.bf16 %v678, %v706
  %v719 = vadd.bf16 %v679, %v706
  %v720 = vadd.bf16 %v680, %v706
  %v721 = vadd.bf16 %v681, %v706
  %v722 = vadd.bf16 %v682, %v706
  %v723 = vadd.bf16 %v683, %v706
  %v724 = vadd.bf16 %v684, %v706
  %v725 = vadd.bf16 %v685, %v706
  %v726 = vadd.bf16 %v686, %v706
  %v727 = vadd.bf16 %v687, %v706
  %v728 = vadd.bf16 %v688, %v706
  %v729 = vadd.bf16 %v689, %v706
  %v730 = vadd.bf16 %v690, %v706
  %v731 = vadd.bf16 %v691, %v706
  %v732 = vadd.bf16 %v692, %v706
  %v733 = vadd.bf16 %v693, %v706
  %v734 = vadd.bf16 %v694, %v706
  %v735 = vadd.bf16 %v695, %v706
  %v736 = vadd.bf16 %v696, %v706
  %v737 = vadd.bf16 %v697, %v706
  %v738 = vadd.bf16 %v698, %v706
  %v739 = vmul.bf16 %v707, 1009007652
  %v740 = vmul.bf16 %v708, 1009007652
  %v741 = vmul.bf16 %v709, 1009007652
  %v742 = vmul.bf16 %v710, 1009007652
  %v743 = vmul.bf16 %v711, 1009007652
  %v744 = vmul.bf16 %v712, 1009007652
  %v745 = vmul.bf16 %v713, 1009007652
  %v746 = vmul.bf16 %v714, 1009007652
  %v747 = vmul.bf16 %v715, 1009007652
  %v748 = vmul.bf16 %v716, 1009007652
  %v749 = vmul.bf16 %v717, 1009007652
  %v750 = vmul.bf16 %v718, 1009007652
  %v751 = vmul.bf16 %v719, 1009007652
  %v752 = vmul.bf16 %v720, 1009007652
  %v753 = vmul.bf16 %v721, 1009007652
  %v754 = vmul.bf16 %v722, 1009007652
  %v755 = vmul.bf16 %v723, 1009007652
  %v756 = vmul.bf16 %v724, 1009007652
  %v757 = vmul.bf16 %v725, 1009007652
  %v758 = vmul.bf16 %v726, 1009007652
  %v759 = vmul.bf16 %v727, 1009007652
  %v760 = vmul.bf16 %v728, 1009007652
  %v761 = vmul.bf16 %v729, 1009007652
  %v762 = vmul.bf16 %v730, 1009007652
  %v763 = vmul.bf16 %v731, 1009007652
  %v764 = vmul.bf16 %v732, 1009007652
  %v765 = vmul.bf16 %v733, 1009007652
  %v766 = vmul.bf16 %v734, 1009007652
  %v767 = vmul.bf16 %v735, 1009007652
  %v768 = vmul.bf16 %v736, 1009007652
  %v769 = vmul.bf16 %v737, 1009007652
  %v770 = vmul.bf16 %v738, 1009007652
  %v771 = vmax.bf16 %v707, %v739
  %v772 = vmax.bf16 %v708, %v740
  %v773 = vmax.bf16 %v709, %v741
  %v774 = vmax.bf16 %v710, %v742
  %v775 = vmax.bf16 %v711, %v743
  %v776 = vmax.bf16 %v712, %v744
  %v777 = vmax.bf16 %v713, %v745
  %v778 = vmax.bf16 %v714, %v746
  %v779 = vmax.bf16 %v715, %v747
  %v780 = vmax.bf16 %v716, %v748
  %v781 = vmax.bf16 %v717, %v749
  %v782 = vmax.bf16 %v718, %v750
  %v783 = vmax.bf16 %v719, %v751
  %v784 = vmax.bf16 %v720, %v752
  %v785 = vmax.bf16 %v721, %v753
  %v786 = vmax.bf16 %v722, %v754
  %v787 = vmax.bf16 %v723, %v755
  %v788 = vmax.bf16 %v724, %v756
  %v789 = vmax.bf16 %v725, %v757
  %v790 = vmax.bf16 %v726, %v758
  %v791 = vmax.bf16 %v727, %v759
  %v792 = vmax.bf16 %v728, %v760
  %v793 = vmax.bf16 %v729, %v761
  %v794 = vmax.bf16 %v730, %v762
  %v795 = vmax.bf16 %v731, %v763
  %v796 = vmax.bf16 %v732, %v764
  %v797 = vmax.bf16 %v733, %v765
  %v798 = vmax.bf16 %v734, %v766
  %v799 = vmax.bf16 %v735, %v767
  %v800 = vmax.bf16 %v736, %v768
  %v801 = vmax.bf16 %v737, %v769
  %v802 = vmax.bf16 %v738, %v770
  %v803 = vld [vmem:[%s3] sm:$0xf]
  %v804 = vld [vmem:[%s3 + $0x4] sm:$0xf]
  %v805 = vld [vmem:[%s3 + $0x8] sm:$0xf]
  %v806 = vld [vmem:[%s3 + $0xc] sm:$0xf]
  %v807 = vld [vmem:[%s3 + $0x10] sm:$0xf]
  %v808 = vld [vmem:[%s3 + $0x14] sm:$0xf]
  %v809 = vld [vmem:[%s3 + $0x18] sm:$0xf]
  %v810 = vld [vmem:[%s3 + $0x1c] sm:$0xf]
  %v819 = vunpack.c.l.b16 %v803
  %v820 = vunpack.c.l.b16 %v804
  %v821 = vunpack.c.l.b16 %v805
  %v822 = vunpack.c.l.b16 %v806
  %v823 = vunpack.c.l.b16 %v807
  %v824 = vunpack.c.l.b16 %v808
  %v825 = vunpack.c.l.b16 %v809
  %v826 = vunpack.c.l.b16 %v810
  %v827 = vpack.c.b16 %v820, %v819
  %v828 = vpack.c.b16 %v822, %v821
  %v829 = vpack.c.b16 %v824, %v823
  %v830 = vpack.c.b16 %v826, %v825
  %vm835 = vcmask 523264
  %v837 = vsel %vm835, %v771, 0
  %v840 = vsel %vm835, %v772, 0
  %v843 = vsel %vm835, %v773, 0
  %v846 = vsel %vm835, %v774, 0
  %v849 = vsel %vm835, %v775, 0
  %v852 = vsel %vm835, %v776, 0
  %v855 = vsel %vm835, %v777, 0
  %v858 = vsel %vm835, %v778, 0
  %v861 = vsel %vm835, %v779, 0
  %v864 = vsel %vm835, %v780, 0
  %v867 = vsel %vm835, %v781, 0
  %v870 = vsel %vm835, %v782, 0
  %v873 = vsel %vm835, %v783, 0
  %v876 = vsel %vm835, %v784, 0
  %v879 = vsel %vm835, %v785, 0
  %v882 = vsel %vm835, %v786, 0
  %v885 = vsel %vm835, %v787, 0
  %v888 = vsel %vm835, %v788, 0
  %v891 = vsel %vm835, %v789, 0
  %v894 = vsel %vm835, %v790, 0
  %v897 = vsel %vm835, %v791, 0
  %v900 = vsel %vm835, %v792, 0
  %v903 = vsel %vm835, %v793, 0
  %v906 = vsel %vm835, %v794, 0
  %v909 = vsel %vm835, %v795, 0
  %v912 = vsel %vm835, %v796, 0
  %v915 = vsel %vm835, %v797, 0
  %v918 = vsel %vm835, %v798, 0
  %v921 = vsel %vm835, %v799, 0
  %v924 = vsel %vm835, %v800, 0
  %v927 = vsel %vm835, %v801, 0
  %v930 = vsel %vm835, %v802, 0
  %932 = vmatprep.subr.bf16.mxu0 0
  %933 = vmatpush1.bf16.msra.mxu0 0
  %934 = vmatprep.subr.bf16.mxu0 0
  %935 = vmatpush1.bf16.msra.mxu0 0
  %936 = vmatprep.subr.bf16.mxu0 0
  %937 = vmatpush1.bf16.msra.mxu0 0
  %938 = vmatprep.subr.bf16.mxu0 0
  %939 = vmatpush1.bf16.msra.mxu0 0
  %940 = vmatprep.subr.bf16.mxu0 0
  %941 = vmatpush1.bf16.msra.mxu0 %v830
  %942 = vmatprep.subr.bf16.mxu0 0
  %943 = vmatpush1.bf16.msra.mxu0 %v829
  %944 = vmatprep.subr.bf16.mxu0 0
  %945 = vmatpush1.bf16.msra.mxu0 %v828
  %946 = vmatprep.subr.bf16.mxu0 0
  %947 = vmatpush1.bf16.msra.mxu0 %v827
  %948 = vmatprep.subr.bf16.mxu0 0
  %949 = vmatpush2.bf16.msra.mxu0 0
  %950 = vmatprep.subr.bf16.mxu0 0
  %951 = vmatpush2.bf16.msra.mxu0 0
  %952 = vmatprep.subr.bf16.mxu0 0
  %953 = vmatpush2.bf16.msra.mxu0 0
  %954 = vmatprep.subr.bf16.mxu0 0
  %955 = vmatpush2.bf16.msra.mxu0 0
  %956 = vmatprep.subr.bf16.mxu0 0
  %957 = vmatpush2.bf16.msra.mxu0 0
  %958 = vmatprep.subr.bf16.mxu0 0
  %959 = vmatpush2.bf16.msra.mxu0 0
  %960 = vmatprep.subr.bf16.mxu0 0
  %961 = vmatpush2.bf16.msra.mxu0 0
  %962 = vmatprep.subr.bf16.mxu0 0
  %963 = vmatpush2.bf16.msra.mxu0 0
  %964 = vmatprep.mubr.bf16.mxu0 0
  %965 = vmatmul.mubr.bf16.gmra.mxu0 %v837
  %v966 = vpop.f32.mrf.mxu0
  %v967 = vadd.f32 0.0, %v966
  %v968 = vpop.f32.mrf.mxu0
  %v969 = vpop.f32.mrf.mxu0
  %v970 = vadd.f32 0.0, %v969
  %v971 = vpop.f32.mrf.mxu0
  %972 = vmatprep.mubr.bf16.mxu0 0
  %973 = vmatmul.mubr.bf16.gmra.mxu0 %v840
  %v974 = vpop.f32.mrf.mxu0
  %v975 = vadd.f32 0.0, %v974
  %v976 = vpop.f32.mrf.mxu0
  %v977 = vpop.f32.mrf.mxu0
  %v978 = vadd.f32 0.0, %v977
  %v979 = vpop.f32.mrf.mxu0
  %980 = vmatprep.mubr.bf16.mxu0 0
  %981 = vmatmul.mubr.bf16.gmra.mxu0 %v843
  %v982 = vpop.f32.mrf.mxu0
  %v983 = vadd.f32 0.0, %v982
  %v984 = vpop.f32.mrf.mxu0
  %v985 = vpop.f32.mrf.mxu0
  %v986 = vadd.f32 0.0, %v985
  %v987 = vpop.f32.mrf.mxu0
  %988 = vmatprep.mubr.bf16.mxu0 0
  %989 = vmatmul.mubr.bf16.gmra.mxu0 %v846
  %v990 = vpop.f32.mrf.mxu0
  %v991 = vadd.f32 0.0, %v990
  %v992 = vpop.f32.mrf.mxu0
  %v993 = vpop.f32.mrf.mxu0
  %v994 = vadd.f32 0.0, %v993
  %v995 = vpop.f32.mrf.mxu0
  %996 = vmatprep.mubr.bf16.mxu0 0
  %997 = vmatmul.mubr.bf16.gmra.mxu0 %v849
  %v998 = vpop.f32.mrf.mxu0
  %v999 = vadd.f32 0.0, %v998
  %v1000 = vpop.f32.mrf.mxu0
  %v1001 = vpop.f32.mrf.mxu0
  %v1002 = vadd.f32 0.0, %v1001
  %v1003 = vpop.f32.mrf.mxu0
  %1004 = vmatprep.mubr.bf16.mxu0 0
  %1005 = vmatmul.mubr.bf16.gmra.mxu0 %v852
  %v1006 = vpop.f32.mrf.mxu0
  %v1007 = vadd.f32 0.0, %v1006
  %v1008 = vpop.f32.mrf.mxu0
  %v1009 = vpop.f32.mrf.mxu0
  %v1010 = vadd.f32 0.0, %v1009
  %v1011 = vpop.f32.mrf.mxu0
  %1012 = vmatprep.mubr.bf16.mxu0 0
  %1013 = vmatmul.mubr.bf16.gmra.mxu0 %v855
  %v1014 = vpop.f32.mrf.mxu0
  %v1015 = vadd.f32 0.0, %v1014
  %v1016 = vpop.f32.mrf.mxu0
  %v1017 = vpop.f32.mrf.mxu0
  %v1018 = vadd.f32 0.0, %v1017
  %v1019 = vpop.f32.mrf.mxu0
  %1020 = vmatprep.mubr.bf16.mxu0 0
  %1021 = vmatmul.mubr.bf16.gmra.mxu0 %v858
  %v1022 = vpop.f32.mrf.mxu0
  %v1023 = vadd.f32 0.0, %v1022
  %v1024 = vpop.f32.mrf.mxu0
  %v1025 = vpop.f32.mrf.mxu0
  %v1026 = vadd.f32 0.0, %v1025
  %v1027 = vpop.f32.mrf.mxu0
  %1028 = vmatprep.mubr.bf16.mxu0 0
  %1029 = vmatmul.mubr.bf16.gmra.mxu0 %v861
  %v1030 = vpop.f32.mrf.mxu0
  %v1031 = vadd.f32 0.0, %v1030
  %v1032 = vpop.f32.mrf.mxu0
  %v1033 = vpop.f32.mrf.mxu0
  %v1034 = vadd.f32 0.0, %v1033
  %v1035 = vpop.f32.mrf.mxu0
  %1036 = vmatprep.mubr.bf16.mxu0 0
  %1037 = vmatmul.mubr.bf16.gmra.mxu0 %v864
  %v1038 = vpop.f32.mrf.mxu0
  %v1039 = vadd.f32 0.0, %v1038
  %v1040 = vpop.f32.mrf.mxu0
  %v1041 = vpop.f32.mrf.mxu0
  %v1042 = vadd.f32 0.0, %v1041
  %v1043 = vpop.f32.mrf.mxu0
  %1044 = vmatprep.mubr.bf16.mxu0 0
  %1045 = vmatmul.mubr.bf16.gmra.mxu0 %v867
  %v1046 = vpop.f32.mrf.mxu0
  %v1047 = vadd.f32 0.0, %v1046
  %v1048 = vpop.f32.mrf.mxu0
  %v1049 = vpop.f32.mrf.mxu0
  %v1050 = vadd.f32 0.0, %v1049
  %v1051 = vpop.f32.mrf.mxu0
  %1052 = vmatprep.mubr.bf16.mxu0 0
  %1053 = vmatmul.mubr.bf16.gmra.mxu0 %v870
  %v1054 = vpop.f32.mrf.mxu0
  %v1055 = vadd.f32 0.0, %v1054
  %v1056 = vpop.f32.mrf.mxu0
  %v1057 = vpop.f32.mrf.mxu0
  %v1058 = vadd.f32 0.0, %v1057
  %v1059 = vpop.f32.mrf.mxu0
  %1060 = vmatprep.mubr.bf16.mxu0 0
  %1061 = vmatmul.mubr.bf16.gmra.mxu0 %v873
  %v1062 = vpop.f32.mrf.mxu0
  %v1063 = vadd.f32 0.0, %v1062
  %v1064 = vpop.f32.mrf.mxu0
  %v1065 = vpop.f32.mrf.mxu0
  %v1066 = vadd.f32 0.0, %v1065
  %v1067 = vpop.f32.mrf.mxu0
  %1068 = vmatprep.mubr.bf16.mxu0 0
  %1069 = vmatmul.mubr.bf16.gmra.mxu0 %v876
  %v1070 = vpop.f32.mrf.mxu0
  %v1071 = vadd.f32 0.0, %v1070
  %v1072 = vpop.f32.mrf.mxu0
  %v1073 = vpop.f32.mrf.mxu0
  %v1074 = vadd.f32 0.0, %v1073
  %v1075 = vpop.f32.mrf.mxu0
  %1076 = vmatprep.mubr.bf16.mxu0 0
  %1077 = vmatmul.mubr.bf16.gmra.mxu0 %v879
  %v1078 = vpop.f32.mrf.mxu0
  %v1079 = vadd.f32 0.0, %v1078
  %v1080 = vpop.f32.mrf.mxu0
  %v1081 = vpop.f32.mrf.mxu0
  %v1082 = vadd.f32 0.0, %v1081
  %v1083 = vpop.f32.mrf.mxu0
  %1084 = vmatprep.mubr.bf16.mxu0 0
  %1085 = vmatmul.mubr.bf16.gmra.mxu0 %v882
  %v1086 = vpop.f32.mrf.mxu0
  %v1087 = vadd.f32 0.0, %v1086
  %v1088 = vpop.f32.mrf.mxu0
  %v1089 = vpop.f32.mrf.mxu0
  %v1090 = vadd.f32 0.0, %v1089
  %v1091 = vpop.f32.mrf.mxu0
  %1092 = vmatprep.mubr.bf16.mxu0 0
  %1093 = vmatmul.mubr.bf16.gmra.mxu0 %v885
  %v1094 = vpop.f32.mrf.mxu0
  %v1095 = vadd.f32 0.0, %v1094
  %v1096 = vpop.f32.mrf.mxu0
  %v1097 = vpop.f32.mrf.mxu0
  %v1098 = vadd.f32 0.0, %v1097
  %v1099 = vpop.f32.mrf.mxu0
  %1100 = vmatprep.mubr.bf16.mxu0 0
  %1101 = vmatmul.mubr.bf16.gmra.mxu0 %v888
  %v1102 = vpop.f32.mrf.mxu0
  %v1103 = vadd.f32 0.0, %v1102
  %v1104 = vpop.f32.mrf.mxu0
  %v1105 = vpop.f32.mrf.mxu0
  %v1106 = vadd.f32 0.0, %v1105
  %v1107 = vpop.f32.mrf.mxu0
  %1108 = vmatprep.mubr.bf16.mxu0 0
  %1109 = vmatmul.mubr.bf16.gmra.mxu0 %v891
  %v1110 = vpop.f32.mrf.mxu0
  %v1111 = vadd.f32 0.0, %v1110
  %v1112 = vpop.f32.mrf.mxu0
  %v1113 = vpop.f32.mrf.mxu0
  %v1114 = vadd.f32 0.0, %v1113
  %v1115 = vpop.f32.mrf.mxu0
  %1116 = vmatprep.mubr.bf16.mxu0 0
  %1117 = vmatmul.mubr.bf16.gmra.mxu0 %v894
  %v1118 = vpop.f32.mrf.mxu0
  %v1119 = vadd.f32 0.0, %v1118
  %v1120 = vpop.f32.mrf.mxu0
  %v1121 = vpop.f32.mrf.mxu0
  %v1122 = vadd.f32 0.0, %v1121
  %v1123 = vpop.f32.mrf.mxu0
  %1124 = vmatprep.mubr.bf16.mxu0 0
  %1125 = vmatmul.mubr.bf16.gmra.mxu0 %v897
  %v1126 = vpop.f32.mrf.mxu0
  %v1127 = vadd.f32 0.0, %v1126
  %v1128 = vpop.f32.mrf.mxu0
  %v1129 = vpop.f32.mrf.mxu0
  %v1130 = vadd.f32 0.0, %v1129
  %v1131 = vpop.f32.mrf.mxu0
  %1132 = vmatprep.mubr.bf16.mxu0 0
  %1133 = vmatmul.mubr.bf16.gmra.mxu0 %v900
  %v1134 = vpop.f32.mrf.mxu0
  %v1135 = vadd.f32 0.0, %v1134
  %v1136 = vpop.f32.mrf.mxu0
  %v1137 = vpop.f32.mrf.mxu0
  %v1138 = vadd.f32 0.0, %v1137
  %v1139 = vpop.f32.mrf.mxu0
  %1140 = vmatprep.mubr.bf16.mxu0 0
  %1141 = vmatmul.mubr.bf16.gmra.mxu0 %v903
  %v1142 = vpop.f32.mrf.mxu0
  %v1143 = vadd.f32 0.0, %v1142
  %v1144 = vpop.f32.mrf.mxu0
  %v1145 = vpop.f32.mrf.mxu0
  %v1146 = vadd.f32 0.0, %v1145
  %v1147 = vpop.f32.mrf.mxu0
  %1148 = vmatprep.mubr.bf16.mxu0 0
  %1149 = vmatmul.mubr.bf16.gmra.mxu0 %v906
  %v1150 = vpop.f32.mrf.mxu0
  %v1151 = vadd.f32 0.0, %v1150
  %v1152 = vpop.f32.mrf.mxu0
  %v1153 = vpop.f32.mrf.mxu0
  %v1154 = vadd.f32 0.0, %v1153
  %v1155 = vpop.f32.mrf.mxu0
  %1156 = vmatprep.mubr.bf16.mxu0 0
  %1157 = vmatmul.mubr.bf16.gmra.mxu0 %v909
  %v1158 = vpop.f32.mrf.mxu0
  %v1159 = vadd.f32 0.0, %v1158
  %v1160 = vpop.f32.mrf.mxu0
  %v1161 = vpop.f32.mrf.mxu0
  %v1162 = vadd.f32 0.0, %v1161
  %v1163 = vpop.f32.mrf.mxu0
  %1164 = vmatprep.mubr.bf16.mxu0 0
  %1165 = vmatmul.mubr.bf16.gmra.mxu0 %v912
  %v1166 = vpop.f32.mrf.mxu0
  %v1167 = vadd.f32 0.0, %v1166
  %v1168 = vpop.f32.mrf.mxu0
  %v1169 = vpop.f32.mrf.mxu0
  %v1170 = vadd.f32 0.0, %v1169
  %v1171 = vpop.f32.mrf.mxu0
  %1172 = vmatprep.mubr.bf16.mxu0 0
  %1173 = vmatmul.mubr.bf16.gmra.mxu0 %v915
  %v1174 = vpop.f32.mrf.mxu0
  %v1175 = vadd.f32 0.0, %v1174
  %v1176 = vpop.f32.mrf.mxu0
  %v1177 = vpop.f32.mrf.mxu0
  %v1178 = vadd.f32 0.0, %v1177
  %v1179 = vpop.f32.mrf.mxu0
  %1180 = vmatprep.mubr.bf16.mxu0 0
  %1181 = vmatmul.mubr.bf16.gmra.mxu0 %v918
  %v1182 = vpop.f32.mrf.mxu0
  %v1183 = vadd.f32 0.0, %v1182
  %v1184 = vpop.f32.mrf.mxu0
  %v1185 = vpop.f32.mrf.mxu0
  %v1186 = vadd.f32 0.0, %v1185
  %v1187 = vpop.f32.mrf.mxu0
  %1188 = vmatprep.mubr.bf16.mxu0 0
  %1189 = vmatmul.mubr.bf16.gmra.mxu0 %v921
  %v1190 = vpop.f32.mrf.mxu0
  %v1191 = vadd.f32 0.0, %v1190
  %v1192 = vpop.f32.mrf.mxu0
  %v1193 = vpop.f32.mrf.mxu0
  %v1194 = vadd.f32 0.0, %v1193
  %v1195 = vpop.f32.mrf.mxu0
  %1196 = vmatprep.mubr.bf16.mxu0 0
  %1197 = vmatmul.mubr.bf16.gmra.mxu0 %v924
  %v1198 = vpop.f32.mrf.mxu0
  %v1199 = vadd.f32 0.0, %v1198
  %v1200 = vpop.f32.mrf.mxu0
  %v1201 = vpop.f32.mrf.mxu0
  %v1202 = vadd.f32 0.0, %v1201
  %v1203 = vpop.f32.mrf.mxu0
  %1204 = vmatprep.mubr.bf16.mxu0 0
  %1205 = vmatmul.mubr.bf16.gmra.mxu0 %v927
  %v1206 = vpop.f32.mrf.mxu0
  %v1207 = vadd.f32 0.0, %v1206
  %v1208 = vpop.f32.mrf.mxu0
  %v1209 = vpop.f32.mrf.mxu0
  %v1210 = vadd.f32 0.0, %v1209
  %v1211 = vpop.f32.mrf.mxu0
  %1212 = vmatprep.mubr.bf16.mxu0 0
  %1213 = vmatmul.mubr.bf16.gmra.mxu0 %v930
  %v1214 = vpop.f32.mrf.mxu0
  %v1215 = vadd.f32 0.0, %v1214
  %v1216 = vpop.f32.mrf.mxu0
  %v1217 = vpop.f32.mrf.mxu0
  %v1218 = vadd.f32 0.0, %v1217
  %v1219 = vpop.f32.mrf.mxu0
  %1220 = vdwg.mxu0
  %v1221 = vpack.c.bf16 %v970, %v967
  %v1222 = vpack.c.bf16 %v978, %v975
  %v1223 = vpack.c.bf16 %v986, %v983
  %v1224 = vpack.c.bf16 %v994, %v991
  %v1225 = vpack.c.bf16 %v1002, %v999
  %v1226 = vpack.c.bf16 %v1010, %v1007
  %v1227 = vpack.c.bf16 %v1018, %v1015
  %v1228 = vpack.c.bf16 %v1026, %v1023
  %v1229 = vpack.c.bf16 %v1034, %v1031
  %v1230 = vpack.c.bf16 %v1042, %v1039
  %v1231 = vpack.c.bf16 %v1050, %v1047
  %v1232 = vpack.c.bf16 %v1058, %v1055
  %v1233 = vpack.c.bf16 %v1066, %v1063
  %v1234 = vpack.c.bf16 %v1074, %v1071
  %v1235 = vpack.c.bf16 %v1082, %v1079
  %v1236 = vpack.c.bf16 %v1090, %v1087
  %v1237 = vpack.c.bf16 %v1098, %v1095
  %v1238 = vpack.c.bf16 %v1106, %v1103
  %v1239 = vpack.c.bf16 %v1114, %v1111
  %v1240 = vpack.c.bf16 %v1122, %v1119
  %v1241 = vpack.c.bf16 %v1130, %v1127
  %v1242 = vpack.c.bf16 %v1138, %v1135
  %v1243 = vpack.c.bf16 %v1146, %v1143
  %v1244 = vpack.c.bf16 %v1154, %v1151
  %v1245 = vpack.c.bf16 %v1162, %v1159
  %v1246 = vpack.c.bf16 %v1170, %v1167
  %v1247 = vpack.c.bf16 %v1178, %v1175
  %v1248 = vpack.c.bf16 %v1186, %v1183
  %v1249 = vpack.c.bf16 %v1194, %v1191
  %v1250 = vpack.c.bf16 %v1202, %v1199
  %v1251 = vpack.c.bf16 %v1210, %v1207
  %v1252 = vpack.c.bf16 %v1218, %v1215
  %v1253 = vld [vmem:[%s4] sm:$0x1]
  %v1255 = vpack.i.b16 %v1253, %v1253
  %v1257 = vlaneseq
  %v1258 = vshrl.u32 %v1257, 7
  %v1259 = vsub.s32 0, %v1258
  %v1260 = vrot.slane %v1255, %v1259
  %v1261 = vadd.bf16 %v1221, %v1260
  %v1262 = vadd.bf16 %v1222, %v1260
  %v1263 = vadd.bf16 %v1223, %v1260
  %v1264 = vadd.bf16 %v1224, %v1260
  %v1265 = vadd.bf16 %v1225, %v1260
  %v1266 = vadd.bf16 %v1226, %v1260
  %v1267 = vadd.bf16 %v1227, %v1260
  %v1268 = vadd.bf16 %v1228, %v1260
  %v1269 = vadd.bf16 %v1229, %v1260
  %v1270 = vadd.bf16 %v1230, %v1260
  %v1271 = vadd.bf16 %v1231, %v1260
  %v1272 = vadd.bf16 %v1232, %v1260
  %v1273 = vadd.bf16 %v1233, %v1260
  %v1274 = vadd.bf16 %v1234, %v1260
  %v1275 = vadd.bf16 %v1235, %v1260
  %v1276 = vadd.bf16 %v1236, %v1260
  %v1277 = vadd.bf16 %v1237, %v1260
  %v1278 = vadd.bf16 %v1238, %v1260
  %v1279 = vadd.bf16 %v1239, %v1260
  %v1280 = vadd.bf16 %v1240, %v1260
  %v1281 = vadd.bf16 %v1241, %v1260
  %v1282 = vadd.bf16 %v1242, %v1260
  %v1283 = vadd.bf16 %v1243, %v1260
  %v1284 = vadd.bf16 %v1244, %v1260
  %v1285 = vadd.bf16 %v1245, %v1260
  %v1286 = vadd.bf16 %v1246, %v1260
  %v1287 = vadd.bf16 %v1247, %v1260
  %v1288 = vadd.bf16 %v1248, %v1260
  %v1289 = vadd.bf16 %v1249, %v1260
  %v1290 = vadd.bf16 %v1250, %v1260
  %v1291 = vadd.bf16 %v1251, %v1260
  %v1292 = vadd.bf16 %v1252, %v1260
  %v1293 = vmul.bf16 %v1261, 1009007652
  %v1294 = vmul.bf16 %v1262, 1009007652
  %v1295 = vmul.bf16 %v1263, 1009007652
  %v1296 = vmul.bf16 %v1264, 1009007652
  %v1297 = vmul.bf16 %v1265, 1009007652
  %v1298 = vmul.bf16 %v1266, 1009007652
  %v1299 = vmul.bf16 %v1267, 1009007652
  %v1300 = vmul.bf16 %v1268, 1009007652
  %v1301 = vmul.bf16 %v1269, 1009007652
  %v1302 = vmul.bf16 %v1270, 1009007652
  %v1303 = vmul.bf16 %v1271, 1009007652
  %v1304 = vmul.bf16 %v1272, 1009007652
  %v1305 = vmul.bf16 %v1273, 1009007652
  %v1306 = vmul.bf16 %v1274, 1009007652
  %v1307 = vmul.bf16 %v1275, 1009007652
  %v1308 = vmul.bf16 %v1276, 1009007652
  %v1309 = vmul.bf16 %v1277, 1009007652
  %v1310 = vmul.bf16 %v1278, 1009007652
  %v1311 = vmul.bf16 %v1279, 1009007652
  %v1312 = vmul.bf16 %v1280, 1009007652
  %v1313 = vmul.bf16 %v1281, 1009007652
  %v1314 = vmul.bf16 %v1282, 1009007652
  %v1315 = vmul.bf16 %v1283, 1009007652
  %v1316 = vmul.bf16 %v1284, 1009007652
  %v1317 = vmul.bf16 %v1285, 1009007652
  %v1318 = vmul.bf16 %v1286, 1009007652
  %v1319 = vmul.bf16 %v1287, 1009007652
  %v1320 = vmul.bf16 %v1288, 1009007652
  %v1321 = vmul.bf16 %v1289, 1009007652
  %v1322 = vmul.bf16 %v1290, 1009007652
  %v1323 = vmul.bf16 %v1291, 1009007652
  %v1324 = vmul.bf16 %v1292, 1009007652
  %v1325 = vmax.bf16 %v1261, %v1293
  %v1326 = vmax.bf16 %v1262, %v1294
  %v1327 = vmax.bf16 %v1263, %v1295
  %v1328 = vmax.bf16 %v1264, %v1296
  %v1329 = vmax.bf16 %v1265, %v1297
  %v1330 = vmax.bf16 %v1266, %v1298
  %v1331 = vmax.bf16 %v1267, %v1299
  %v1332 = vmax.bf16 %v1268, %v1300
  %v1333 = vmax.bf16 %v1269, %v1301
  %v1334 = vmax.bf16 %v1270, %v1302
  %v1335 = vmax.bf16 %v1271, %v1303
  %v1336 = vmax.bf16 %v1272, %v1304
  %v1337 = vmax.bf16 %v1273, %v1305
  %v1338 = vmax.bf16 %v1274, %v1306
  %v1339 = vmax.bf16 %v1275, %v1307
  %v1340 = vmax.bf16 %v1276, %v1308
  %v1341 = vmax.bf16 %v1277, %v1309
  %v1342 = vmax.bf16 %v1278, %v1310
  %v1343 = vmax.bf16 %v1279, %v1311
  %v1344 = vmax.bf16 %v1280, %v1312
  %v1345 = vmax.bf16 %v1281, %v1313
  %v1346 = vmax.bf16 %v1282, %v1314
  %v1347 = vmax.bf16 %v1283, %v1315
  %v1348 = vmax.bf16 %v1284, %v1316
  %v1349 = vmax.bf16 %v1285, %v1317
  %v1350 = vmax.bf16 %v1286, %v1318
  %v1351 = vmax.bf16 %v1287, %v1319
  %v1352 = vmax.bf16 %v1288, %v1320
  %v1353 = vmax.bf16 %v1289, %v1321
  %v1354 = vmax.bf16 %v1290, %v1322
  %v1355 = vmax.bf16 %v1291, %v1323
  %v1356 = vmax.bf16 %v1292, %v1324
  %v1357 = vld [vmem:[%s5] sm:$0xf]
  %v1358 = vld [vmem:[%s5 + $0x4] sm:$0xf]
  %v1359 = vld [vmem:[%s5 + $0x8] sm:$0xf]
  %v1360 = vld [vmem:[%s5 + $0xc] sm:$0xf]
  %v1361 = vld [vmem:[%s5 + $0x10] sm:$0xf]
  %v1362 = vld [vmem:[%s5 + $0x14] sm:$0xf]
  %v1363 = vld [vmem:[%s5 + $0x18] sm:$0xf]
  %v1364 = vld [vmem:[%s5 + $0x1c] sm:$0xf]
  %v1373 = vunpack.c.l.b16 %v1357
  %v1374 = vunpack.c.l.b16 %v1358
  %v1375 = vunpack.c.l.b16 %v1359
  %v1376 = vunpack.c.l.b16 %v1360
  %v1377 = vunpack.c.l.b16 %v1361
  %v1378 = vunpack.c.l.b16 %v1362
  %v1379 = vunpack.c.l.b16 %v1363
  %v1380 = vunpack.c.l.b16 %v1364
  %v1381 = vpack.c.b16 %v1374, %v1373
  %v1382 = vpack.c.b16 %v1376, %v1375
  %v1383 = vpack.c.b16 %v1378, %v1377
  %v1384 = vpack.c.b16 %v1380, %v1379
  %v1390 = vsel %vm835, %v1325, 0
  %v1393 = vsel %vm835, %v1326, 0
  %v1396 = vsel %vm835, %v1327, 0
  %v1399 = vsel %vm835, %v1328, 0
  %v1402 = vsel %vm835, %v1329, 0
  %v1405 = vsel %vm835, %v1330, 0
  %v1408 = vsel %vm835, %v1331, 0
  %v1411 = vsel %vm835, %v1332, 0
  %v1414 = vsel %vm835, %v1333, 0
  %v1417 = vsel %vm835, %v1334, 0
  %v1420 = vsel %vm835, %v1335, 0
  %v1423 = vsel %vm835, %v1336, 0
  %v1426 = vsel %vm835, %v1337, 0
  %v1429 = vsel %vm835, %v1338, 0
  %v1432 = vsel %vm835, %v1339, 0
  %v1435 = vsel %vm835, %v1340, 0
  %v1438 = vsel %vm835, %v1341, 0
  %v1441 = vsel %vm835, %v1342, 0
  %v1444 = vsel %vm835, %v1343, 0
  %v1447 = vsel %vm835, %v1344, 0
  %v1450 = vsel %vm835, %v1345, 0
  %v1453 = vsel %vm835, %v1346, 0
  %v1456 = vsel %vm835, %v1347, 0
  %v1459 = vsel %vm835, %v1348, 0
  %v1462 = vsel %vm835, %v1349, 0
  %v1465 = vsel %vm835, %v1350, 0
  %v1468 = vsel %vm835, %v1351, 0
  %v1471 = vsel %vm835, %v1352, 0
  %v1474 = vsel %vm835, %v1353, 0
  %v1477 = vsel %vm835, %v1354, 0
  %v1480 = vsel %vm835, %v1355, 0
  %v1483 = vsel %vm835, %v1356, 0
  %1485 = vmatprep.subr.bf16.mxu0 0
  %1486 = vmatpush1.bf16.msra.mxu0 0
  %1487 = vmatprep.subr.bf16.mxu0 0
  %1488 = vmatpush1.bf16.msra.mxu0 0
  %1489 = vmatprep.subr.bf16.mxu0 0
  %1490 = vmatpush1.bf16.msra.mxu0 0
  %1491 = vmatprep.subr.bf16.mxu0 0
  %1492 = vmatpush1.bf16.msra.mxu0 0
  %1493 = vmatprep.subr.bf16.mxu0 0
  %1494 = vmatpush1.bf16.msra.mxu0 %v1384
  %1495 = vmatprep.subr.bf16.mxu0 0
  %1496 = vmatpush1.bf16.msra.mxu0 %v1383
  %1497 = vmatprep.subr.bf16.mxu0 0
  %1498 = vmatpush1.bf16.msra.mxu0 %v1382
  %1499 = vmatprep.subr.bf16.mxu0 0
  %1500 = vmatpush1.bf16.msra.mxu0 %v1381
  %1501 = vmatprep.subr.bf16.mxu0 0
  %1502 = vmatpush2.bf16.msra.mxu0 0
  %1503 = vmatprep.subr.bf16.mxu0 0
  %1504 = vmatpush2.bf16.msra.mxu0 0
  %1505 = vmatprep.subr.bf16.mxu0 0
  %1506 = vmatpush2.bf16.msra.mxu0 0
  %1507 = vmatprep.subr.bf16.mxu0 0
  %1508 = vmatpush2.bf16.msra.mxu0 0
  %1509 = vmatprep.subr.bf16.mxu0 0
  %1510 = vmatpush2.bf16.msra.mxu0 0
  %1511 = vmatprep.subr.bf16.mxu0 0
  %1512 = vmatpush2.bf16.msra.mxu0 0
  %1513 = vmatprep.subr.bf16.mxu0 0
  %1514 = vmatpush2.bf16.msra.mxu0 0
  %1515 = vmatprep.subr.bf16.mxu0 0
  %1516 = vmatpush2.bf16.msra.mxu0 0
  %1517 = vmatprep.mubr.bf16.mxu0 0
  %1518 = vmatmul.mubr.bf16.gmra.mxu0 %v1390
  %v1519 = vpop.f32.mrf.mxu0
  %v1520 = vadd.f32 0.0, %v1519
  %v1521 = vpop.f32.mrf.mxu0
  %v1522 = vpop.f32.mrf.mxu0
  %v1523 = vadd.f32 0.0, %v1522
  %v1524 = vpop.f32.mrf.mxu0
  %1525 = vmatprep.mubr.bf16.mxu0 0
  %1526 = vmatmul.mubr.bf16.gmra.mxu0 %v1393
  %v1527 = vpop.f32.mrf.mxu0
  %v1528 = vadd.f32 0.0, %v1527
  %v1529 = vpop.f32.mrf.mxu0
  %v1530 = vpop.f32.mrf.mxu0
  %v1531 = vadd.f32 0.0, %v1530
  %v1532 = vpop.f32.mrf.mxu0
  %1533 = vmatprep.mubr.bf16.mxu0 0
  %1534 = vmatmul.mubr.bf16.gmra.mxu0 %v1396
  %v1535 = vpop.f32.mrf.mxu0
  %v1536 = vadd.f32 0.0, %v1535
  %v1537 = vpop.f32.mrf.mxu0
  %v1538 = vpop.f32.mrf.mxu0
  %v1539 = vadd.f32 0.0, %v1538
  %v1540 = vpop.f32.mrf.mxu0
  %1541 = vmatprep.mubr.bf16.mxu0 0
  %1542 = vmatmul.mubr.bf16.gmra.mxu0 %v1399
  %v1543 = vpop.f32.mrf.mxu0
  %v1544 = vadd.f32 0.0, %v1543
  %v1545 = vpop.f32.mrf.mxu0
  %v1546 = vpop.f32.mrf.mxu0
  %v1547 = vadd.f32 0.0, %v1546
  %v1548 = vpop.f32.mrf.mxu0
  %1549 = vmatprep.mubr.bf16.mxu0 0
  %1550 = vmatmul.mubr.bf16.gmra.mxu0 %v1402
  %v1551 = vpop.f32.mrf.mxu0
  %v1552 = vadd.f32 0.0, %v1551
  %v1553 = vpop.f32.mrf.mxu0
  %v1554 = vpop.f32.mrf.mxu0
  %v1555 = vadd.f32 0.0, %v1554
  %v1556 = vpop.f32.mrf.mxu0
  %1557 = vmatprep.mubr.bf16.mxu0 0
  %1558 = vmatmul.mubr.bf16.gmra.mxu0 %v1405
  %v1559 = vpop.f32.mrf.mxu0
  %v1560 = vadd.f32 0.0, %v1559
  %v1561 = vpop.f32.mrf.mxu0
  %v1562 = vpop.f32.mrf.mxu0
  %v1563 = vadd.f32 0.0, %v1562
  %v1564 = vpop.f32.mrf.mxu0
  %1565 = vmatprep.mubr.bf16.mxu0 0
  %1566 = vmatmul.mubr.bf16.gmra.mxu0 %v1408
  %v1567 = vpop.f32.mrf.mxu0
  %v1568 = vadd.f32 0.0, %v1567
  %v1569 = vpop.f32.mrf.mxu0
  %v1570 = vpop.f32.mrf.mxu0
  %v1571 = vadd.f32 0.0, %v1570
  %v1572 = vpop.f32.mrf.mxu0
  %1573 = vmatprep.mubr.bf16.mxu0 0
  %1574 = vmatmul.mubr.bf16.gmra.mxu0 %v1411
  %v1575 = vpop.f32.mrf.mxu0
  %v1576 = vadd.f32 0.0, %v1575
  %v1577 = vpop.f32.mrf.mxu0
  %v1578 = vpop.f32.mrf.mxu0
  %v1579 = vadd.f32 0.0, %v1578
  %v1580 = vpop.f32.mrf.mxu0
  %1581 = vmatprep.mubr.bf16.mxu0 0
  %1582 = vmatmul.mubr.bf16.gmra.mxu0 %v1414
  %v1583 = vpop.f32.mrf.mxu0
  %v1584 = vadd.f32 0.0, %v1583
  %v1585 = vpop.f32.mrf.mxu0
  %v1586 = vpop.f32.mrf.mxu0
  %v1587 = vadd.f32 0.0, %v1586
  %v1588 = vpop.f32.mrf.mxu0
  %1589 = vmatprep.mubr.bf16.mxu0 0
  %1590 = vmatmul.mubr.bf16.gmra.mxu0 %v1417
  %v1591 = vpop.f32.mrf.mxu0
  %v1592 = vadd.f32 0.0, %v1591
  %v1593 = vpop.f32.mrf.mxu0
  %v1594 = vpop.f32.mrf.mxu0
  %v1595 = vadd.f32 0.0, %v1594
  %v1596 = vpop.f32.mrf.mxu0
  %1597 = vmatprep.mubr.bf16.mxu0 0
  %1598 = vmatmul.mubr.bf16.gmra.mxu0 %v1420
  %v1599 = vpop.f32.mrf.mxu0
  %v1600 = vadd.f32 0.0, %v1599
  %v1601 = vpop.f32.mrf.mxu0
  %v1602 = vpop.f32.mrf.mxu0
  %v1603 = vadd.f32 0.0, %v1602
  %v1604 = vpop.f32.mrf.mxu0
  %1605 = vmatprep.mubr.bf16.mxu0 0
  %1606 = vmatmul.mubr.bf16.gmra.mxu0 %v1423
  %v1607 = vpop.f32.mrf.mxu0
  %v1608 = vadd.f32 0.0, %v1607
  %v1609 = vpop.f32.mrf.mxu0
  %v1610 = vpop.f32.mrf.mxu0
  %v1611 = vadd.f32 0.0, %v1610
  %v1612 = vpop.f32.mrf.mxu0
  %1613 = vmatprep.mubr.bf16.mxu0 0
  %1614 = vmatmul.mubr.bf16.gmra.mxu0 %v1426
  %v1615 = vpop.f32.mrf.mxu0
  %v1616 = vadd.f32 0.0, %v1615
  %v1617 = vpop.f32.mrf.mxu0
  %v1618 = vpop.f32.mrf.mxu0
  %v1619 = vadd.f32 0.0, %v1618
  %v1620 = vpop.f32.mrf.mxu0
  %1621 = vmatprep.mubr.bf16.mxu0 0
  %1622 = vmatmul.mubr.bf16.gmra.mxu0 %v1429
  %v1623 = vpop.f32.mrf.mxu0
  %v1624 = vadd.f32 0.0, %v1623
  %v1625 = vpop.f32.mrf.mxu0
  %v1626 = vpop.f32.mrf.mxu0
  %v1627 = vadd.f32 0.0, %v1626
  %v1628 = vpop.f32.mrf.mxu0
  %1629 = vmatprep.mubr.bf16.mxu0 0
  %1630 = vmatmul.mubr.bf16.gmra.mxu0 %v1432
  %v1631 = vpop.f32.mrf.mxu0
  %v1632 = vadd.f32 0.0, %v1631
  %v1633 = vpop.f32.mrf.mxu0
  %v1634 = vpop.f32.mrf.mxu0
  %v1635 = vadd.f32 0.0, %v1634
  %v1636 = vpop.f32.mrf.mxu0
  %1637 = vmatprep.mubr.bf16.mxu0 0
  %1638 = vmatmul.mubr.bf16.gmra.mxu0 %v1435
  %v1639 = vpop.f32.mrf.mxu0
  %v1640 = vadd.f32 0.0, %v1639
  %v1641 = vpop.f32.mrf.mxu0
  %v1642 = vpop.f32.mrf.mxu0
  %v1643 = vadd.f32 0.0, %v1642
  %v1644 = vpop.f32.mrf.mxu0
  %1645 = vmatprep.mubr.bf16.mxu0 0
  %1646 = vmatmul.mubr.bf16.gmra.mxu0 %v1438
  %v1647 = vpop.f32.mrf.mxu0
  %v1648 = vadd.f32 0.0, %v1647
  %v1649 = vpop.f32.mrf.mxu0
  %v1650 = vpop.f32.mrf.mxu0
  %v1651 = vadd.f32 0.0, %v1650
  %v1652 = vpop.f32.mrf.mxu0
  %1653 = vmatprep.mubr.bf16.mxu0 0
  %1654 = vmatmul.mubr.bf16.gmra.mxu0 %v1441
  %v1655 = vpop.f32.mrf.mxu0
  %v1656 = vadd.f32 0.0, %v1655
  %v1657 = vpop.f32.mrf.mxu0
  %v1658 = vpop.f32.mrf.mxu0
  %v1659 = vadd.f32 0.0, %v1658
  %v1660 = vpop.f32.mrf.mxu0
  %1661 = vmatprep.mubr.bf16.mxu0 0
  %1662 = vmatmul.mubr.bf16.gmra.mxu0 %v1444
  %v1663 = vpop.f32.mrf.mxu0
  %v1664 = vadd.f32 0.0, %v1663
  %v1665 = vpop.f32.mrf.mxu0
  %v1666 = vpop.f32.mrf.mxu0
  %v1667 = vadd.f32 0.0, %v1666
  %v1668 = vpop.f32.mrf.mxu0
  %1669 = vmatprep.mubr.bf16.mxu0 0
  %1670 = vmatmul.mubr.bf16.gmra.mxu0 %v1447
  %v1671 = vpop.f32.mrf.mxu0
  %v1672 = vadd.f32 0.0, %v1671
  %v1673 = vpop.f32.mrf.mxu0
  %v1674 = vpop.f32.mrf.mxu0
  %v1675 = vadd.f32 0.0, %v1674
  %v1676 = vpop.f32.mrf.mxu0
  %1677 = vmatprep.mubr.bf16.mxu0 0
  %1678 = vmatmul.mubr.bf16.gmra.mxu0 %v1450
  %v1679 = vpop.f32.mrf.mxu0
  %v1680 = vadd.f32 0.0, %v1679
  %v1681 = vpop.f32.mrf.mxu0
  %v1682 = vpop.f32.mrf.mxu0
  %v1683 = vadd.f32 0.0, %v1682
  %v1684 = vpop.f32.mrf.mxu0
  %1685 = vmatprep.mubr.bf16.mxu0 0
  %1686 = vmatmul.mubr.bf16.gmra.mxu0 %v1453
  %v1687 = vpop.f32.mrf.mxu0
  %v1688 = vadd.f32 0.0, %v1687
  %v1689 = vpop.f32.mrf.mxu0
  %v1690 = vpop.f32.mrf.mxu0
  %v1691 = vadd.f32 0.0, %v1690
  %v1692 = vpop.f32.mrf.mxu0
  %1693 = vmatprep.mubr.bf16.mxu0 0
  %1694 = vmatmul.mubr.bf16.gmra.mxu0 %v1456
  %v1695 = vpop.f32.mrf.mxu0
  %v1696 = vadd.f32 0.0, %v1695
  %v1697 = vpop.f32.mrf.mxu0
  %v1698 = vpop.f32.mrf.mxu0
  %v1699 = vadd.f32 0.0, %v1698
  %v1700 = vpop.f32.mrf.mxu0
  %1701 = vmatprep.mubr.bf16.mxu0 0
  %1702 = vmatmul.mubr.bf16.gmra.mxu0 %v1459
  %v1703 = vpop.f32.mrf.mxu0
  %v1704 = vadd.f32 0.0, %v1703
  %v1705 = vpop.f32.mrf.mxu0
  %v1706 = vpop.f32.mrf.mxu0
  %v1707 = vadd.f32 0.0, %v1706
  %v1708 = vpop.f32.mrf.mxu0
  %1709 = vmatprep.mubr.bf16.mxu0 0
  %1710 = vmatmul.mubr.bf16.gmra.mxu0 %v1462
  %v1711 = vpop.f32.mrf.mxu0
  %v1712 = vadd.f32 0.0, %v1711
  %v1713 = vpop.f32.mrf.mxu0
  %v1714 = vpop.f32.mrf.mxu0
  %v1715 = vadd.f32 0.0, %v1714
  %v1716 = vpop.f32.mrf.mxu0
  %1717 = vmatprep.mubr.bf16.mxu0 0
  %1718 = vmatmul.mubr.bf16.gmra.mxu0 %v1465
  %v1719 = vpop.f32.mrf.mxu0
  %v1720 = vadd.f32 0.0, %v1719
  %v1721 = vpop.f32.mrf.mxu0
  %v1722 = vpop.f32.mrf.mxu0
  %v1723 = vadd.f32 0.0, %v1722
  %v1724 = vpop.f32.mrf.mxu0
  %1725 = vmatprep.mubr.bf16.mxu0 0
  %1726 = vmatmul.mubr.bf16.gmra.mxu0 %v1468
  %v1727 = vpop.f32.mrf.mxu0
  %v1728 = vadd.f32 0.0, %v1727
  %v1729 = vpop.f32.mrf.mxu0
  %v1730 = vpop.f32.mrf.mxu0
  %v1731 = vadd.f32 0.0, %v1730
  %v1732 = vpop.f32.mrf.mxu0
  %1733 = vmatprep.mubr.bf16.mxu0 0
  %1734 = vmatmul.mubr.bf16.gmra.mxu0 %v1471
  %v1735 = vpop.f32.mrf.mxu0
  %v1736 = vadd.f32 0.0, %v1735
  %v1737 = vpop.f32.mrf.mxu0
  %v1738 = vpop.f32.mrf.mxu0
  %v1739 = vadd.f32 0.0, %v1738
  %v1740 = vpop.f32.mrf.mxu0
  %1741 = vmatprep.mubr.bf16.mxu0 0
  %1742 = vmatmul.mubr.bf16.gmra.mxu0 %v1474
  %v1743 = vpop.f32.mrf.mxu0
  %v1744 = vadd.f32 0.0, %v1743
  %v1745 = vpop.f32.mrf.mxu0
  %v1746 = vpop.f32.mrf.mxu0
  %v1747 = vadd.f32 0.0, %v1746
  %v1748 = vpop.f32.mrf.mxu0
  %1749 = vmatprep.mubr.bf16.mxu0 0
  %1750 = vmatmul.mubr.bf16.gmra.mxu0 %v1477
  %v1751 = vpop.f32.mrf.mxu0
  %v1752 = vadd.f32 0.0, %v1751
  %v1753 = vpop.f32.mrf.mxu0
  %v1754 = vpop.f32.mrf.mxu0
  %v1755 = vadd.f32 0.0, %v1754
  %v1756 = vpop.f32.mrf.mxu0
  %1757 = vmatprep.mubr.bf16.mxu0 0
  %1758 = vmatmul.mubr.bf16.gmra.mxu0 %v1480
  %v1759 = vpop.f32.mrf.mxu0
  %v1760 = vadd.f32 0.0, %v1759
  %v1761 = vpop.f32.mrf.mxu0
  %v1762 = vpop.f32.mrf.mxu0
  %v1763 = vadd.f32 0.0, %v1762
  %v1764 = vpop.f32.mrf.mxu0
  %1765 = vmatprep.mubr.bf16.mxu0 0
  %1766 = vmatmul.mubr.bf16.gmra.mxu0 %v1483
  %v1767 = vpop.f32.mrf.mxu0
  %v1768 = vadd.f32 0.0, %v1767
  %v1769 = vpop.f32.mrf.mxu0
  %v1770 = vpop.f32.mrf.mxu0
  %v1771 = vadd.f32 0.0, %v1770
  %v1772 = vpop.f32.mrf.mxu0
  %1773 = vdwg.mxu0
  %v1774 = vpack.c.bf16 %v1523, %v1520
  %v1775 = vpack.c.bf16 %v1531, %v1528
  %v1776 = vpack.c.bf16 %v1539, %v1536
  %v1777 = vpack.c.bf16 %v1547, %v1544
  %v1778 = vpack.c.bf16 %v1555, %v1552
  %v1779 = vpack.c.bf16 %v1563, %v1560
  %v1780 = vpack.c.bf16 %v1571, %v1568
  %v1781 = vpack.c.bf16 %v1579, %v1576
  %v1782 = vpack.c.bf16 %v1587, %v1584
  %v1783 = vpack.c.bf16 %v1595, %v1592
  %v1784 = vpack.c.bf16 %v1603, %v1600
  %v1785 = vpack.c.bf16 %v1611, %v1608
  %v1786 = vpack.c.bf16 %v1619, %v1616
  %v1787 = vpack.c.bf16 %v1627, %v1624
  %v1788 = vpack.c.bf16 %v1635, %v1632
  %v1789 = vpack.c.bf16 %v1643, %v1640
  %v1790 = vpack.c.bf16 %v1651, %v1648
  %v1791 = vpack.c.bf16 %v1659, %v1656
  %v1792 = vpack.c.bf16 %v1667, %v1664
  %v1793 = vpack.c.bf16 %v1675, %v1672
  %v1794 = vpack.c.bf16 %v1683, %v1680
  %v1795 = vpack.c.bf16 %v1691, %v1688
  %v1796 = vpack.c.bf16 %v1699, %v1696
  %v1797 = vpack.c.bf16 %v1707, %v1704
  %v1798 = vpack.c.bf16 %v1715, %v1712
  %v1799 = vpack.c.bf16 %v1723, %v1720
  %v1800 = vpack.c.bf16 %v1731, %v1728
  %v1801 = vpack.c.bf16 %v1739, %v1736
  %v1802 = vpack.c.bf16 %v1747, %v1744
  %v1803 = vpack.c.bf16 %v1755, %v1752
  %v1804 = vpack.c.bf16 %v1763, %v1760
  %v1805 = vpack.c.bf16 %v1771, %v1768
  %v1806 = vld [vmem:[%s6] sm:$0x1]
  %v1808 = vpack.i.b16 %v1806, %v1806
  %v1810 = vlaneseq
  %v1811 = vshrl.u32 %v1810, 7
  %v1812 = vsub.s32 0, %v1811
  %v1813 = vrot.slane %v1808, %v1812
  %v1814 = vadd.bf16 %v1774, %v1813
  %v1815 = vadd.bf16 %v1775, %v1813
  %v1816 = vadd.bf16 %v1776, %v1813
  %v1817 = vadd.bf16 %v1777, %v1813
  %v1818 = vadd.bf16 %v1778, %v1813
  %v1819 = vadd.bf16 %v1779, %v1813
  %v1820 = vadd.bf16 %v1780, %v1813
  %v1821 = vadd.bf16 %v1781, %v1813
  %v1822 = vadd.bf16 %v1782, %v1813
  %v1823 = vadd.bf16 %v1783, %v1813
  %v1824 = vadd.bf16 %v1784, %v1813
  %v1825 = vadd.bf16 %v1785, %v1813
  %v1826 = vadd.bf16 %v1786, %v1813
  %v1827 = vadd.bf16 %v1787, %v1813
  %v1828 = vadd.bf16 %v1788, %v1813
  %v1829 = vadd.bf16 %v1789, %v1813
  %v1830 = vadd.bf16 %v1790, %v1813
  %v1831 = vadd.bf16 %v1791, %v1813
  %v1832 = vadd.bf16 %v1792, %v1813
  %v1833 = vadd.bf16 %v1793, %v1813
  %v1834 = vadd.bf16 %v1794, %v1813
  %v1835 = vadd.bf16 %v1795, %v1813
  %v1836 = vadd.bf16 %v1796, %v1813
  %v1837 = vadd.bf16 %v1797, %v1813
  %v1838 = vadd.bf16 %v1798, %v1813
  %v1839 = vadd.bf16 %v1799, %v1813
  %v1840 = vadd.bf16 %v1800, %v1813
  %v1841 = vadd.bf16 %v1801, %v1813
  %v1842 = vadd.bf16 %v1802, %v1813
  %v1843 = vadd.bf16 %v1803, %v1813
  %v1844 = vadd.bf16 %v1804, %v1813
  %v1845 = vadd.bf16 %v1805, %v1813
  %v1846 = vmul.bf16 %v1814, 1009007652
  %v1847 = vmul.bf16 %v1815, 1009007652
  %v1848 = vmul.bf16 %v1816, 1009007652
  %v1849 = vmul.bf16 %v1817, 1009007652
  %v1850 = vmul.bf16 %v1818, 1009007652
  %v1851 = vmul.bf16 %v1819, 1009007652
  %v1852 = vmul.bf16 %v1820, 1009007652
  %v1853 = vmul.bf16 %v1821, 1009007652
  %v1854 = vmul.bf16 %v1822, 1009007652
  %v1855 = vmul.bf16 %v1823, 1009007652
  %v1856 = vmul.bf16 %v1824, 1009007652
  %v1857 = vmul.bf16 %v1825, 1009007652
  %v1858 = vmul.bf16 %v1826, 1009007652
  %v1859 = vmul.bf16 %v1827, 1009007652
  %v1860 = vmul.bf16 %v1828, 1009007652
  %v1861 = vmul.bf16 %v1829, 1009007652
  %v1862 = vmul.bf16 %v1830, 1009007652
  %v1863 = vmul.bf16 %v1831, 1009007652
  %v1864 = vmul.bf16 %v1832, 1009007652
  %v1865 = vmul.bf16 %v1833, 1009007652
  %v1866 = vmul.bf16 %v1834, 1009007652
  %v1867 = vmul.bf16 %v1835, 1009007652
  %v1868 = vmul.bf16 %v1836, 1009007652
  %v1869 = vmul.bf16 %v1837, 1009007652
  %v1870 = vmul.bf16 %v1838, 1009007652
  %v1871 = vmul.bf16 %v1839, 1009007652
  %v1872 = vmul.bf16 %v1840, 1009007652
  %v1873 = vmul.bf16 %v1841, 1009007652
  %v1874 = vmul.bf16 %v1842, 1009007652
  %v1875 = vmul.bf16 %v1843, 1009007652
  %v1876 = vmul.bf16 %v1844, 1009007652
  %v1877 = vmul.bf16 %v1845, 1009007652
  %v1878 = vmax.bf16 %v1814, %v1846
  %v1879 = vmax.bf16 %v1815, %v1847
  %v1880 = vmax.bf16 %v1816, %v1848
  %v1881 = vmax.bf16 %v1817, %v1849
  %v1882 = vmax.bf16 %v1818, %v1850
  %v1883 = vmax.bf16 %v1819, %v1851
  %v1884 = vmax.bf16 %v1820, %v1852
  %v1885 = vmax.bf16 %v1821, %v1853
  %v1886 = vmax.bf16 %v1822, %v1854
  %v1887 = vmax.bf16 %v1823, %v1855
  %v1888 = vmax.bf16 %v1824, %v1856
  %v1889 = vmax.bf16 %v1825, %v1857
  %v1890 = vmax.bf16 %v1826, %v1858
  %v1891 = vmax.bf16 %v1827, %v1859
  %v1892 = vmax.bf16 %v1828, %v1860
  %v1893 = vmax.bf16 %v1829, %v1861
  %v1894 = vmax.bf16 %v1830, %v1862
  %v1895 = vmax.bf16 %v1831, %v1863
  %v1896 = vmax.bf16 %v1832, %v1864
  %v1897 = vmax.bf16 %v1833, %v1865
  %v1898 = vmax.bf16 %v1834, %v1866
  %v1899 = vmax.bf16 %v1835, %v1867
  %v1900 = vmax.bf16 %v1836, %v1868
  %v1901 = vmax.bf16 %v1837, %v1869
  %v1902 = vmax.bf16 %v1838, %v1870
  %v1903 = vmax.bf16 %v1839, %v1871
  %v1904 = vmax.bf16 %v1840, %v1872
  %v1905 = vmax.bf16 %v1841, %v1873
  %v1906 = vmax.bf16 %v1842, %v1874
  %v1907 = vmax.bf16 %v1843, %v1875
  %v1908 = vmax.bf16 %v1844, %v1876
  %v1909 = vmax.bf16 %v1845, %v1877
  %v1910 = vld [vmem:[%s7] sm:$0xf]
  %v1911 = vld [vmem:[%s7 + $0x4] sm:$0xf]
  %v1912 = vld [vmem:[%s7 + $0x8] sm:$0xf]
  %v1913 = vld [vmem:[%s7 + $0xc] sm:$0xf]
  %v1914 = vld [vmem:[%s7 + $0x10] sm:$0xf]
  %v1915 = vld [vmem:[%s7 + $0x14] sm:$0xf]
  %v1916 = vld [vmem:[%s7 + $0x18] sm:$0xf]
  %v1917 = vld [vmem:[%s7 + $0x1c] sm:$0xf]
  %v1926 = vunpack.c.l.b16 %v1910
  %v1927 = vunpack.c.l.b16 %v1911
  %v1928 = vunpack.c.l.b16 %v1912
  %v1929 = vunpack.c.l.b16 %v1913
  %v1930 = vunpack.c.l.b16 %v1914
  %v1931 = vunpack.c.l.b16 %v1915
  %v1932 = vunpack.c.l.b16 %v1916
  %v1933 = vunpack.c.l.b16 %v1917
  %v1934 = vpack.c.b16 %v1927, %v1926
  %v1935 = vpack.c.b16 %v1929, %v1928
  %v1936 = vpack.c.b16 %v1931, %v1930
  %v1937 = vpack.c.b16 %v1933, %v1932
  %v1943 = vsel %vm835, %v1878, 0
  %v1946 = vsel %vm835, %v1879, 0
  %v1949 = vsel %vm835, %v1880, 0
  %v1952 = vsel %vm835, %v1881, 0
  %v1955 = vsel %vm835, %v1882, 0
  %v1958 = vsel %vm835, %v1883, 0
  %v1961 = vsel %vm835, %v1884, 0
  %v1964 = vsel %vm835, %v1885, 0
  %v1967 = vsel %vm835, %v1886, 0
  %v1970 = vsel %vm835, %v1887, 0
  %v1973 = vsel %vm835, %v1888, 0
  %v1976 = vsel %vm835, %v1889, 0
  %v1979 = vsel %vm835, %v1890, 0
  %v1982 = vsel %vm835, %v1891, 0
  %v1985 = vsel %vm835, %v1892, 0
  %v1988 = vsel %vm835, %v1893, 0
  %v1991 = vsel %vm835, %v1894, 0
  %v1994 = vsel %vm835, %v1895, 0
  %v1997 = vsel %vm835, %v1896, 0
  %v2000 = vsel %vm835, %v1897, 0
  %v2003 = vsel %vm835, %v1898, 0
  %v2006 = vsel %vm835, %v1899, 0
  %v2009 = vsel %vm835, %v1900, 0
  %v2012 = vsel %vm835, %v1901, 0
  %v2015 = vsel %vm835, %v1902, 0
  %v2018 = vsel %vm835, %v1903, 0
  %v2021 = vsel %vm835, %v1904, 0
  %v2024 = vsel %vm835, %v1905, 0
  %v2027 = vsel %vm835, %v1906, 0
  %v2030 = vsel %vm835, %v1907, 0
  %v2033 = vsel %vm835, %v1908, 0
  %v2036 = vsel %vm835, %v1909, 0
  %2038 = vmatprep.subr.bf16.mxu0 0
  %2039 = vmatpush1.bf16.msra.mxu0 0
  %2040 = vmatprep.subr.bf16.mxu0 0
  %2041 = vmatpush1.bf16.msra.mxu0 0
  %2042 = vmatprep.subr.bf16.mxu0 0
  %2043 = vmatpush1.bf16.msra.mxu0 0
  %2044 = vmatprep.subr.bf16.mxu0 0
  %2045 = vmatpush1.bf16.msra.mxu0 0
  %2046 = vmatprep.subr.bf16.mxu0 0
  %2047 = vmatpush1.bf16.msra.mxu0 %v1937
  %2048 = vmatprep.subr.bf16.mxu0 0
  %2049 = vmatpush1.bf16.msra.mxu0 %v1936
  %2050 = vmatprep.subr.bf16.mxu0 0
  %2051 = vmatpush1.bf16.msra.mxu0 %v1935
  %2052 = vmatprep.subr.bf16.mxu0 0
  %2053 = vmatpush1.bf16.msra.mxu0 %v1934
  %2054 = vmatprep.subr.bf16.mxu0 0
  %2055 = vmatpush2.bf16.msra.mxu0 0
  %2056 = vmatprep.subr.bf16.mxu0 0
  %2057 = vmatpush2.bf16.msra.mxu0 0
  %2058 = vmatprep.subr.bf16.mxu0 0
  %2059 = vmatpush2.bf16.msra.mxu0 0
  %2060 = vmatprep.subr.bf16.mxu0 0
  %2061 = vmatpush2.bf16.msra.mxu0 0
  %2062 = vmatprep.subr.bf16.mxu0 0
  %2063 = vmatpush2.bf16.msra.mxu0 0
  %2064 = vmatprep.subr.bf16.mxu0 0
  %2065 = vmatpush2.bf16.msra.mxu0 0
  %2066 = vmatprep.subr.bf16.mxu0 0
  %2067 = vmatpush2.bf16.msra.mxu0 0
  %2068 = vmatprep.subr.bf16.mxu0 0
  %2069 = vmatpush2.bf16.msra.mxu0 0
  %2070 = vmatprep.mubr.bf16.mxu0 0
  %2071 = vmatmul.mubr.bf16.gmra.mxu0 %v1943
  %v2072 = vpop.f32.mrf.mxu0
  %v2073 = vadd.f32 0.0, %v2072
  %v2074 = vpop.f32.mrf.mxu0
  %v2075 = vpop.f32.mrf.mxu0
  %v2076 = vadd.f32 0.0, %v2075
  %v2077 = vpop.f32.mrf.mxu0
  %2078 = vmatprep.mubr.bf16.mxu0 0
  %2079 = vmatmul.mubr.bf16.gmra.mxu0 %v1946
  %v2080 = vpop.f32.mrf.mxu0
  %v2081 = vadd.f32 0.0, %v2080
  %v2082 = vpop.f32.mrf.mxu0
  %v2083 = vpop.f32.mrf.mxu0
  %v2084 = vadd.f32 0.0, %v2083
  %v2085 = vpop.f32.mrf.mxu0
  %2086 = vmatprep.mubr.bf16.mxu0 0
  %2087 = vmatmul.mubr.bf16.gmra.mxu0 %v1949
  %v2088 = vpop.f32.mrf.mxu0
  %v2089 = vadd.f32 0.0, %v2088
  %v2090 = vpop.f32.mrf.mxu0
  %v2091 = vpop.f32.mrf.mxu0
  %v2092 = vadd.f32 0.0, %v2091
  %v2093 = vpop.f32.mrf.mxu0
  %2094 = vmatprep.mubr.bf16.mxu0 0
  %2095 = vmatmul.mubr.bf16.gmra.mxu0 %v1952
  %v2096 = vpop.f32.mrf.mxu0
  %v2097 = vadd.f32 0.0, %v2096
  %v2098 = vpop.f32.mrf.mxu0
  %v2099 = vpop.f32.mrf.mxu0
  %v2100 = vadd.f32 0.0, %v2099
  %v2101 = vpop.f32.mrf.mxu0
  %2102 = vmatprep.mubr.bf16.mxu0 0
  %2103 = vmatmul.mubr.bf16.gmra.mxu0 %v1955
  %v2104 = vpop.f32.mrf.mxu0
  %v2105 = vadd.f32 0.0, %v2104
  %v2106 = vpop.f32.mrf.mxu0
  %v2107 = vpop.f32.mrf.mxu0
  %v2108 = vadd.f32 0.0, %v2107
  %v2109 = vpop.f32.mrf.mxu0
  %2110 = vmatprep.mubr.bf16.mxu0 0
  %2111 = vmatmul.mubr.bf16.gmra.mxu0 %v1958
  %v2112 = vpop.f32.mrf.mxu0
  %v2113 = vadd.f32 0.0, %v2112
  %v2114 = vpop.f32.mrf.mxu0
  %v2115 = vpop.f32.mrf.mxu0
  %v2116 = vadd.f32 0.0, %v2115
  %v2117 = vpop.f32.mrf.mxu0
  %2118 = vmatprep.mubr.bf16.mxu0 0
  %2119 = vmatmul.mubr.bf16.gmra.mxu0 %v1961
  %v2120 = vpop.f32.mrf.mxu0
  %v2121 = vadd.f32 0.0, %v2120
  %v2122 = vpop.f32.mrf.mxu0
  %v2123 = vpop.f32.mrf.mxu0
  %v2124 = vadd.f32 0.0, %v2123
  %v2125 = vpop.f32.mrf.mxu0
  %2126 = vmatprep.mubr.bf16.mxu0 0
  %2127 = vmatmul.mubr.bf16.gmra.mxu0 %v1964
  %v2128 = vpop.f32.mrf.mxu0
  %v2129 = vadd.f32 0.0, %v2128
  %v2130 = vpop.f32.mrf.mxu0
  %v2131 = vpop.f32.mrf.mxu0
  %v2132 = vadd.f32 0.0, %v2131
  %v2133 = vpop.f32.mrf.mxu0
  %2134 = vmatprep.mubr.bf16.mxu0 0
  %2135 = vmatmul.mubr.bf16.gmra.mxu0 %v1967
  %v2136 = vpop.f32.mrf.mxu0
  %v2137 = vadd.f32 0.0, %v2136
  %v2138 = vpop.f32.mrf.mxu0
  %v2139 = vpop.f32.mrf.mxu0
  %v2140 = vadd.f32 0.0, %v2139
  %v2141 = vpop.f32.mrf.mxu0
  %2142 = vmatprep.mubr.bf16.mxu0 0
  %2143 = vmatmul.mubr.bf16.gmra.mxu0 %v1970
  %v2144 = vpop.f32.mrf.mxu0
  %v2145 = vadd.f32 0.0, %v2144
  %v2146 = vpop.f32.mrf.mxu0
  %v2147 = vpop.f32.mrf.mxu0
  %v2148 = vadd.f32 0.0, %v2147
  %v2149 = vpop.f32.mrf.mxu0
  %2150 = vmatprep.mubr.bf16.mxu0 0
  %2151 = vmatmul.mubr.bf16.gmra.mxu0 %v1973
  %v2152 = vpop.f32.mrf.mxu0
  %v2153 = vadd.f32 0.0, %v2152
  %v2154 = vpop.f32.mrf.mxu0
  %v2155 = vpop.f32.mrf.mxu0
  %v2156 = vadd.f32 0.0, %v2155
  %v2157 = vpop.f32.mrf.mxu0
  %2158 = vmatprep.mubr.bf16.mxu0 0
  %2159 = vmatmul.mubr.bf16.gmra.mxu0 %v1976
  %v2160 = vpop.f32.mrf.mxu0
  %v2161 = vadd.f32 0.0, %v2160
  %v2162 = vpop.f32.mrf.mxu0
  %v2163 = vpop.f32.mrf.mxu0
  %v2164 = vadd.f32 0.0, %v2163
  %v2165 = vpop.f32.mrf.mxu0
  %2166 = vmatprep.mubr.bf16.mxu0 0
  %2167 = vmatmul.mubr.bf16.gmra.mxu0 %v1979
  %v2168 = vpop.f32.mrf.mxu0
  %v2169 = vadd.f32 0.0, %v2168
  %v2170 = vpop.f32.mrf.mxu0
  %v2171 = vpop.f32.mrf.mxu0
  %v2172 = vadd.f32 0.0, %v2171
  %v2173 = vpop.f32.mrf.mxu0
  %2174 = vmatprep.mubr.bf16.mxu0 0
  %2175 = vmatmul.mubr.bf16.gmra.mxu0 %v1982
  %v2176 = vpop.f32.mrf.mxu0
  %v2177 = vadd.f32 0.0, %v2176
  %v2178 = vpop.f32.mrf.mxu0
  %v2179 = vpop.f32.mrf.mxu0
  %v2180 = vadd.f32 0.0, %v2179
  %v2181 = vpop.f32.mrf.mxu0
  %2182 = vmatprep.mubr.bf16.mxu0 0
  %2183 = vmatmul.mubr.bf16.gmra.mxu0 %v1985
  %v2184 = vpop.f32.mrf.mxu0
  %v2185 = vadd.f32 0.0, %v2184
  %v2186 = vpop.f32.mrf.mxu0
  %v2187 = vpop.f32.mrf.mxu0
  %v2188 = vadd.f32 0.0, %v2187
  %v2189 = vpop.f32.mrf.mxu0
  %2190 = vmatprep.mubr.bf16.mxu0 0
  %2191 = vmatmul.mubr.bf16.gmra.mxu0 %v1988
  %v2192 = vpop.f32.mrf.mxu0
  %v2193 = vadd.f32 0.0, %v2192
  %v2194 = vpop.f32.mrf.mxu0
  %v2195 = vpop.f32.mrf.mxu0
  %v2196 = vadd.f32 0.0, %v2195
  %v2197 = vpop.f32.mrf.mxu0
  %2198 = vmatprep.mubr.bf16.mxu0 0
  %2199 = vmatmul.mubr.bf16.gmra.mxu0 %v1991
  %v2200 = vpop.f32.mrf.mxu0
  %v2201 = vadd.f32 0.0, %v2200
  %v2202 = vpop.f32.mrf.mxu0
  %v2203 = vpop.f32.mrf.mxu0
  %v2204 = vadd.f32 0.0, %v2203
  %v2205 = vpop.f32.mrf.mxu0
  %2206 = vmatprep.mubr.bf16.mxu0 0
  %2207 = vmatmul.mubr.bf16.gmra.mxu0 %v1994
  %v2208 = vpop.f32.mrf.mxu0
  %v2209 = vadd.f32 0.0, %v2208
  %v2210 = vpop.f32.mrf.mxu0
  %v2211 = vpop.f32.mrf.mxu0
  %v2212 = vadd.f32 0.0, %v2211
  %v2213 = vpop.f32.mrf.mxu0
  %2214 = vmatprep.mubr.bf16.mxu0 0
  %2215 = vmatmul.mubr.bf16.gmra.mxu0 %v1997
  %v2216 = vpop.f32.mrf.mxu0
  %v2217 = vadd.f32 0.0, %v2216
  %v2218 = vpop.f32.mrf.mxu0
  %v2219 = vpop.f32.mrf.mxu0
  %v2220 = vadd.f32 0.0, %v2219
  %v2221 = vpop.f32.mrf.mxu0
  %2222 = vmatprep.mubr.bf16.mxu0 0
  %2223 = vmatmul.mubr.bf16.gmra.mxu0 %v2000
  %v2224 = vpop.f32.mrf.mxu0
  %v2225 = vadd.f32 0.0, %v2224
  %v2226 = vpop.f32.mrf.mxu0
  %v2227 = vpop.f32.mrf.mxu0
  %v2228 = vadd.f32 0.0, %v2227
  %v2229 = vpop.f32.mrf.mxu0
  %2230 = vmatprep.mubr.bf16.mxu0 0
  %2231 = vmatmul.mubr.bf16.gmra.mxu0 %v2003
  %v2232 = vpop.f32.mrf.mxu0
  %v2233 = vadd.f32 0.0, %v2232
  %v2234 = vpop.f32.mrf.mxu0
  %v2235 = vpop.f32.mrf.mxu0
  %v2236 = vadd.f32 0.0, %v2235
  %v2237 = vpop.f32.mrf.mxu0
  %2238 = vmatprep.mubr.bf16.mxu0 0
  %2239 = vmatmul.mubr.bf16.gmra.mxu0 %v2006
  %v2240 = vpop.f32.mrf.mxu0
  %v2241 = vadd.f32 0.0, %v2240
  %v2242 = vpop.f32.mrf.mxu0
  %v2243 = vpop.f32.mrf.mxu0
  %v2244 = vadd.f32 0.0, %v2243
  %v2245 = vpop.f32.mrf.mxu0
  %2246 = vmatprep.mubr.bf16.mxu0 0
  %2247 = vmatmul.mubr.bf16.gmra.mxu0 %v2009
  %v2248 = vpop.f32.mrf.mxu0
  %v2249 = vadd.f32 0.0, %v2248
  %v2250 = vpop.f32.mrf.mxu0
  %v2251 = vpop.f32.mrf.mxu0
  %v2252 = vadd.f32 0.0, %v2251
  %v2253 = vpop.f32.mrf.mxu0
  %2254 = vmatprep.mubr.bf16.mxu0 0
  %2255 = vmatmul.mubr.bf16.gmra.mxu0 %v2012
  %v2256 = vpop.f32.mrf.mxu0
  %v2257 = vadd.f32 0.0, %v2256
  %v2258 = vpop.f32.mrf.mxu0
  %v2259 = vpop.f32.mrf.mxu0
  %v2260 = vadd.f32 0.0, %v2259
  %v2261 = vpop.f32.mrf.mxu0
  %2262 = vmatprep.mubr.bf16.mxu0 0
  %2263 = vmatmul.mubr.bf16.gmra.mxu0 %v2015
  %v2264 = vpop.f32.mrf.mxu0
  %v2265 = vadd.f32 0.0, %v2264
  %v2266 = vpop.f32.mrf.mxu0
  %v2267 = vpop.f32.mrf.mxu0
  %v2268 = vadd.f32 0.0, %v2267
  %v2269 = vpop.f32.mrf.mxu0
  %2270 = vmatprep.mubr.bf16.mxu0 0
  %2271 = vmatmul.mubr.bf16.gmra.mxu0 %v2018
  %v2272 = vpop.f32.mrf.mxu0
  %v2273 = vadd.f32 0.0, %v2272
  %v2274 = vpop.f32.mrf.mxu0
  %v2275 = vpop.f32.mrf.mxu0
  %v2276 = vadd.f32 0.0, %v2275
  %v2277 = vpop.f32.mrf.mxu0
  %2278 = vmatprep.mubr.bf16.mxu0 0
  %2279 = vmatmul.mubr.bf16.gmra.mxu0 %v2021
  %v2280 = vpop.f32.mrf.mxu0
  %v2281 = vadd.f32 0.0, %v2280
  %v2282 = vpop.f32.mrf.mxu0
  %v2283 = vpop.f32.mrf.mxu0
  %v2284 = vadd.f32 0.0, %v2283
  %v2285 = vpop.f32.mrf.mxu0
  %2286 = vmatprep.mubr.bf16.mxu0 0
  %2287 = vmatmul.mubr.bf16.gmra.mxu0 %v2024
  %v2288 = vpop.f32.mrf.mxu0
  %v2289 = vadd.f32 0.0, %v2288
  %v2290 = vpop.f32.mrf.mxu0
  %v2291 = vpop.f32.mrf.mxu0
  %v2292 = vadd.f32 0.0, %v2291
  %v2293 = vpop.f32.mrf.mxu0
  %2294 = vmatprep.mubr.bf16.mxu0 0
  %2295 = vmatmul.mubr.bf16.gmra.mxu0 %v2027
  %v2296 = vpop.f32.mrf.mxu0
  %v2297 = vadd.f32 0.0, %v2296
  %v2298 = vpop.f32.mrf.mxu0
  %v2299 = vpop.f32.mrf.mxu0
  %v2300 = vadd.f32 0.0, %v2299
  %v2301 = vpop.f32.mrf.mxu0
  %2302 = vmatprep.mubr.bf16.mxu0 0
  %2303 = vmatmul.mubr.bf16.gmra.mxu0 %v2030
  %v2304 = vpop.f32.mrf.mxu0
  %v2305 = vadd.f32 0.0, %v2304
  %v2306 = vpop.f32.mrf.mxu0
  %v2307 = vpop.f32.mrf.mxu0
  %v2308 = vadd.f32 0.0, %v2307
  %v2309 = vpop.f32.mrf.mxu0
  %2310 = vmatprep.mubr.bf16.mxu0 0
  %2311 = vmatmul.mubr.bf16.gmra.mxu0 %v2033
  %v2312 = vpop.f32.mrf.mxu0
  %v2313 = vadd.f32 0.0, %v2312
  %v2314 = vpop.f32.mrf.mxu0
  %v2315 = vpop.f32.mrf.mxu0
  %v2316 = vadd.f32 0.0, %v2315
  %v2317 = vpop.f32.mrf.mxu0
  %2318 = vmatprep.mubr.bf16.mxu0 0
  %2319 = vmatmul.mubr.bf16.gmra.mxu0 %v2036
  %v2320 = vpop.f32.mrf.mxu0
  %v2321 = vadd.f32 0.0, %v2320
  %v2322 = vpop.f32.mrf.mxu0
  %v2323 = vpop.f32.mrf.mxu0
  %v2324 = vadd.f32 0.0, %v2323
  %v2325 = vpop.f32.mrf.mxu0
  %2326 = vdwg.mxu0
  %v2327 = vpack.c.bf16 %v2076, %v2073
  %v2328 = vpack.c.bf16 %v2084, %v2081
  %v2329 = vpack.c.bf16 %v2092, %v2089
  %v2330 = vpack.c.bf16 %v2100, %v2097
  %v2331 = vpack.c.bf16 %v2108, %v2105
  %v2332 = vpack.c.bf16 %v2116, %v2113
  %v2333 = vpack.c.bf16 %v2124, %v2121
  %v2334 = vpack.c.bf16 %v2132, %v2129
  %v2335 = vpack.c.bf16 %v2140, %v2137
  %v2336 = vpack.c.bf16 %v2148, %v2145
  %v2337 = vpack.c.bf16 %v2156, %v2153
  %v2338 = vpack.c.bf16 %v2164, %v2161
  %v2339 = vpack.c.bf16 %v2172, %v2169
  %v2340 = vpack.c.bf16 %v2180, %v2177
  %v2341 = vpack.c.bf16 %v2188, %v2185
  %v2342 = vpack.c.bf16 %v2196, %v2193
  %v2343 = vpack.c.bf16 %v2204, %v2201
  %v2344 = vpack.c.bf16 %v2212, %v2209
  %v2345 = vpack.c.bf16 %v2220, %v2217
  %v2346 = vpack.c.bf16 %v2228, %v2225
  %v2347 = vpack.c.bf16 %v2236, %v2233
  %v2348 = vpack.c.bf16 %v2244, %v2241
  %v2349 = vpack.c.bf16 %v2252, %v2249
  %v2350 = vpack.c.bf16 %v2260, %v2257
  %v2351 = vpack.c.bf16 %v2268, %v2265
  %v2352 = vpack.c.bf16 %v2276, %v2273
  %v2353 = vpack.c.bf16 %v2284, %v2281
  %v2354 = vpack.c.bf16 %v2292, %v2289
  %v2355 = vpack.c.bf16 %v2300, %v2297
  %v2356 = vpack.c.bf16 %v2308, %v2305
  %v2357 = vpack.c.bf16 %v2316, %v2313
  %v2358 = vpack.c.bf16 %v2324, %v2321
  %v2359 = vld [vmem:[%s8] sm:$0x1]
  %v2361 = vpack.i.b16 %v2359, %v2359
  %v2363 = vlaneseq
  %v2364 = vshrl.u32 %v2363, 7
  %v2365 = vsub.s32 0, %v2364
  %v2366 = vrot.slane %v2361, %v2365
  %v2367 = vadd.bf16 %v2327, %v2366
  %v2368 = vadd.bf16 %v2328, %v2366
  %v2369 = vadd.bf16 %v2329, %v2366
  %v2370 = vadd.bf16 %v2330, %v2366
  %v2371 = vadd.bf16 %v2331, %v2366
  %v2372 = vadd.bf16 %v2332, %v2366
  %v2373 = vadd.bf16 %v2333, %v2366
  %v2374 = vadd.bf16 %v2334, %v2366
  %v2375 = vadd.bf16 %v2335, %v2366
  %v2376 = vadd.bf16 %v2336, %v2366
  %v2377 = vadd.bf16 %v2337, %v2366
  %v2378 = vadd.bf16 %v2338, %v2366
  %v2379 = vadd.bf16 %v2339, %v2366
  %v2380 = vadd.bf16 %v2340, %v2366
  %v2381 = vadd.bf16 %v2341, %v2366
  %v2382 = vadd.bf16 %v2342, %v2366
  %v2383 = vadd.bf16 %v2343, %v2366
  %v2384 = vadd.bf16 %v2344, %v2366
  %v2385 = vadd.bf16 %v2345, %v2366
  %v2386 = vadd.bf16 %v2346, %v2366
  %v2387 = vadd.bf16 %v2347, %v2366
  %v2388 = vadd.bf16 %v2348, %v2366
  %v2389 = vadd.bf16 %v2349, %v2366
  %v2390 = vadd.bf16 %v2350, %v2366
  %v2391 = vadd.bf16 %v2351, %v2366
  %v2392 = vadd.bf16 %v2352, %v2366
  %v2393 = vadd.bf16 %v2353, %v2366
  %v2394 = vadd.bf16 %v2354, %v2366
  %v2395 = vadd.bf16 %v2355, %v2366
  %v2396 = vadd.bf16 %v2356, %v2366
  %v2397 = vadd.bf16 %v2357, %v2366
  %v2398 = vadd.bf16 %v2358, %v2366
  %v2399 = vmul.bf16 %v2367, 1009007652
  %v2400 = vmul.bf16 %v2368, 1009007652
  %v2401 = vmul.bf16 %v2369, 1009007652
  %v2402 = vmul.bf16 %v2370, 1009007652
  %v2403 = vmul.bf16 %v2371, 1009007652
  %v2404 = vmul.bf16 %v2372, 1009007652
  %v2405 = vmul.bf16 %v2373, 1009007652
  %v2406 = vmul.bf16 %v2374, 1009007652
  %v2407 = vmul.bf16 %v2375, 1009007652
  %v2408 = vmul.bf16 %v2376, 1009007652
  %v2409 = vmul.bf16 %v2377, 1009007652
  %v2410 = vmul.bf16 %v2378, 1009007652
  %v2411 = vmul.bf16 %v2379, 1009007652
  %v2412 = vmul.bf16 %v2380, 1009007652
  %v2413 = vmul.bf16 %v2381, 1009007652
  %v2414 = vmul.bf16 %v2382, 1009007652
  %v2415 = vmul.bf16 %v2383, 1009007652
  %v2416 = vmul.bf16 %v2384, 1009007652
  %v2417 = vmul.bf16 %v2385, 1009007652
  %v2418 = vmul.bf16 %v2386, 1009007652
  %v2419 = vmul.bf16 %v2387, 1009007652
  %v2420 = vmul.bf16 %v2388, 1009007652
  %v2421 = vmul.bf16 %v2389, 1009007652
  %v2422 = vmul.bf16 %v2390, 1009007652
  %v2423 = vmul.bf16 %v2391, 1009007652
  %v2424 = vmul.bf16 %v2392, 1009007652
  %v2425 = vmul.bf16 %v2393, 1009007652
  %v2426 = vmul.bf16 %v2394, 1009007652
  %v2427 = vmul.bf16 %v2395, 1009007652
  %v2428 = vmul.bf16 %v2396, 1009007652
  %v2429 = vmul.bf16 %v2397, 1009007652
  %v2430 = vmul.bf16 %v2398, 1009007652
  %v2431 = vmax.bf16 %v2367, %v2399
  %v2432 = vmax.bf16 %v2368, %v2400
  %v2433 = vmax.bf16 %v2369, %v2401
  %v2434 = vmax.bf16 %v2370, %v2402
  %v2435 = vmax.bf16 %v2371, %v2403
  %v2436 = vmax.bf16 %v2372, %v2404
  %v2437 = vmax.bf16 %v2373, %v2405
  %v2438 = vmax.bf16 %v2374, %v2406
  %v2439 = vmax.bf16 %v2375, %v2407
  %v2440 = vmax.bf16 %v2376, %v2408
  %v2441 = vmax.bf16 %v2377, %v2409
  %v2442 = vmax.bf16 %v2378, %v2410
  %v2443 = vmax.bf16 %v2379, %v2411
  %v2444 = vmax.bf16 %v2380, %v2412
  %v2445 = vmax.bf16 %v2381, %v2413
  %v2446 = vmax.bf16 %v2382, %v2414
  %v2447 = vmax.bf16 %v2383, %v2415
  %v2448 = vmax.bf16 %v2384, %v2416
  %v2449 = vmax.bf16 %v2385, %v2417
  %v2450 = vmax.bf16 %v2386, %v2418
  %v2451 = vmax.bf16 %v2387, %v2419
  %v2452 = vmax.bf16 %v2388, %v2420
  %v2453 = vmax.bf16 %v2389, %v2421
  %v2454 = vmax.bf16 %v2390, %v2422
  %v2455 = vmax.bf16 %v2391, %v2423
  %v2456 = vmax.bf16 %v2392, %v2424
  %v2457 = vmax.bf16 %v2393, %v2425
  %v2458 = vmax.bf16 %v2394, %v2426
  %v2459 = vmax.bf16 %v2395, %v2427
  %v2460 = vmax.bf16 %v2396, %v2428
  %v2461 = vmax.bf16 %v2397, %v2429
  %v2462 = vmax.bf16 %v2398, %v2430
  %v2463 = vld [vmem:[%s9] sm:$0xf]
  %v2464 = vld [vmem:[%s9 + $0x4] sm:$0xf]
  %v2465 = vld [vmem:[%s9 + $0x8] sm:$0xf]
  %v2466 = vld [vmem:[%s9 + $0xc] sm:$0xf]
  %v2467 = vld [vmem:[%s9 + $0x10] sm:$0xf]
  %v2468 = vld [vmem:[%s9 + $0x14] sm:$0xf]
  %v2469 = vld [vmem:[%s9 + $0x18] sm:$0xf]
  %v2470 = vld [vmem:[%s9 + $0x1c] sm:$0xf]
  %v2471 = vld [vmem:[%s10] sm:$0x1]
  %v2473 = vlaneseq
  %v2474 = vshrl.u32 %v2473, 7
  %v2475 = vsub.s32 0, %v2474
  %v2476 = vrot.slane %v2471, %v2475
  %v2486 = vunpack.c.l.b16 %v2463
  %v2487 = vunpack.c.l.b16 %v2464
  %v2488 = vunpack.c.l.b16 %v2465
  %v2489 = vunpack.c.l.b16 %v2466
  %v2490 = vunpack.c.l.b16 %v2467
  %v2491 = vunpack.c.l.b16 %v2468
  %v2492 = vunpack.c.l.b16 %v2469
  %v2493 = vunpack.c.l.b16 %v2470
  %v2494 = vpack.c.b16 %v2487, %v2486
  %v2495 = vpack.c.b16 %v2489, %v2488
  %v2496 = vpack.c.b16 %v2491, %v2490
  %v2497 = vpack.c.b16 %v2493, %v2492
  %v2503 = vsel %vm835, %v2431, 0
  %v2506 = vsel %vm835, %v2432, 0
  %v2509 = vsel %vm835, %v2433, 0
  %v2512 = vsel %vm835, %v2434, 0
  %v2515 = vsel %vm835, %v2435, 0
  %v2518 = vsel %vm835, %v2436, 0
  %v2521 = vsel %vm835, %v2437, 0
  %v2524 = vsel %vm835, %v2438, 0
  %v2527 = vsel %vm835, %v2439, 0
  %v2530 = vsel %vm835, %v2440, 0
  %v2533 = vsel %vm835, %v2441, 0
  %v2536 = vsel %vm835, %v2442, 0
  %v2539 = vsel %vm835, %v2443, 0
  %v2542 = vsel %vm835, %v2444, 0
  %v2545 = vsel %vm835, %v2445, 0
  %v2548 = vsel %vm835, %v2446, 0
  %v2551 = vsel %vm835, %v2447, 0
  %v2554 = vsel %vm835, %v2448, 0
  %v2557 = vsel %vm835, %v2449, 0
  %v2560 = vsel %vm835, %v2450, 0
  %v2563 = vsel %vm835, %v2451, 0
  %v2566 = vsel %vm835, %v2452, 0
  %v2569 = vsel %vm835, %v2453, 0
  %v2572 = vsel %vm835, %v2454, 0
  %v2575 = vsel %vm835, %v2455, 0
  %v2578 = vsel %vm835, %v2456, 0
  %v2581 = vsel %vm835, %v2457, 0
  %v2584 = vsel %vm835, %v2458, 0
  %v2587 = vsel %vm835, %v2459, 0
  %v2590 = vsel %vm835, %v2460, 0
  %v2593 = vsel %vm835, %v2461, 0
  %v2596 = vsel %vm835, %v2462, 0
  %2598 = vmatprep.subr.bf16.mxu0 0
  %2599 = vmatpush1.bf16.msra.mxu0 0
  %2600 = vmatprep.subr.bf16.mxu0 0
  %2601 = vmatpush1.bf16.msra.mxu0 0
  %2602 = vmatprep.subr.bf16.mxu0 0
  %2603 = vmatpush1.bf16.msra.mxu0 0
  %2604 = vmatprep.subr.bf16.mxu0 0
  %2605 = vmatpush1.bf16.msra.mxu0 0
  %2606 = vmatprep.subr.bf16.mxu0 0
  %2607 = vmatpush1.bf16.msra.mxu0 %v2497
  %2608 = vmatprep.subr.bf16.mxu0 0
  %2609 = vmatpush1.bf16.msra.mxu0 %v2496
  %2610 = vmatprep.subr.bf16.mxu0 0
  %2611 = vmatpush1.bf16.msra.mxu0 %v2495
  %2612 = vmatprep.subr.bf16.mxu0 0
  %2613 = vmatpush1.bf16.msra.mxu0 %v2494
  %2614 = vmatprep.subr.bf16.mxu0 0
  %2615 = vmatpush2.bf16.msra.mxu0 0
  %2616 = vmatprep.subr.bf16.mxu0 0
  %2617 = vmatpush2.bf16.msra.mxu0 0
  %2618 = vmatprep.subr.bf16.mxu0 0
  %2619 = vmatpush2.bf16.msra.mxu0 0
  %2620 = vmatprep.subr.bf16.mxu0 0
  %2621 = vmatpush2.bf16.msra.mxu0 0
  %2622 = vmatprep.subr.bf16.mxu0 0
  %2623 = vmatpush2.bf16.msra.mxu0 0
  %2624 = vmatprep.subr.bf16.mxu0 0
  %2625 = vmatpush2.bf16.msra.mxu0 0
  %2626 = vmatprep.subr.bf16.mxu0 0
  %2627 = vmatpush2.bf16.msra.mxu0 0
  %2628 = vmatprep.subr.bf16.mxu0 0
  %2629 = vmatpush2.bf16.msra.mxu0 0
  %2630 = vmatprep.mubr.bf16.mxu0 0
  %2631 = vmatmul.mubr.bf16.gmra.mxu0 %v2503
  %v2632 = vpop.f32.mrf.mxu0
  %v2633 = vadd.f32 %v2476, %v2632
  %v2634 = vpop.f32.mrf.mxu0
  %v2635 = vpop.f32.mrf.mxu0
  %v2636 = vadd.f32 %v2476, %v2635
  %v2637 = vpop.f32.mrf.mxu0
  %2638 = vmatprep.mubr.bf16.mxu0 0
  %2639 = vmatmul.mubr.bf16.gmra.mxu0 %v2506
  %v2640 = vpop.f32.mrf.mxu0
  %v2641 = vadd.f32 %v2476, %v2640
  %v2642 = vpop.f32.mrf.mxu0
  %v2643 = vpop.f32.mrf.mxu0
  %v2644 = vadd.f32 %v2476, %v2643
  %v2645 = vpop.f32.mrf.mxu0
  %2646 = vmatprep.mubr.bf16.mxu0 0
  %2647 = vmatmul.mubr.bf16.gmra.mxu0 %v2509
  %v2648 = vpop.f32.mrf.mxu0
  %v2649 = vadd.f32 %v2476, %v2648
  %v2650 = vpop.f32.mrf.mxu0
  %v2651 = vpop.f32.mrf.mxu0
  %v2652 = vadd.f32 %v2476, %v2651
  %v2653 = vpop.f32.mrf.mxu0
  %2654 = vmatprep.mubr.bf16.mxu0 0
  %2655 = vmatmul.mubr.bf16.gmra.mxu0 %v2512
  %v2656 = vpop.f32.mrf.mxu0
  %v2657 = vadd.f32 %v2476, %v2656
  %v2658 = vpop.f32.mrf.mxu0
  %v2659 = vpop.f32.mrf.mxu0
  %v2660 = vadd.f32 %v2476, %v2659
  %v2661 = vpop.f32.mrf.mxu0
  %2662 = vmatprep.mubr.bf16.mxu0 0
  %2663 = vmatmul.mubr.bf16.gmra.mxu0 %v2515
  %v2664 = vpop.f32.mrf.mxu0
  %v2665 = vadd.f32 %v2476, %v2664
  %v2666 = vpop.f32.mrf.mxu0
  %v2667 = vpop.f32.mrf.mxu0
  %v2668 = vadd.f32 %v2476, %v2667
  %v2669 = vpop.f32.mrf.mxu0
  %2670 = vmatprep.mubr.bf16.mxu0 0
  %2671 = vmatmul.mubr.bf16.gmra.mxu0 %v2518
  %v2672 = vpop.f32.mrf.mxu0
  %v2673 = vadd.f32 %v2476, %v2672
  %v2674 = vpop.f32.mrf.mxu0
  %v2675 = vpop.f32.mrf.mxu0
  %v2676 = vadd.f32 %v2476, %v2675
  %v2677 = vpop.f32.mrf.mxu0
  %2678 = vmatprep.mubr.bf16.mxu0 0
  %2679 = vmatmul.mubr.bf16.gmra.mxu0 %v2521
  %v2680 = vpop.f32.mrf.mxu0
  %v2681 = vadd.f32 %v2476, %v2680
  %v2682 = vpop.f32.mrf.mxu0
  %v2683 = vpop.f32.mrf.mxu0
  %v2684 = vadd.f32 %v2476, %v2683
  %v2685 = vpop.f32.mrf.mxu0
  %2686 = vmatprep.mubr.bf16.mxu0 0
  %2687 = vmatmul.mubr.bf16.gmra.mxu0 %v2524
  %v2688 = vpop.f32.mrf.mxu0
  %v2689 = vadd.f32 %v2476, %v2688
  %v2690 = vpop.f32.mrf.mxu0
  %v2691 = vpop.f32.mrf.mxu0
  %v2692 = vadd.f32 %v2476, %v2691
  %v2693 = vpop.f32.mrf.mxu0
  %2694 = vmatprep.mubr.bf16.mxu0 0
  %2695 = vmatmul.mubr.bf16.gmra.mxu0 %v2527
  %v2696 = vpop.f32.mrf.mxu0
  %v2697 = vadd.f32 %v2476, %v2696
  %v2698 = vpop.f32.mrf.mxu0
  %v2699 = vpop.f32.mrf.mxu0
  %v2700 = vadd.f32 %v2476, %v2699
  %v2701 = vpop.f32.mrf.mxu0
  %2702 = vmatprep.mubr.bf16.mxu0 0
  %2703 = vmatmul.mubr.bf16.gmra.mxu0 %v2530
  %v2704 = vpop.f32.mrf.mxu0
  %v2705 = vadd.f32 %v2476, %v2704
  %v2706 = vpop.f32.mrf.mxu0
  %v2707 = vpop.f32.mrf.mxu0
  %v2708 = vadd.f32 %v2476, %v2707
  %v2709 = vpop.f32.mrf.mxu0
  %2710 = vmatprep.mubr.bf16.mxu0 0
  %2711 = vmatmul.mubr.bf16.gmra.mxu0 %v2533
  %v2712 = vpop.f32.mrf.mxu0
  %v2713 = vadd.f32 %v2476, %v2712
  %v2714 = vpop.f32.mrf.mxu0
  %v2715 = vpop.f32.mrf.mxu0
  %v2716 = vadd.f32 %v2476, %v2715
  %v2717 = vpop.f32.mrf.mxu0
  %2718 = vmatprep.mubr.bf16.mxu0 0
  %2719 = vmatmul.mubr.bf16.gmra.mxu0 %v2536
  %v2720 = vpop.f32.mrf.mxu0
  %v2721 = vadd.f32 %v2476, %v2720
  %v2722 = vpop.f32.mrf.mxu0
  %v2723 = vpop.f32.mrf.mxu0
  %v2724 = vadd.f32 %v2476, %v2723
  %v2725 = vpop.f32.mrf.mxu0
  %2726 = vmatprep.mubr.bf16.mxu0 0
  %2727 = vmatmul.mubr.bf16.gmra.mxu0 %v2539
  %v2728 = vpop.f32.mrf.mxu0
  %v2729 = vadd.f32 %v2476, %v2728
  %v2730 = vpop.f32.mrf.mxu0
  %v2731 = vpop.f32.mrf.mxu0
  %v2732 = vadd.f32 %v2476, %v2731
  %v2733 = vpop.f32.mrf.mxu0
  %2734 = vmatprep.mubr.bf16.mxu0 0
  %2735 = vmatmul.mubr.bf16.gmra.mxu0 %v2542
  %v2736 = vpop.f32.mrf.mxu0
  %v2737 = vadd.f32 %v2476, %v2736
  %v2738 = vpop.f32.mrf.mxu0
  %v2739 = vpop.f32.mrf.mxu0
  %v2740 = vadd.f32 %v2476, %v2739
  %v2741 = vpop.f32.mrf.mxu0
  %2742 = vmatprep.mubr.bf16.mxu0 0
  %2743 = vmatmul.mubr.bf16.gmra.mxu0 %v2545
  %v2744 = vpop.f32.mrf.mxu0
  %v2745 = vadd.f32 %v2476, %v2744
  %v2746 = vpop.f32.mrf.mxu0
  %v2747 = vpop.f32.mrf.mxu0
  %v2748 = vadd.f32 %v2476, %v2747
  %v2749 = vpop.f32.mrf.mxu0
  %2750 = vmatprep.mubr.bf16.mxu0 0
  %2751 = vmatmul.mubr.bf16.gmra.mxu0 %v2548
  %v2752 = vpop.f32.mrf.mxu0
  %v2753 = vadd.f32 %v2476, %v2752
  %v2754 = vpop.f32.mrf.mxu0
  %v2755 = vpop.f32.mrf.mxu0
  %v2756 = vadd.f32 %v2476, %v2755
  %v2757 = vpop.f32.mrf.mxu0
  %2758 = vmatprep.mubr.bf16.mxu0 0
  %2759 = vmatmul.mubr.bf16.gmra.mxu0 %v2551
  %v2760 = vpop.f32.mrf.mxu0
  %v2761 = vadd.f32 %v2476, %v2760
  %v2762 = vpop.f32.mrf.mxu0
  %v2763 = vpop.f32.mrf.mxu0
  %v2764 = vadd.f32 %v2476, %v2763
  %v2765 = vpop.f32.mrf.mxu0
  %2766 = vmatprep.mubr.bf16.mxu0 0
  %2767 = vmatmul.mubr.bf16.gmra.mxu0 %v2554
  %v2768 = vpop.f32.mrf.mxu0
  %v2769 = vadd.f32 %v2476, %v2768
  %v2770 = vpop.f32.mrf.mxu0
  %v2771 = vpop.f32.mrf.mxu0
  %v2772 = vadd.f32 %v2476, %v2771
  %v2773 = vpop.f32.mrf.mxu0
  %2774 = vmatprep.mubr.bf16.mxu0 0
  %2775 = vmatmul.mubr.bf16.gmra.mxu0 %v2557
  %v2776 = vpop.f32.mrf.mxu0
  %v2777 = vadd.f32 %v2476, %v2776
  %v2778 = vpop.f32.mrf.mxu0
  %v2779 = vpop.f32.mrf.mxu0
  %v2780 = vadd.f32 %v2476, %v2779
  %v2781 = vpop.f32.mrf.mxu0
  %2782 = vmatprep.mubr.bf16.mxu0 0
  %2783 = vmatmul.mubr.bf16.gmra.mxu0 %v2560
  %v2784 = vpop.f32.mrf.mxu0
  %v2785 = vadd.f32 %v2476, %v2784
  %v2786 = vpop.f32.mrf.mxu0
  %v2787 = vpop.f32.mrf.mxu0
  %v2788 = vadd.f32 %v2476, %v2787
  %v2789 = vpop.f32.mrf.mxu0
  %2790 = vmatprep.mubr.bf16.mxu0 0
  %2791 = vmatmul.mubr.bf16.gmra.mxu0 %v2563
  %v2792 = vpop.f32.mrf.mxu0
  %v2793 = vadd.f32 %v2476, %v2792
  %v2794 = vpop.f32.mrf.mxu0
  %v2795 = vpop.f32.mrf.mxu0
  %v2796 = vadd.f32 %v2476, %v2795
  %v2797 = vpop.f32.mrf.mxu0
  %2798 = vmatprep.mubr.bf16.mxu0 0
  %2799 = vmatmul.mubr.bf16.gmra.mxu0 %v2566
  %v2800 = vpop.f32.mrf.mxu0
  %v2801 = vadd.f32 %v2476, %v2800
  %v2802 = vpop.f32.mrf.mxu0
  %v2803 = vpop.f32.mrf.mxu0
  %v2804 = vadd.f32 %v2476, %v2803
  %v2805 = vpop.f32.mrf.mxu0
  %2806 = vmatprep.mubr.bf16.mxu0 0
  %2807 = vmatmul.mubr.bf16.gmra.mxu0 %v2569
  %v2808 = vpop.f32.mrf.mxu0
  %v2809 = vadd.f32 %v2476, %v2808
  %v2810 = vpop.f32.mrf.mxu0
  %v2811 = vpop.f32.mrf.mxu0
  %v2812 = vadd.f32 %v2476, %v2811
  %v2813 = vpop.f32.mrf.mxu0
  %2814 = vmatprep.mubr.bf16.mxu0 0
  %2815 = vmatmul.mubr.bf16.gmra.mxu0 %v2572
  %v2816 = vpop.f32.mrf.mxu0
  %v2817 = vadd.f32 %v2476, %v2816
  %v2818 = vpop.f32.mrf.mxu0
  %v2819 = vpop.f32.mrf.mxu0
  %v2820 = vadd.f32 %v2476, %v2819
  %v2821 = vpop.f32.mrf.mxu0
  %2822 = vmatprep.mubr.bf16.mxu0 0
  %2823 = vmatmul.mubr.bf16.gmra.mxu0 %v2575
  %v2824 = vpop.f32.mrf.mxu0
  %v2825 = vadd.f32 %v2476, %v2824
  %v2826 = vpop.f32.mrf.mxu0
  %v2827 = vpop.f32.mrf.mxu0
  %v2828 = vadd.f32 %v2476, %v2827
  %v2829 = vpop.f32.mrf.mxu0
  %2830 = vmatprep.mubr.bf16.mxu0 0
  %2831 = vmatmul.mubr.bf16.gmra.mxu0 %v2578
  %v2832 = vpop.f32.mrf.mxu0
  %v2833 = vadd.f32 %v2476, %v2832
  %v2834 = vpop.f32.mrf.mxu0
  %v2835 = vpop.f32.mrf.mxu0
  %v2836 = vadd.f32 %v2476, %v2835
  %v2837 = vpop.f32.mrf.mxu0
  %2838 = vmatprep.mubr.bf16.mxu0 0
  %2839 = vmatmul.mubr.bf16.gmra.mxu0 %v2581
  %v2840 = vpop.f32.mrf.mxu0
  %v2841 = vadd.f32 %v2476, %v2840
  %v2842 = vpop.f32.mrf.mxu0
  %v2843 = vpop.f32.mrf.mxu0
  %v2844 = vadd.f32 %v2476, %v2843
  %v2845 = vpop.f32.mrf.mxu0
  %2846 = vmatprep.mubr.bf16.mxu0 0
  %2847 = vmatmul.mubr.bf16.gmra.mxu0 %v2584
  %v2848 = vpop.f32.mrf.mxu0
  %v2849 = vadd.f32 %v2476, %v2848
  %v2850 = vpop.f32.mrf.mxu0
  %v2851 = vpop.f32.mrf.mxu0
  %v2852 = vadd.f32 %v2476, %v2851
  %v2853 = vpop.f32.mrf.mxu0
  %2854 = vmatprep.mubr.bf16.mxu0 0
  %2855 = vmatmul.mubr.bf16.gmra.mxu0 %v2587
  %v2856 = vpop.f32.mrf.mxu0
  %v2857 = vadd.f32 %v2476, %v2856
  %v2858 = vpop.f32.mrf.mxu0
  %v2859 = vpop.f32.mrf.mxu0
  %v2860 = vadd.f32 %v2476, %v2859
  %v2861 = vpop.f32.mrf.mxu0
  %2862 = vmatprep.mubr.bf16.mxu0 0
  %2863 = vmatmul.mubr.bf16.gmra.mxu0 %v2590
  %v2864 = vpop.f32.mrf.mxu0
  %v2865 = vadd.f32 %v2476, %v2864
  %v2866 = vpop.f32.mrf.mxu0
  %v2867 = vpop.f32.mrf.mxu0
  %v2868 = vadd.f32 %v2476, %v2867
  %v2869 = vpop.f32.mrf.mxu0
  %2870 = vmatprep.mubr.bf16.mxu0 0
  %2871 = vmatmul.mubr.bf16.gmra.mxu0 %v2593
  %v2872 = vpop.f32.mrf.mxu0
  %v2873 = vadd.f32 %v2476, %v2872
  %v2874 = vpop.f32.mrf.mxu0
  %v2875 = vpop.f32.mrf.mxu0
  %v2876 = vadd.f32 %v2476, %v2875
  %v2877 = vpop.f32.mrf.mxu0
  %2878 = vmatprep.mubr.bf16.mxu0 0
  %2879 = vmatmul.mubr.bf16.gmra.mxu0 %v2596
  %v2880 = vpop.f32.mrf.mxu0
  %v2881 = vadd.f32 %v2476, %v2880
  %v2882 = vpop.f32.mrf.mxu0
  %v2883 = vpop.f32.mrf.mxu0
  %v2884 = vadd.f32 %v2476, %v2883
  %v2885 = vpop.f32.mrf.mxu0
  %2886 = vdwg.mxu0
  %2951 = vrot.lane.b32.xlu0 %v2633, 80
  %v2952 = vpop.permute.xlu0 %2951
  %2953 = vrot.lane.b32.xlu0 %v2636, 80
  %v2954 = vpop.permute.xlu0 %2953
  %2955 = vrot.lane.b32.xlu0 %v2641, 80
  %v2956 = vpop.permute.xlu0 %2955
  %2957 = vrot.lane.b32.xlu0 %v2644, 80
  %v2958 = vpop.permute.xlu0 %2957
  %2959 = vrot.lane.b32.xlu0 %v2649, 80
  %v2960 = vpop.permute.xlu0 %2959
  %2961 = vrot.lane.b32.xlu0 %v2652, 80
  %v2962 = vpop.permute.xlu0 %2961
  %2963 = vrot.lane.b32.xlu0 %v2657, 80
  %v2964 = vpop.permute.xlu0 %2963
  %2965 = vrot.lane.b32.xlu0 %v2660, 80
  %v2966 = vpop.permute.xlu0 %2965
  %2967 = vrot.lane.b32.xlu0 %v2665, 80
  %v2968 = vpop.permute.xlu0 %2967
  %2969 = vrot.lane.b32.xlu0 %v2668, 80
  %v2970 = vpop.permute.xlu0 %2969
  %2971 = vrot.lane.b32.xlu0 %v2673, 80
  %v2972 = vpop.permute.xlu0 %2971
  %2973 = vrot.lane.b32.xlu0 %v2676, 80
  %v2974 = vpop.permute.xlu0 %2973
  %2975 = vrot.lane.b32.xlu0 %v2681, 80
  %v2976 = vpop.permute.xlu0 %2975
  %2977 = vrot.lane.b32.xlu0 %v2684, 80
  %v2978 = vpop.permute.xlu0 %2977
  %2979 = vrot.lane.b32.xlu0 %v2689, 80
  %v2980 = vpop.permute.xlu0 %2979
  %2981 = vrot.lane.b32.xlu0 %v2692, 80
  %v2982 = vpop.permute.xlu0 %2981
  %2983 = vrot.lane.b32.xlu0 %v2697, 80
  %v2984 = vpop.permute.xlu0 %2983
  %2985 = vrot.lane.b32.xlu0 %v2700, 80
  %v2986 = vpop.permute.xlu0 %2985
  %2987 = vrot.lane.b32.xlu0 %v2705, 80
  %v2988 = vpop.permute.xlu0 %2987
  %2989 = vrot.lane.b32.xlu0 %v2708, 80
  %v2990 = vpop.permute.xlu0 %2989
  %2991 = vrot.lane.b32.xlu0 %v2713, 80
  %v2992 = vpop.permute.xlu0 %2991
  %2993 = vrot.lane.b32.xlu0 %v2716, 80
  %v2994 = vpop.permute.xlu0 %2993
  %2995 = vrot.lane.b32.xlu0 %v2721, 80
  %v2996 = vpop.permute.xlu0 %2995
  %2997 = vrot.lane.b32.xlu0 %v2724, 80
  %v2998 = vpop.permute.xlu0 %2997
  %2999 = vrot.lane.b32.xlu0 %v2729, 80
  %v3000 = vpop.permute.xlu0 %2999
  %3001 = vrot.lane.b32.xlu0 %v2732, 80
  %v3002 = vpop.permute.xlu0 %3001
  %3003 = vrot.lane.b32.xlu0 %v2737, 80
  %v3004 = vpop.permute.xlu0 %3003
  %3005 = vrot.lane.b32.xlu0 %v2740, 80
  %v3006 = vpop.permute.xlu0 %3005
  %3007 = vrot.lane.b32.xlu0 %v2745, 80
  %v3008 = vpop.permute.xlu0 %3007
  %3009 = vrot.lane.b32.xlu0 %v2748, 80
  %v3010 = vpop.permute.xlu0 %3009
  %3011 = vrot.lane.b32.xlu0 %v2753, 80
  %v3012 = vpop.permute.xlu0 %3011
  %3013 = vrot.lane.b32.xlu0 %v2756, 80
  %v3014 = vpop.permute.xlu0 %3013
  %3015 = vrot.lane.b32.xlu0 %v2761, 80
  %v3016 = vpop.permute.xlu0 %3015
  %3017 = vrot.lane.b32.xlu0 %v2764, 80
  %v3018 = vpop.permute.xlu0 %3017
  %3019 = vrot.lane.b32.xlu0 %v2769, 80
  %v3020 = vpop.permute.xlu0 %3019
  %3021 = vrot.lane.b32.xlu0 %v2772, 80
  %v3022 = vpop.permute.xlu0 %3021
  %3023 = vrot.lane.b32.xlu0 %v2777, 80
  %v3024 = vpop.permute.xlu0 %3023
  %3025 = vrot.lane.b32.xlu0 %v2780, 80
  %v3026 = vpop.permute.xlu0 %3025
  %3027 = vrot.lane.b32.xlu0 %v2785, 80
  %v3028 = vpop.permute.xlu0 %3027
  %3029 = vrot.lane.b32.xlu0 %v2788, 80
  %v3030 = vpop.permute.xlu0 %3029
  %3031 = vrot.lane.b32.xlu0 %v2793, 80
  %v3032 = vpop.permute.xlu0 %3031
  %3033 = vrot.lane.b32.xlu0 %v2796, 80
  %v3034 = vpop.permute.xlu0 %3033
  %3035 = vrot.lane.b32.xlu0 %v2801, 80
  %v3036 = vpop.permute.xlu0 %3035
  %3037 = vrot.lane.b32.xlu0 %v2804, 80
  %v3038 = vpop.permute.xlu0 %3037
  %3039 = vrot.lane.b32.xlu0 %v2809, 80
  %v3040 = vpop.permute.xlu0 %3039
  %3041 = vrot.lane.b32.xlu0 %v2812, 80
  %v3042 = vpop.permute.xlu0 %3041
  %3043 = vrot.lane.b32.xlu0 %v2817, 80
  %v3044 = vpop.permute.xlu0 %3043
  %3045 = vrot.lane.b32.xlu0 %v2820, 80
  %v3046 = vpop.permute.xlu0 %3045
  %3047 = vrot.lane.b32.xlu0 %v2825, 80
  %v3048 = vpop.permute.xlu0 %3047
  %3049 = vrot.lane.b32.xlu0 %v2828, 80
  %v3050 = vpop.permute.xlu0 %3049
  %3051 = vrot.lane.b32.xlu0 %v2833, 80
  %v3052 = vpop.permute.xlu0 %3051
  %3053 = vrot.lane.b32.xlu0 %v2836, 80
  %v3054 = vpop.permute.xlu0 %3053
  %3055 = vrot.lane.b32.xlu0 %v2841, 80
  %v3056 = vpop.permute.xlu0 %3055
  %3057 = vrot.lane.b32.xlu0 %v2844, 80
  %v3058 = vpop.permute.xlu0 %3057
  %3059 = vrot.lane.b32.xlu0 %v2849, 80
  %v3060 = vpop.permute.xlu0 %3059
  %3061 = vrot.lane.b32.xlu0 %v2852, 80
  %v3062 = vpop.permute.xlu0 %3061
  %3063 = vrot.lane.b32.xlu0 %v2857, 80
  %v3064 = vpop.permute.xlu0 %3063
  %3065 = vrot.lane.b32.xlu0 %v2860, 80
  %v3066 = vpop.permute.xlu0 %3065
  %3067 = vrot.lane.b32.xlu0 %v2865, 80
  %v3068 = vpop.permute.xlu0 %3067
  %3069 = vrot.lane.b32.xlu0 %v2868, 80
  %v3070 = vpop.permute.xlu0 %3069
  %3071 = vrot.lane.b32.xlu0 %v2873, 80
  %v3072 = vpop.permute.xlu0 %3071
  %3073 = vrot.lane.b32.xlu0 %v2876, 80
  %v3074 = vpop.permute.xlu0 %3073
  %3075 = vrot.lane.b32.xlu0 %v2881, 80
  %v3076 = vpop.permute.xlu0 %3075
  %3077 = vrot.lane.b32.xlu0 %v2884, 80
  %v3078 = vpop.permute.xlu0 %3077
  %v3143 = vmul.f32 %v2633, %v2952
  %v3144 = vmul.f32 %v2636, %v2954
  %v3145 = vmul.f32 %v2641, %v2956
  %v3146 = vmul.f32 %v2644, %v2958
  %v3147 = vmul.f32 %v2649, %v2960
  %v3148 = vmul.f32 %v2652, %v2962
  %v3149 = vmul.f32 %v2657, %v2964
  %v3150 = vmul.f32 %v2660, %v2966
  %v3151 = vmul.f32 %v2665, %v2968
  %v3152 = vmul.f32 %v2668, %v2970
  %v3153 = vmul.f32 %v2673, %v2972
  %v3154 = vmul.f32 %v2676, %v2974
  %v3155 = vmul.f32 %v2681, %v2976
  %v3156 = vmul.f32 %v2684, %v2978
  %v3157 = vmul.f32 %v2689, %v2980
  %v3158 = vmul.f32 %v2692, %v2982
  %v3159 = vmul.f32 %v2697, %v2984
  %v3160 = vmul.f32 %v2700, %v2986
  %v3161 = vmul.f32 %v2705, %v2988
  %v3162 = vmul.f32 %v2708, %v2990
  %v3163 = vmul.f32 %v2713, %v2992
  %v3164 = vmul.f32 %v2716, %v2994
  %v3165 = vmul.f32 %v2721, %v2996
  %v3166 = vmul.f32 %v2724, %v2998
  %v3167 = vmul.f32 %v2729, %v3000
  %v3168 = vmul.f32 %v2732, %v3002
  %v3169 = vmul.f32 %v2737, %v3004
  %v3170 = vmul.f32 %v2740, %v3006
  %v3171 = vmul.f32 %v2745, %v3008
  %v3172 = vmul.f32 %v2748, %v3010
  %v3173 = vmul.f32 %v2753, %v3012
  %v3174 = vmul.f32 %v2756, %v3014
  %v3175 = vmul.f32 %v2761, %v3016
  %v3176 = vmul.f32 %v2764, %v3018
  %v3177 = vmul.f32 %v2769, %v3020
  %v3178 = vmul.f32 %v2772, %v3022
  %v3179 = vmul.f32 %v2777, %v3024
  %v3180 = vmul.f32 %v2780, %v3026
  %v3181 = vmul.f32 %v2785, %v3028
  %v3182 = vmul.f32 %v2788, %v3030
  %v3183 = vmul.f32 %v2793, %v3032
  %v3184 = vmul.f32 %v2796, %v3034
  %v3185 = vmul.f32 %v2801, %v3036
  %v3186 = vmul.f32 %v2804, %v3038
  %v3187 = vmul.f32 %v2809, %v3040
  %v3188 = vmul.f32 %v2812, %v3042
  %v3189 = vmul.f32 %v2817, %v3044
  %v3190 = vmul.f32 %v2820, %v3046
  %v3191 = vmul.f32 %v2825, %v3048
  %v3192 = vmul.f32 %v2828, %v3050
  %v3193 = vmul.f32 %v2833, %v3052
  %v3194 = vmul.f32 %v2836, %v3054
  %v3195 = vmul.f32 %v2841, %v3056
  %v3196 = vmul.f32 %v2844, %v3058
  %v3197 = vmul.f32 %v2849, %v3060
  %v3198 = vmul.f32 %v2852, %v3062
  %v3199 = vmul.f32 %v2857, %v3064
  %v3200 = vmul.f32 %v2860, %v3066
  %v3201 = vmul.f32 %v2865, %v3068
  %v3202 = vmul.f32 %v2868, %v3070
  %v3203 = vmul.f32 %v2873, %v3072
  %v3204 = vmul.f32 %v2876, %v3074
  %v3205 = vmul.f32 %v2881, %v3076
  %v3206 = vmul.f32 %v2884, %v3078
  %v3207 = vpack.c.bf16 %v3144, %v3143
  %v3208 = vpack.c.bf16 %v3146, %v3145
  %v3209 = vpack.c.bf16 %v3148, %v3147
  %v3210 = vpack.c.bf16 %v3150, %v3149
  %v3211 = vpack.c.bf16 %v3152, %v3151
  %v3212 = vpack.c.bf16 %v3154, %v3153
  %v3213 = vpack.c.bf16 %v3156, %v3155
  %v3214 = vpack.c.bf16 %v3158, %v3157
  %v3215 = vpack.c.bf16 %v3160, %v3159
  %v3216 = vpack.c.bf16 %v3162, %v3161
  %v3217 = vpack.c.bf16 %v3164, %v3163
  %v3218 = vpack.c.bf16 %v3166, %v3165
  %v3219 = vpack.c.bf16 %v3168, %v3167
  %v3220 = vpack.c.bf16 %v3170, %v3169
  %v3221 = vpack.c.bf16 %v3172, %v3171
  %v3222 = vpack.c.bf16 %v3174, %v3173
  %v3223 = vpack.c.bf16 %v3176, %v3175
  %v3224 = vpack.c.bf16 %v3178, %v3177
  %v3225 = vpack.c.bf16 %v3180, %v3179
  %v3226 = vpack.c.bf16 %v3182, %v3181
  %v3227 = vpack.c.bf16 %v3184, %v3183
  %v3228 = vpack.c.bf16 %v3186, %v3185
  %v3229 = vpack.c.bf16 %v3188, %v3187
  %v3230 = vpack.c.bf16 %v3190, %v3189
  %v3231 = vpack.c.bf16 %v3192, %v3191
  %v3232 = vpack.c.bf16 %v3194, %v3193
  %v3233 = vpack.c.bf16 %v3196, %v3195
  %v3234 = vpack.c.bf16 %v3198, %v3197
  %v3235 = vpack.c.bf16 %v3200, %v3199
  %v3236 = vpack.c.bf16 %v3202, %v3201
  %v3237 = vpack.c.bf16 %v3204, %v3203
  %v3238 = vpack.c.bf16 %v3206, %v3205
  %v3239 = vld [vmem:[%s11] sm:$0xf]
  %v3240 = vld [vmem:[%s11 + $0x4] sm:$0xf]
  %v3241 = vld [vmem:[%s11 + $0x8] sm:$0xf]
  %v3242 = vld [vmem:[%s11 + $0xc] sm:$0xf]
  %v3243 = vld [vmem:[%s11 + $0x10] sm:$0xf]
  %v3244 = vld [vmem:[%s11 + $0x14] sm:$0xf]
  %v3251 = vunpack.c.l.b16 %v3239
  %v3252 = vunpack.c.l.b16 %v3240
  %v3253 = vunpack.c.l.b16 %v3241
  %v3254 = vunpack.c.l.b16 %v3242
  %v3255 = vunpack.c.l.b16 %v3243
  %v3256 = vunpack.c.l.b16 %v3244
  %v3257 = vpack.c.b16 %v3252, %v3251
  %v3258 = vpack.c.b16 %v3254, %v3253
  %v3259 = vpack.c.b16 %v3256, %v3255
  %vm3263 = vcmask 392192
  %v3265 = vsel %vm3263, %v3207, 0
  %v3268 = vsel %vm3263, %v3208, 0
  %v3271 = vsel %vm3263, %v3209, 0
  %v3274 = vsel %vm3263, %v3210, 0
  %v3277 = vsel %vm3263, %v3211, 0
  %v3280 = vsel %vm3263, %v3212, 0
  %v3283 = vsel %vm3263, %v3213, 0
  %v3286 = vsel %vm3263, %v3214, 0
  %v3289 = vsel %vm3263, %v3215, 0
  %v3292 = vsel %vm3263, %v3216, 0
  %v3295 = vsel %vm3263, %v3217, 0
  %v3298 = vsel %vm3263, %v3218, 0
  %v3301 = vsel %vm3263, %v3219, 0
  %v3304 = vsel %vm3263, %v3220, 0
  %v3307 = vsel %vm3263, %v3221, 0
  %v3310 = vsel %vm3263, %v3222, 0
  %v3313 = vsel %vm3263, %v3223, 0
  %v3316 = vsel %vm3263, %v3224, 0
  %v3319 = vsel %vm3263, %v3225, 0
  %v3322 = vsel %vm3263, %v3226, 0
  %v3325 = vsel %vm3263, %v3227, 0
  %v3328 = vsel %vm3263, %v3228, 0
  %v3331 = vsel %vm3263, %v3229, 0
  %v3334 = vsel %vm3263, %v3230, 0
  %v3337 = vsel %vm3263, %v3231, 0
  %v3340 = vsel %vm3263, %v3232, 0
  %v3343 = vsel %vm3263, %v3233, 0
  %v3346 = vsel %vm3263, %v3234, 0
  %v3349 = vsel %vm3263, %v3235, 0
  %v3352 = vsel %vm3263, %v3236, 0
  %v3355 = vsel %vm3263, %v3237, 0
  %v3358 = vsel %vm3263, %v3238, 0
  %3360 = vmatprep.subr.bf16.mxu0 0
  %3361 = vmatpush1.bf16.msra.mxu0 0
  %3362 = vmatprep.subr.bf16.mxu0 0
  %3363 = vmatpush1.bf16.msra.mxu0 0
  %3364 = vmatprep.subr.bf16.mxu0 0
  %3365 = vmatpush1.bf16.msra.mxu0 0
  %3366 = vmatprep.subr.bf16.mxu0 0
  %3367 = vmatpush1.bf16.msra.mxu0 0
  %3368 = vmatprep.subr.bf16.mxu0 0
  %3369 = vmatpush1.bf16.msra.mxu0 0
  %3370 = vmatprep.subr.bf16.mxu0 0
  %3371 = vmatpush1.bf16.msra.mxu0 %v3259
  %3372 = vmatprep.subr.bf16.mxu0 0
  %3373 = vmatpush1.bf16.msra.mxu0 %v3258
  %3374 = vmatprep.subr.bf16.mxu0 0
  %3375 = vmatpush1.bf16.msra.mxu0 %v3257
  %3376 = vmatprep.subr.bf16.mxu0 0
  %3377 = vmatpush2.bf16.msra.mxu0 0
  %3378 = vmatprep.subr.bf16.mxu0 0
  %3379 = vmatpush2.bf16.msra.mxu0 0
  %3380 = vmatprep.subr.bf16.mxu0 0
  %3381 = vmatpush2.bf16.msra.mxu0 0
  %3382 = vmatprep.subr.bf16.mxu0 0
  %3383 = vmatpush2.bf16.msra.mxu0 0
  %3384 = vmatprep.subr.bf16.mxu0 0
  %3385 = vmatpush2.bf16.msra.mxu0 0
  %3386 = vmatprep.subr.bf16.mxu0 0
  %3387 = vmatpush2.bf16.msra.mxu0 0
  %3388 = vmatprep.subr.bf16.mxu0 0
  %3389 = vmatpush2.bf16.msra.mxu0 0
  %3390 = vmatprep.subr.bf16.mxu0 0
  %3391 = vmatpush2.bf16.msra.mxu0 0
  %3392 = vmatprep.mubr.bf16.mxu0 0
  %3393 = vmatmul.mubr.bf16.gmra.mxu0 %v3265
  %v3394 = vpop.f32.mrf.mxu0
  %v3395 = vadd.f32 0.0, %v3394
  %v3396 = vpop.f32.mrf.mxu0
  %v3397 = vpop.f32.mrf.mxu0
  %v3398 = vadd.f32 0.0, %v3397
  %v3399 = vpop.f32.mrf.mxu0
  %3400 = vmatprep.mubr.bf16.mxu0 0
  %3401 = vmatmul.mubr.bf16.gmra.mxu0 %v3268
  %v3402 = vpop.f32.mrf.mxu0
  %v3403 = vadd.f32 0.0, %v3402
  %v3404 = vpop.f32.mrf.mxu0
  %v3405 = vpop.f32.mrf.mxu0
  %v3406 = vadd.f32 0.0, %v3405
  %v3407 = vpop.f32.mrf.mxu0
  %3408 = vmatprep.mubr.bf16.mxu0 0
  %3409 = vmatmul.mubr.bf16.gmra.mxu0 %v3271
  %v3410 = vpop.f32.mrf.mxu0
  %v3411 = vadd.f32 0.0, %v3410
  %v3412 = vpop.f32.mrf.mxu0
  %v3413 = vpop.f32.mrf.mxu0
  %v3414 = vadd.f32 0.0, %v3413
  %v3415 = vpop.f32.mrf.mxu0
  %3416 = vmatprep.mubr.bf16.mxu0 0
  %3417 = vmatmul.mubr.bf16.gmra.mxu0 %v3274
  %v3418 = vpop.f32.mrf.mxu0
  %v3419 = vadd.f32 0.0, %v3418
  %v3420 = vpop.f32.mrf.mxu0
  %v3421 = vpop.f32.mrf.mxu0
  %v3422 = vadd.f32 0.0, %v3421
  %v3423 = vpop.f32.mrf.mxu0
  %3424 = vmatprep.mubr.bf16.mxu0 0
  %3425 = vmatmul.mubr.bf16.gmra.mxu0 %v3277
  %v3426 = vpop.f32.mrf.mxu0
  %v3427 = vadd.f32 0.0, %v3426
  %v3428 = vpop.f32.mrf.mxu0
  %v3429 = vpop.f32.mrf.mxu0
  %v3430 = vadd.f32 0.0, %v3429
  %v3431 = vpop.f32.mrf.mxu0
  %3432 = vmatprep.mubr.bf16.mxu0 0
  %3433 = vmatmul.mubr.bf16.gmra.mxu0 %v3280
  %v3434 = vpop.f32.mrf.mxu0
  %v3435 = vadd.f32 0.0, %v3434
  %v3436 = vpop.f32.mrf.mxu0
  %v3437 = vpop.f32.mrf.mxu0
  %v3438 = vadd.f32 0.0, %v3437
  %v3439 = vpop.f32.mrf.mxu0
  %3440 = vmatprep.mubr.bf16.mxu0 0
  %3441 = vmatmul.mubr.bf16.gmra.mxu0 %v3283
  %v3442 = vpop.f32.mrf.mxu0
  %v3443 = vadd.f32 0.0, %v3442
  %v3444 = vpop.f32.mrf.mxu0
  %v3445 = vpop.f32.mrf.mxu0
  %v3446 = vadd.f32 0.0, %v3445
  %v3447 = vpop.f32.mrf.mxu0
  %3448 = vmatprep.mubr.bf16.mxu0 0
  %3449 = vmatmul.mubr.bf16.gmra.mxu0 %v3286
  %v3450 = vpop.f32.mrf.mxu0
  %v3451 = vadd.f32 0.0, %v3450
  %v3452 = vpop.f32.mrf.mxu0
  %v3453 = vpop.f32.mrf.mxu0
  %v3454 = vadd.f32 0.0, %v3453
  %v3455 = vpop.f32.mrf.mxu0
  %3456 = vmatprep.mubr.bf16.mxu0 0
  %3457 = vmatmul.mubr.bf16.gmra.mxu0 %v3289
  %v3458 = vpop.f32.mrf.mxu0
  %v3459 = vadd.f32 0.0, %v3458
  %v3460 = vpop.f32.mrf.mxu0
  %v3461 = vpop.f32.mrf.mxu0
  %v3462 = vadd.f32 0.0, %v3461
  %v3463 = vpop.f32.mrf.mxu0
  %3464 = vmatprep.mubr.bf16.mxu0 0
  %3465 = vmatmul.mubr.bf16.gmra.mxu0 %v3292
  %v3466 = vpop.f32.mrf.mxu0
  %v3467 = vadd.f32 0.0, %v3466
  %v3468 = vpop.f32.mrf.mxu0
  %v3469 = vpop.f32.mrf.mxu0
  %v3470 = vadd.f32 0.0, %v3469
  %v3471 = vpop.f32.mrf.mxu0
  %3472 = vmatprep.mubr.bf16.mxu0 0
  %3473 = vmatmul.mubr.bf16.gmra.mxu0 %v3295
  %v3474 = vpop.f32.mrf.mxu0
  %v3475 = vadd.f32 0.0, %v3474
  %v3476 = vpop.f32.mrf.mxu0
  %v3477 = vpop.f32.mrf.mxu0
  %v3478 = vadd.f32 0.0, %v3477
  %v3479 = vpop.f32.mrf.mxu0
  %3480 = vmatprep.mubr.bf16.mxu0 0
  %3481 = vmatmul.mubr.bf16.gmra.mxu0 %v3298
  %v3482 = vpop.f32.mrf.mxu0
  %v3483 = vadd.f32 0.0, %v3482
  %v3484 = vpop.f32.mrf.mxu0
  %v3485 = vpop.f32.mrf.mxu0
  %v3486 = vadd.f32 0.0, %v3485
  %v3487 = vpop.f32.mrf.mxu0
  %3488 = vmatprep.mubr.bf16.mxu0 0
  %3489 = vmatmul.mubr.bf16.gmra.mxu0 %v3301
  %v3490 = vpop.f32.mrf.mxu0
  %v3491 = vadd.f32 0.0, %v3490
  %v3492 = vpop.f32.mrf.mxu0
  %v3493 = vpop.f32.mrf.mxu0
  %v3494 = vadd.f32 0.0, %v3493
  %v3495 = vpop.f32.mrf.mxu0
  %3496 = vmatprep.mubr.bf16.mxu0 0
  %3497 = vmatmul.mubr.bf16.gmra.mxu0 %v3304
  %v3498 = vpop.f32.mrf.mxu0
  %v3499 = vadd.f32 0.0, %v3498
  %v3500 = vpop.f32.mrf.mxu0
  %v3501 = vpop.f32.mrf.mxu0
  %v3502 = vadd.f32 0.0, %v3501
  %v3503 = vpop.f32.mrf.mxu0
  %3504 = vmatprep.mubr.bf16.mxu0 0
  %3505 = vmatmul.mubr.bf16.gmra.mxu0 %v3307
  %v3506 = vpop.f32.mrf.mxu0
  %v3507 = vadd.f32 0.0, %v3506
  %v3508 = vpop.f32.mrf.mxu0
  %v3509 = vpop.f32.mrf.mxu0
  %v3510 = vadd.f32 0.0, %v3509
  %v3511 = vpop.f32.mrf.mxu0
  %3512 = vmatprep.mubr.bf16.mxu0 0
  %3513 = vmatmul.mubr.bf16.gmra.mxu0 %v3310
  %v3514 = vpop.f32.mrf.mxu0
  %v3515 = vadd.f32 0.0, %v3514
  %v3516 = vpop.f32.mrf.mxu0
  %v3517 = vpop.f32.mrf.mxu0
  %v3518 = vadd.f32 0.0, %v3517
  %v3519 = vpop.f32.mrf.mxu0
  %3520 = vmatprep.mubr.bf16.mxu0 0
  %3521 = vmatmul.mubr.bf16.gmra.mxu0 %v3313
  %v3522 = vpop.f32.mrf.mxu0
  %v3523 = vadd.f32 0.0, %v3522
  %v3524 = vpop.f32.mrf.mxu0
  %v3525 = vpop.f32.mrf.mxu0
  %v3526 = vadd.f32 0.0, %v3525
  %v3527 = vpop.f32.mrf.mxu0
  %3528 = vmatprep.mubr.bf16.mxu0 0
  %3529 = vmatmul.mubr.bf16.gmra.mxu0 %v3316
  %v3530 = vpop.f32.mrf.mxu0
  %v3531 = vadd.f32 0.0, %v3530
  %v3532 = vpop.f32.mrf.mxu0
  %v3533 = vpop.f32.mrf.mxu0
  %v3534 = vadd.f32 0.0, %v3533
  %v3535 = vpop.f32.mrf.mxu0
  %3536 = vmatprep.mubr.bf16.mxu0 0
  %3537 = vmatmul.mubr.bf16.gmra.mxu0 %v3319
  %v3538 = vpop.f32.mrf.mxu0
  %v3539 = vadd.f32 0.0, %v3538
  %v3540 = vpop.f32.mrf.mxu0
  %v3541 = vpop.f32.mrf.mxu0
  %v3542 = vadd.f32 0.0, %v3541
  %v3543 = vpop.f32.mrf.mxu0
  %3544 = vmatprep.mubr.bf16.mxu0 0
  %3545 = vmatmul.mubr.bf16.gmra.mxu0 %v3322
  %v3546 = vpop.f32.mrf.mxu0
  %v3547 = vadd.f32 0.0, %v3546
  %v3548 = vpop.f32.mrf.mxu0
  %v3549 = vpop.f32.mrf.mxu0
  %v3550 = vadd.f32 0.0, %v3549
  %v3551 = vpop.f32.mrf.mxu0
  %3552 = vmatprep.mubr.bf16.mxu0 0
  %3553 = vmatmul.mubr.bf16.gmra.mxu0 %v3325
  %v3554 = vpop.f32.mrf.mxu0
  %v3555 = vadd.f32 0.0, %v3554
  %v3556 = vpop.f32.mrf.mxu0
  %v3557 = vpop.f32.mrf.mxu0
  %v3558 = vadd.f32 0.0, %v3557
  %v3559 = vpop.f32.mrf.mxu0
  %3560 = vmatprep.mubr.bf16.mxu0 0
  %3561 = vmatmul.mubr.bf16.gmra.mxu0 %v3328
  %v3562 = vpop.f32.mrf.mxu0
  %v3563 = vadd.f32 0.0, %v3562
  %v3564 = vpop.f32.mrf.mxu0
  %v3565 = vpop.f32.mrf.mxu0
  %v3566 = vadd.f32 0.0, %v3565
  %v3567 = vpop.f32.mrf.mxu0
  %3568 = vmatprep.mubr.bf16.mxu0 0
  %3569 = vmatmul.mubr.bf16.gmra.mxu0 %v3331
  %v3570 = vpop.f32.mrf.mxu0
  %v3571 = vadd.f32 0.0, %v3570
  %v3572 = vpop.f32.mrf.mxu0
  %v3573 = vpop.f32.mrf.mxu0
  %v3574 = vadd.f32 0.0, %v3573
  %v3575 = vpop.f32.mrf.mxu0
  %3576 = vmatprep.mubr.bf16.mxu0 0
  %3577 = vmatmul.mubr.bf16.gmra.mxu0 %v3334
  %v3578 = vpop.f32.mrf.mxu0
  %v3579 = vadd.f32 0.0, %v3578
  %v3580 = vpop.f32.mrf.mxu0
  %v3581 = vpop.f32.mrf.mxu0
  %v3582 = vadd.f32 0.0, %v3581
  %v3583 = vpop.f32.mrf.mxu0
  %3584 = vmatprep.mubr.bf16.mxu0 0
  %3585 = vmatmul.mubr.bf16.gmra.mxu0 %v3337
  %v3586 = vpop.f32.mrf.mxu0
  %v3587 = vadd.f32 0.0, %v3586
  %v3588 = vpop.f32.mrf.mxu0
  %v3589 = vpop.f32.mrf.mxu0
  %v3590 = vadd.f32 0.0, %v3589
  %v3591 = vpop.f32.mrf.mxu0
  %3592 = vmatprep.mubr.bf16.mxu0 0
  %3593 = vmatmul.mubr.bf16.gmra.mxu0 %v3340
  %v3594 = vpop.f32.mrf.mxu0
  %v3595 = vadd.f32 0.0, %v3594
  %v3596 = vpop.f32.mrf.mxu0
  %v3597 = vpop.f32.mrf.mxu0
  %v3598 = vadd.f32 0.0, %v3597
  %v3599 = vpop.f32.mrf.mxu0
  %3600 = vmatprep.mubr.bf16.mxu0 0
  %3601 = vmatmul.mubr.bf16.gmra.mxu0 %v3343
  %v3602 = vpop.f32.mrf.mxu0
  %v3603 = vadd.f32 0.0, %v3602
  %v3604 = vpop.f32.mrf.mxu0
  %v3605 = vpop.f32.mrf.mxu0
  %v3606 = vadd.f32 0.0, %v3605
  %v3607 = vpop.f32.mrf.mxu0
  %3608 = vmatprep.mubr.bf16.mxu0 0
  %3609 = vmatmul.mubr.bf16.gmra.mxu0 %v3346
  %v3610 = vpop.f32.mrf.mxu0
  %v3611 = vadd.f32 0.0, %v3610
  %v3612 = vpop.f32.mrf.mxu0
  %v3613 = vpop.f32.mrf.mxu0
  %v3614 = vadd.f32 0.0, %v3613
  %v3615 = vpop.f32.mrf.mxu0
  %3616 = vmatprep.mubr.bf16.mxu0 0
  %3617 = vmatmul.mubr.bf16.gmra.mxu0 %v3349
  %v3618 = vpop.f32.mrf.mxu0
  %v3619 = vadd.f32 0.0, %v3618
  %v3620 = vpop.f32.mrf.mxu0
  %v3621 = vpop.f32.mrf.mxu0
  %v3622 = vadd.f32 0.0, %v3621
  %v3623 = vpop.f32.mrf.mxu0
  %3624 = vmatprep.mubr.bf16.mxu0 0
  %3625 = vmatmul.mubr.bf16.gmra.mxu0 %v3352
  %v3626 = vpop.f32.mrf.mxu0
  %v3627 = vadd.f32 0.0, %v3626
  %v3628 = vpop.f32.mrf.mxu0
  %v3629 = vpop.f32.mrf.mxu0
  %v3630 = vadd.f32 0.0, %v3629
  %v3631 = vpop.f32.mrf.mxu0
  %3632 = vmatprep.mubr.bf16.mxu0 0
  %3633 = vmatmul.mubr.bf16.gmra.mxu0 %v3355
  %v3634 = vpop.f32.mrf.mxu0
  %v3635 = vadd.f32 0.0, %v3634
  %v3636 = vpop.f32.mrf.mxu0
  %v3637 = vpop.f32.mrf.mxu0
  %v3638 = vadd.f32 0.0, %v3637
  %v3639 = vpop.f32.mrf.mxu0
  %3640 = vmatprep.mubr.bf16.mxu0 0
  %3641 = vmatmul.mubr.bf16.gmra.mxu0 %v3358
  %v3642 = vpop.f32.mrf.mxu0
  %v3643 = vadd.f32 0.0, %v3642
  %v3644 = vpop.f32.mrf.mxu0
  %v3645 = vpop.f32.mrf.mxu0
  %v3646 = vadd.f32 0.0, %v3645
  %v3647 = vpop.f32.mrf.mxu0
  %3648 = vdwg.mxu0
  %vm3649 = vcmask 23552
  %3650 = vst.msk [vmem:[%s12] sm:$0xff] %vm3649, %v3395
  %3651 = vst.msk [vmem:[%s12 + $0x8] sm:$0xff] %vm3649, %v3398
  %3652 = vst.msk [vmem:[%s12 + $0x10] sm:$0xff] %vm3649, %v3403
  %3653 = vst.msk [vmem:[%s12 + $0x18] sm:$0xff] %vm3649, %v3406
  %3654 = vst.msk [vmem:[%s12 + $0x20] sm:$0xff] %vm3649, %v3411
  %3655 = vst.msk [vmem:[%s12 + $0x28] sm:$0xff] %vm3649, %v3414
  %3656 = vst.msk [vmem:[%s12 + $0x30] sm:$0xff] %vm3649, %v3419
  %3657 = vst.msk [vmem:[%s12 + $0x38] sm:$0xff] %vm3649, %v3422
  %3658 = vst.msk [vmem:[%s12 + $0x40] sm:$0xff] %vm3649, %v3427
  %3659 = vst.msk [vmem:[%s12 + $0x48] sm:$0xff] %vm3649, %v3430
  %3660 = vst.msk [vmem:[%s12 + $0x50] sm:$0xff] %vm3649, %v3435
  %3661 = vst.msk [vmem:[%s12 + $0x58] sm:$0xff] %vm3649, %v3438
  %3662 = vst.msk [vmem:[%s12 + $0x60] sm:$0xff] %vm3649, %v3443
  %3663 = vst.msk [vmem:[%s12 + $0x68] sm:$0xff] %vm3649, %v3446
  %3664 = vst.msk [vmem:[%s12 + $0x70] sm:$0xff] %vm3649, %v3451
  %3665 = vst.msk [vmem:[%s12 + $0x78] sm:$0xff] %vm3649, %v3454
  %3666 = vst.msk [vmem:[%s12 + $0x80] sm:$0xff] %vm3649, %v3459
  %3667 = vst.msk [vmem:[%s12 + $0x88] sm:$0xff] %vm3649, %v3462
  %3668 = vst.msk [vmem:[%s12 + $0x90] sm:$0xff] %vm3649, %v3467
  %3669 = vst.msk [vmem:[%s12 + $0x98] sm:$0xff] %vm3649, %v3470
  %3670 = vst.msk [vmem:[%s12 + $0xa0] sm:$0xff] %vm3649, %v3475
  %3671 = vst.msk [vmem:[%s12 + $0xa8] sm:$0xff] %vm3649, %v3478
  %3672 = vst.msk [vmem:[%s12 + $0xb0] sm:$0xff] %vm3649, %v3483
  %3673 = vst.msk [vmem:[%s12 + $0xb8] sm:$0xff] %vm3649, %v3486
  %3674 = vst.msk [vmem:[%s12 + $0xc0] sm:$0xff] %vm3649, %v3491
  %3675 = vst.msk [vmem:[%s12 + $0xc8] sm:$0xff] %vm3649, %v3494
  %3676 = vst.msk [vmem:[%s12 + $0xd0] sm:$0xff] %vm3649, %v3499
  %3677 = vst.msk [vmem:[%s12 + $0xd8] sm:$0xff] %vm3649, %v3502
  %3678 = vst.msk [vmem:[%s12 + $0xe0] sm:$0xff] %vm3649, %v3507
  %3679 = vst.msk [vmem:[%s12 + $0xe8] sm:$0xff] %vm3649, %v3510
  %3680 = vst.msk [vmem:[%s12 + $0xf0] sm:$0xff] %vm3649, %v3515
  %3681 = vst.msk [vmem:[%s12 + $0xf8] sm:$0xff] %vm3649, %v3518
  %3682 = vst.msk [vmem:[%s12 + $0x100] sm:$0xff] %vm3649, %v3523
  %3683 = vst.msk [vmem:[%s12 + $0x108] sm:$0xff] %vm3649, %v3526
  %3684 = vst.msk [vmem:[%s12 + $0x110] sm:$0xff] %vm3649, %v3531
  %3685 = vst.msk [vmem:[%s12 + $0x118] sm:$0xff] %vm3649, %v3534
  %3686 = vst.msk [vmem:[%s12 + $0x120] sm:$0xff] %vm3649, %v3539
  %3687 = vst.msk [vmem:[%s12 + $0x128] sm:$0xff] %vm3649, %v3542
  %3688 = vst.msk [vmem:[%s12 + $0x130] sm:$0xff] %vm3649, %v3547
  %3689 = vst.msk [vmem:[%s12 + $0x138] sm:$0xff] %vm3649, %v3550
  %3690 = vst.msk [vmem:[%s12 + $0x140] sm:$0xff] %vm3649, %v3555
  %3691 = vst.msk [vmem:[%s12 + $0x148] sm:$0xff] %vm3649, %v3558
  %3692 = vst.msk [vmem:[%s12 + $0x150] sm:$0xff] %vm3649, %v3563
  %3693 = vst.msk [vmem:[%s12 + $0x158] sm:$0xff] %vm3649, %v3566
  %3694 = vst.msk [vmem:[%s12 + $0x160] sm:$0xff] %vm3649, %v3571
  %3695 = vst.msk [vmem:[%s12 + $0x168] sm:$0xff] %vm3649, %v3574
  %3696 = vst.msk [vmem:[%s12 + $0x170] sm:$0xff] %vm3649, %v3579
  %3697 = vst.msk [vmem:[%s12 + $0x178] sm:$0xff] %vm3649, %v3582
  %3698 = vst.msk [vmem:[%s12 + $0x180] sm:$0xff] %vm3649, %v3587
  %3699 = vst.msk [vmem:[%s12 + $0x188] sm:$0xff] %vm3649, %v3590
  %3700 = vst.msk [vmem:[%s12 + $0x190] sm:$0xff] %vm3649, %v3595
  %3701 = vst.msk [vmem:[%s12 + $0x198] sm:$0xff] %vm3649, %v3598
  %3702 = vst.msk [vmem:[%s12 + $0x1a0] sm:$0xff] %vm3649, %v3603
  %3703 = vst.msk [vmem:[%s12 + $0x1a8] sm:$0xff] %vm3649, %v3606
  %3704 = vst.msk [vmem:[%s12 + $0x1b0] sm:$0xff] %vm3649, %v3611
  %3705 = vst.msk [vmem:[%s12 + $0x1b8] sm:$0xff] %vm3649, %v3614
  %3706 = vst.msk [vmem:[%s12 + $0x1c0] sm:$0xff] %vm3649, %v3619
  %3707 = vst.msk [vmem:[%s12 + $0x1c8] sm:$0xff] %vm3649, %v3622
  %3708 = vst.msk [vmem:[%s12 + $0x1d0] sm:$0xff] %vm3649, %v3627
  %3709 = vst.msk [vmem:[%s12 + $0x1d8] sm:$0xff] %vm3649, %v3630
  %3710 = vst.msk [vmem:[%s12 + $0x1e0] sm:$0xff] %vm3649, %v3635
  %3711 = vst.msk [vmem:[%s12 + $0x1e8] sm:$0xff] %vm3649, %v3638
  %3712 = vst.msk [vmem:[%s12 + $0x1f0] sm:$0xff] %vm3649, %v3643
  %3713 = vst.msk [vmem:[%s12 + $0x1f8] sm:$0xff] %vm3649, %v3646
  // Predicated region
  $region50: #{lbs_pbs_forward.1} parent=0 // pred_check
    _
  $region51: #{lbs_pbs_forward.1} parent=0 // pred_check_branch
    %3715 = sbr.rel (0) target = $region53
  $region52: #{lbs_pbs_forward.1} parent=0 // pred_region
    _
  $region53: #{lbs_pbs_forward.1} parent=0 // pred_fallthru
    _
  // Predicated region
  $region54: #{lbs_pbs_forward.1} parent=0 // pred_check
    _
  $region55: #{lbs_pbs_forward.1} parent=0 // pred_check_branch
    %3717 = sbr.rel (0) target = $region57
  $region56: #{lbs_pbs_forward.1} parent=0 // pred_region
    _
  $region57: #{lbs_pbs_forward.1} parent=0 // pred_fallthru
    _

</llo_original>
